<compile_context>
chip_gen: v6e
topology: v6e:2x2x1
jax: 0.10.0
libtpu: 0.0.40
codegen_flags: <defaults>
</compile_context>

<pallas_src>
import jax
import jax.numpy as jnp
from jax import lax
from jax.experimental import pallas as pl
from jax.experimental.pallas import tpu as pltpu


def _round_up(x, m):
    return ((x + m - 1) // m) * m


def _pad_gates(w, h, hp):
    """Pad each of the 3 GRU gate blocks (r | z | n) along last axis H -> Hp."""
    if hp == h:
        return w
    lead = w.shape[:-1]
    w3 = w.reshape(lead + (3, h))
    pad = [(0, 0)] * len(lead) + [(0, 0), (0, hp - h)]
    return jnp.pad(w3, pad).reshape(lead + (3 * hp,))


# ---------------------------------------------------------------------------
# One-time parameter preparation (padding + bias folding), hoisted out of the
# per-call forward per the performance review.
# ---------------------------------------------------------------------------
def prepare_params(params):
    emb = params["embedding"]          # (V, E)
    w_ih_t = params["w_ih_t"]          # (E, 3H)   gate order r|z|n
    w_hh_t = params["w_hh_t"]          # (H, 3H)
    b_ih = params["b_ih"]              # (1, 3H)
    b_hh = params["b_hh"]              # (1, 3H)
    w_fc_t = params["w_fc_t"]          # (H, V)
    b_fc = params["b_fc"]              # (1, V)

    V, _ = emb.shape
    H = w_hh_t.shape[0]
    Hp = _round_up(H, 128)
    Vp = _round_up(V, 128)

    # Fold the r/z thirds of b_hh into b_ih (removes 2/3 of the per-step bias
    # add); only the n-gate hidden bias must stay inside the r*(.) term.
    b_fold = jnp.concatenate(
        [b_ih[:, 0:2 * H] + b_hh[:, 0:2 * H], b_ih[:, 2 * H:3 * H]], axis=1)
    b_hn = b_hh[:, 2 * H:3 * H]                                    # (1, H)

    return {
        "embedding": emb,                                          # (V, E)
        "w_ih_p": _pad_gates(w_ih_t, H, Hp),                       # (E, 3Hp)
        "b_ih_p": _pad_gates(b_fold, H, Hp),                       # (1, 3Hp)
        "w_hh_p": jnp.pad(_pad_gates(w_hh_t, H, Hp),
                          ((0, Hp - H), (0, 0))),                  # (Hp, 3Hp)
        "b_hn_p": jnp.pad(b_hn, ((0, 0), (0, Hp - H))),            # (1, Hp)
        "w_fc_p": jnp.pad(w_fc_t, ((0, Hp - H), (0, Vp - V))),     # (Hp, Vp)
        "b_fc_p": jnp.pad(b_fc, ((0, 0), (0, Vp - V))),            # (1, Vp)
        "vocab_size": V,
    }


# ---------------------------------------------------------------------------
# Fused kernel: input projection + GRU recurrence + Linear head per T-block.
# ---------------------------------------------------------------------------
def _fused_gru_kernel(emb_ref, w_ih_ref, b_ih_ref, w_hh_ref, b_hn_ref,
                      w_fc_ref, b_fc_ref, out_ref, gi_scr, hs_scr, h_scr):
    """emb_ref : (TT, Bp, E)     time-major embedded tokens
       w_ih_ref: (E, 3Hp)        input-gate weights (gate-padded, transposed)
       b_ih_ref: (1, 3Hp)        b_ih with r/z parts of b_hh folded in
       w_hh_ref: (Hp, 3Hp)       recurrent weights (gate-padded, transposed)
       b_hn_ref: (1, Hp)         n-gate hidden bias only
       w_fc_ref: (Hp, Vp), b_fc_ref: (1, Vp)
       out_ref : (Bp, TT, Vp)    batch-first logits block
       gi_scr  : (TT, Bp, 3Hp)   VMEM scratch (input-gate pre-activations)
       hs_scr  : (TT, Bp, Hp)    VMEM scratch (hidden states of this block)
       h_scr   : (Bp, Hp)        persistent VMEM carry across grid blocks
    """
    tt, bp, e = emb_ref.shape
    hp = h_scr.shape[-1]

    @pl.when(pl.program_id(0) == 0)
    def _():
        h_scr[...] = jnp.zeros_like(h_scr)            # h_0 = 0 (PyTorch default)

    # (1) Hoisted input projection for the whole time block (parallel in time).
    x2 = emb_ref[...].reshape(tt * bp, e)
    gi_scr[...] = (
        jnp.dot(x2, w_ih_ref[...], preferred_element_type=jnp.float32)
        + b_ih_ref[...]
    ).reshape(tt, bp, 3 * hp)

    whh = w_hh_ref[...]
    bhn = b_hn_ref[...]

    # (2) Serial recurrence: only h @ W_hh^T + gate math per step.
    # TODO(synk): pltpu.matmul_push_rhs could keep W_hh resident in MXU staging
    # registers across the unrolled steps; skipped to keep lowering simple.
    def step(i, h):
        gi = gi_scr[i]                                               # (Bp, 3Hp)
        gh = jnp.dot(h, whh, preferred_element_type=jnp.float32)     # (Bp, 3Hp)
        r = jax.nn.sigmoid(gi[:, 0:hp] + gh[:, 0:hp])
        z = jax.nn.sigmoid(gi[:, hp:2 * hp] + gh[:, hp:2 * hp])
        n = jnp.tanh(gi[:, 2 * hp:3 * hp] + r * (gh[:, 2 * hp:3 * hp] + bhn))
        h_new = (1.0 - z) * n + z * h
        hs_scr[i] = h_new
        return h_new

    h_scr[...] = lax.fori_loop(0, tt, step, h_scr[...], unroll=True)

    # (3) Fused Linear head: one (TT*Bp, Hp) @ (Hp, Vp) lane-dense matmul.
    logits = (
        jnp.dot(hs_scr[...].reshape(tt * bp, hp), w_fc_ref[...],
                preferred_element_type=jnp.float32)
        + b_fc_ref[...]
    )
    # Batch-first write: static per-step row stores perform the
    # (TT, Bp, Vp) -> (Bp, TT, Vp) transpose in-kernel, so the wrapper does
    # not need an extra HBM transpose pass over the logits.
    for i in range(tt):
        out_ref[:, i, :] = logits[i * bp:(i + 1) * bp, :].astype(out_ref.dtype)


# ---------------------------------------------------------------------------
# Forward wrapper
# ---------------------------------------------------------------------------
def surname_generator_forward(x_in, prepped, *, time_block=32):
    """x_in: (B, T) int32 token indices.  Returns logits (B, T, V) float32."""
    emb = prepped["embedding"]
    w_ih_p, b_ih_p = prepped["w_ih_p"], prepped["b_ih_p"]
    w_hh_p, b_hn_p = prepped["w_hh_p"], prepped["b_hn_p"]
    w_fc_p, b_fc_p = prepped["w_fc_p"], prepped["b_fc_p"]
    V = prepped["vocab_size"]

    E = emb.shape[1]
    Hp = w_hh_p.shape[0]
    Vp = w_fc_p.shape[1]

    B, T = x_in.shape
    Bp = _round_up(B, 8)
    TT = _round_up(min(time_block, max(T, 1)), 8)   # sublane-friendly T block
    T_pad = _round_up(T, TT)

    # Glue: pad batch/time with token 0 (padding_idx) and gather time-major
    # directly (transpose the cheap int32 indices, not the gathered floats).
    x_pad = jnp.pad(x_in, ((0, Bp - B), (0, T_pad - T)))
    emb_tm = jnp.take(emb, x_pad.T, axis=0)                          # (Tp, Bp, E)

    # TODO(synk): for large Hp/Vp, single-buffer the constant-index weight
    # BlockSpecs (pipeline_mode=pl.Buffered(1)) and set vmem_limit_bytes /
    # tile Vp for the 64 MiB VMEM of v7x; irrelevant at these shapes.
    out = pl.pallas_call(
        _fused_gru_kernel,
        out_shape=jax.ShapeDtypeStruct((Bp, T_pad, Vp), jnp.float32),
        grid_spec=pltpu.PrefetchScalarGridSpec(
            num_scalar_prefetch=0,
            grid=(T_pad // TT,),
            in_specs=[
                pl.BlockSpec((TT, Bp, E), lambda t: (t, 0, 0)),
                pl.BlockSpec((E, 3 * Hp), lambda t: (0, 0)),
                pl.BlockSpec((1, 3 * Hp), lambda t: (0, 0)),
                pl.BlockSpec((Hp, 3 * Hp), lambda t: (0, 0)),
                pl.BlockSpec((1, Hp), lambda t: (0, 0)),
                pl.BlockSpec((Hp, Vp), lambda t: (0, 0)),
                pl.BlockSpec((1, Vp), lambda t: (0, 0)),
            ],
            out_specs=pl.BlockSpec((Bp, TT, Vp), lambda t: (0, t, 0)),
            scratch_shapes=[
                pltpu.VMEM((TT, Bp, 3 * Hp), jnp.float32),   # gi block
                pltpu.VMEM((TT, Bp, Hp), jnp.float32),       # hs block
                pltpu.VMEM((Bp, Hp), jnp.float32),           # h carry
            ],
        ),
        compiler_params=pltpu.CompilerParams(
            dimension_semantics=("arbitrary",)),   # recurrence is sequential
    )(emb_tm, w_ih_p, b_ih_p, w_hh_p, b_hn_p, w_fc_p, b_fc_p)

    # Strip batch/time/vocab padding (already batch-first).
    return out[:B, :T, :V]


# ---------------------------------------------------------------------------
# Pure-JAX reference of the PyTorch forward, for verification.
# ---------------------------------------------------------------------------
def reference_forward(x_in, params):
    emb_table = params["embedding"]
    w_ih_t, w_hh_t = params["w_ih_t"], params["w_hh_t"]
    b_ih, b_hh = params["b_ih"][0], params["b_hh"][0]
    w_fc_t, b_fc = params["w_fc_t"], params["b_fc"][0]
    H = w_hh_t.shape[0]

    embedded = jnp.take(emb_table, x_in, axis=0)            # (B, T, E)

    def step(h, x_t):
        gi = x_t @ w_ih_t + b_ih
        gh = h @ w_hh_t + b_hh
        r = jax.nn.sigmoid(gi[:, 0:H] + gh[:, 0:H])
        z = jax.nn.sigmoid(gi[:, H:2 * H] + gh[:, H:2 * H])
        n = jnp.tanh(gi[:, 2 * H:3 * H] + r * gh[:, 2 * H:3 * H])
        h_new = (1.0 - z) * n + z * h
        return h_new, h_new

    B = x_in.shape[0]
    h0 = jnp.zeros((B, H), jnp.float32)
    _, hs = lax.scan(step, h0, jnp.transpose(embedded, (1, 0, 2)))
    hs = jnp.transpose(hs, (1, 0, 2))                       # (B, T, H)
    return hs @ w_fc_t + b_fc


def init_params(key, vocab_size, embedding_size, hidden_size):
    kE, k1, k2, k3, k4, k5, k6 = jax.random.split(key, 7)
    bound = 1.0 / jnp.sqrt(hidden_size)

    emb = jax.random.normal(kE, (vocab_size, embedding_size), jnp.float32)
    emb = emb.at[0].set(0.0)                                # padding_idx=0

    def u(k, shape):
        return jax.random.uniform(k, shape, jnp.float32, -bound, bound)

    # Stored pre-transposed: (E, 3H), (H, 3H), (H, V); PyTorch gate order r,z,n
    return {
        "embedding": emb,
        "w_ih_t": u(k1, (embedding_size, 3 * hidden_size)),
        "w_hh_t": u(k2, (hidden_size, 3 * hidden_size)),
        "b_ih": u(k3, (1, 3 * hidden_size)),
        "b_hh": u(k4, (1, 3 * hidden_size)),
        "w_fc_t": u(k5, (hidden_size, vocab_size)),
        "b_fc": u(k6, (1, vocab_size)),
    }


if __name__ == "__main__":
    # Small, module-consistent shapes.
    batch, seq_len = 2, 8
    vocab_size, embedding_size, hidden_size = 32, 16, 32

    key = jax.random.PRNGKey(0)
    k_params, k_tokens = jax.random.split(key)

    params = init_params(k_params, vocab_size, embedding_size, hidden_size)
    x_in = jax.random.randint(k_tokens, (batch, seq_len), 0, vocab_size,
                              dtype=jnp.int32)

    prepped = prepare_params(params)        # one-time padding + bias folding
    logits = jax.block_until_ready(surname_generator_forward(x_in, prepped))
    ref = jax.block_until_ready(reference_forward(x_in, params))

    assert logits.shape == (batch, seq_len, vocab_size)
    assert jnp.allclose(logits, ref, rtol=1e-4, atol=1e-4), "mismatch vs reference"

    print("KERNEL_OK")
</pallas_src>

<mosaic_0001>
module attributes {stable_mosaic.version = 11 : i64} {
  func.func @_fused_gru_kernel(%arg0: i32, %arg1: memref<8x8x16xf32, #tpu.memory_space<vmem>>, %arg2: memref<16x384xf32, #tpu.memory_space<vmem>>, %arg3: memref<1x384xf32, #tpu.memory_space<vmem>>, %arg4: memref<128x384xf32, #tpu.memory_space<vmem>>, %arg5: memref<1x128xf32, #tpu.memory_space<vmem>>, %arg6: memref<128x128xf32, #tpu.memory_space<vmem>>, %arg7: memref<1x128xf32, #tpu.memory_space<vmem>>, %arg8: memref<8x8x128xf32, #tpu.memory_space<vmem>>, %arg9: memref<8x8x384xf32, #tpu.memory_space<vmem>>, %arg10: memref<8x8x128xf32, #tpu.memory_space<vmem>>, %arg11: memref<8x128xf32, #tpu.memory_space<vmem>>) attributes {dimension_semantics = [#tpu.dimension_semantics<arbitrary>], iteration_bounds = array<i64: 1>, scalar_prefetch = 0 : i64, scratch_operands = 3 : i64, tpu.core_type = #tpu.core_type<tc>, window_params = [{transform_indices = @transform_0, window_bounds = array<i64: 8, 8, 16>}, {pipeline_mode = #tpu.pipeline_mode<synchronous>, transform_indices = @transform_1, window_bounds = array<i64: 16, 384>}, {pipeline_mode = #tpu.pipeline_mode<synchronous>, transform_indices = @transform_2, window_bounds = array<i64: 1, 384>}, {pipeline_mode = #tpu.pipeline_mode<synchronous>, transform_indices = @transform_3, window_bounds = array<i64: 128, 384>}, {pipeline_mode = #tpu.pipeline_mode<synchronous>, transform_indices = @transform_4, window_bounds = array<i64: 1, 128>}, {pipeline_mode = #tpu.pipeline_mode<synchronous>, transform_indices = @transform_5, window_bounds = array<i64: 128, 128>}, {pipeline_mode = #tpu.pipeline_mode<synchronous>, transform_indices = @transform_6, window_bounds = array<i64: 1, 128>}, {transform_indices = @transform_7, window_bounds = array<i64: 8, 8, 128>}]} {
    %c0_i32 = arith.constant 0 : i32
    %0 = arith.cmpi eq, %arg0, %c0_i32 : i32
    %1 = arith.extui %0 : i1 to i32
    %c0_i32_0 = arith.constant 0 : i32
    %2 = arith.cmpi ne, %1, %c0_i32_0 : i32
    scf.if %2 {
      %cst_108 = arith.constant 0.000000e+00 : f32
      %343 = vector.broadcast %cst_108 : f32 to vector<8x128xf32>
      %c0_109 = arith.constant 0 : index
      %c0_110 = arith.constant 0 : index
      %344 = vector.load %arg11[%c0_109, %c0_110] : memref<8x128xf32, #tpu.memory_space<vmem>>, vector<8x128xf32>
      tpu.vector_store %arg11[%c0_109, %c0_110], %343 {strides = array<i32>} : memref<8x128xf32, #tpu.memory_space<vmem>>, vector<8x128xf32>,
    } else {
    }
    %c0 = arith.constant 0 : index
    %c0_1 = arith.constant 0 : index
    %c0_2 = arith.constant 0 : index
    %3 = vector.load %arg1[%c0, %c0_1, %c0_2] : memref<8x8x16xf32, #tpu.memory_space<vmem>>, vector<8x8x16xf32>
    %4 = vector.shape_cast %3 : vector<8x8x16xf32> to vector<64x16xf32>
    %c0_3 = arith.constant 0 : index
    %c0_4 = arith.constant 0 : index
    %5 = vector.load %arg2[%c0_3, %c0_4] : memref<16x384xf32, #tpu.memory_space<vmem>>, vector<16x384xf32>
    %cst = arith.constant dense<0.000000e+00> : vector<64x384xf32>
    %6 = tpu.matmul %4, %5, %cst {dimension_numbers = #tpu.dot_dimension_numbers<[1], [0], [0], [1], [0, 0, 1, 1], [], []>} : vector<64x16xf32>, vector<16x384xf32>, vector<64x384xf32> -> vector<64x384xf32>
    %c0_5 = arith.constant 0 : index
    %c0_6 = arith.constant 0 : index
    %7 = vector.load %arg3[%c0_5, %c0_6] : memref<1x384xf32, #tpu.memory_space<vmem>>, vector<1x384xf32>
    %8 = vector.broadcast %7 : vector<1x384xf32> to vector<64x384xf32>
    %9 = arith.addf %6, %8 : vector<64x384xf32>
    %10 = vector.shape_cast %9 : vector<64x384xf32> to vector<8x8x384xf32>
    %c0_7 = arith.constant 0 : index
    %c0_8 = arith.constant 0 : index
    %c0_9 = arith.constant 0 : index
    %11 = vector.load %arg9[%c0_7, %c0_8, %c0_9] : memref<8x8x384xf32, #tpu.memory_space<vmem>>, vector<8x8x384xf32>
    tpu.vector_store %arg9[%c0_7, %c0_8, %c0_9], %10 {strides = array<i32>} : memref<8x8x384xf32, #tpu.memory_space<vmem>>, vector<8x8x384xf32>,
    %c0_10 = arith.constant 0 : index
    %c0_11 = arith.constant 0 : index
    %12 = vector.load %arg4[%c0_10, %c0_11] : memref<128x384xf32, #tpu.memory_space<vmem>>, vector<128x384xf32>
    %c0_12 = arith.constant 0 : index
    %c0_13 = arith.constant 0 : index
    %13 = vector.load %arg5[%c0_12, %c0_13] : memref<1x128xf32, #tpu.memory_space<vmem>>, vector<1x128xf32>
    %c0_14 = arith.constant 0 : index
    %c0_15 = arith.constant 0 : index
    %14 = vector.load %arg11[%c0_14, %c0_15] : memref<8x128xf32, #tpu.memory_space<vmem>>, vector<8x128xf32>
    %c0_i32_16 = arith.constant 0 : i32
    %15 = arith.index_cast %c0_i32_16 : i32 to index
    %c0_17 = arith.constant 0 : index
    %c0_18 = arith.constant 0 : index
    %16 = vector.load %arg9[%15, %c0_17, %c0_18] : memref<8x8x384xf32, #tpu.memory_space<vmem>>, vector<1x8x384xf32>
    %17 = vector.shape_cast %16 : vector<1x8x384xf32> to vector<8x384xf32>
    %cst_19 = arith.constant dense<0.000000e+00> : vector<8x384xf32>
    %18 = tpu.matmul %14, %12, %cst_19 {dimension_numbers = #tpu.dot_dimension_numbers<[1], [0], [0], [1], [0, 0, 1, 1], [], []>} : vector<8x128xf32>, vector<128x384xf32>, vector<8x384xf32> -> vector<8x384xf32>
    %19 = vector.extract_strided_slice %17 {offsets = [0, 0], sizes = [8, 128], strides = [1, 1]} : vector<8x384xf32> to vector<8x128xf32>
    %20 = vector.extract_strided_slice %18 {offsets = [0, 0], sizes = [8, 128], strides = [1, 1]} : vector<8x384xf32> to vector<8x128xf32>
    %21 = arith.addf %19, %20 : vector<8x128xf32>
    %22 = arith.negf %21 : vector<8x128xf32>
    %23 = math.exp %22 : vector<8x128xf32>
    %cst_20 = arith.constant 1.000000e+00 : f32
    %24 = vector.broadcast %cst_20 : f32 to vector<8x128xf32>
    %25 = arith.addf %24, %23 : vector<8x128xf32>
    %26 = arith.divf %24, %25 : vector<8x128xf32>
    %27 = vector.extract_strided_slice %17 {offsets = [0, 128], sizes = [8, 128], strides = [1, 1]} : vector<8x384xf32> to vector<8x128xf32>
    %28 = vector.extract_strided_slice %18 {offsets = [0, 128], sizes = [8, 128], strides = [1, 1]} : vector<8x384xf32> to vector<8x128xf32>
    %29 = arith.addf %27, %28 : vector<8x128xf32>
    %30 = arith.negf %29 : vector<8x128xf32>
    %31 = math.exp %30 : vector<8x128xf32>
    %cst_21 = arith.constant 1.000000e+00 : f32
    %32 = vector.broadcast %cst_21 : f32 to vector<8x128xf32>
    %33 = arith.addf %32, %31 : vector<8x128xf32>
    %34 = arith.divf %32, %33 : vector<8x128xf32>
    %35 = vector.extract_strided_slice %17 {offsets = [0, 256], sizes = [8, 128], strides = [1, 1]} : vector<8x384xf32> to vector<8x128xf32>
    %36 = vector.extract_strided_slice %18 {offsets = [0, 256], sizes = [8, 128], strides = [1, 1]} : vector<8x384xf32> to vector<8x128xf32>
    %37 = vector.broadcast %13 : vector<1x128xf32> to vector<8x128xf32>
    %38 = arith.addf %36, %37 : vector<8x128xf32>
    %39 = arith.mulf %26, %38 : vector<8x128xf32>
    %40 = arith.addf %35, %39 : vector<8x128xf32>
    %41 = math.tanh %40 : vector<8x128xf32>
    %cst_22 = arith.constant 1.000000e+00 : f32
    %42 = vector.broadcast %cst_22 : f32 to vector<8x128xf32>
    %43 = arith.subf %42, %34 : vector<8x128xf32>
    %44 = arith.mulf %43, %41 : vector<8x128xf32>
    %45 = arith.mulf %34, %14 : vector<8x128xf32>
    %46 = arith.addf %44, %45 : vector<8x128xf32>
    %47 = arith.index_cast %c0_i32_16 : i32 to index
    %c0_23 = arith.constant 0 : index
    %c0_24 = arith.constant 0 : index
    %48 = vector.load %arg10[%47, %c0_23, %c0_24] : memref<8x8x128xf32, #tpu.memory_space<vmem>>, vector<1x8x128xf32>
    %49 = vector.shape_cast %48 : vector<1x8x128xf32> to vector<8x128xf32>
    %50 = vector.shape_cast %46 : vector<8x128xf32> to vector<1x8x128xf32>
    tpu.vector_store %arg10[%47, %c0_23, %c0_24], %50 {strides = array<i32>} : memref<8x8x128xf32, #tpu.memory_space<vmem>>, vector<1x8x128xf32>,
    %c1_i32 = arith.constant 1 : i32
    %51 = arith.index_cast %c1_i32 : i32 to index
    %c0_25 = arith.constant 0 : index
    %c0_26 = arith.constant 0 : index
    %52 = vector.load %arg9[%51, %c0_25, %c0_26] : memref<8x8x384xf32, #tpu.memory_space<vmem>>, vector<1x8x384xf32>
    %53 = vector.shape_cast %52 : vector<1x8x384xf32> to vector<8x384xf32>
    %cst_27 = arith.constant dense<0.000000e+00> : vector<8x384xf32>
    %54 = tpu.matmul %46, %12, %cst_27 {dimension_numbers = #tpu.dot_dimension_numbers<[1], [0], [0], [1], [0, 0, 1, 1], [], []>} : vector<8x128xf32>, vector<128x384xf32>, vector<8x384xf32> -> vector<8x384xf32>
    %55 = vector.extract_strided_slice %53 {offsets = [0, 0], sizes = [8, 128], strides = [1, 1]} : vector<8x384xf32> to vector<8x128xf32>
    %56 = vector.extract_strided_slice %54 {offsets = [0, 0], sizes = [8, 128], strides = [1, 1]} : vector<8x384xf32> to vector<8x128xf32>
    %57 = arith.addf %55, %56 : vector<8x128xf32>
    %58 = arith.negf %57 : vector<8x128xf32>
    %59 = math.exp %58 : vector<8x128xf32>
    %cst_28 = arith.constant 1.000000e+00 : f32
    %60 = vector.broadcast %cst_28 : f32 to vector<8x128xf32>
    %61 = arith.addf %60, %59 : vector<8x128xf32>
    %62 = arith.divf %60, %61 : vector<8x128xf32>
    %63 = vector.extract_strided_slice %53 {offsets = [0, 128], sizes = [8, 128], strides = [1, 1]} : vector<8x384xf32> to vector<8x128xf32>
    %64 = vector.extract_strided_slice %54 {offsets = [0, 128], sizes = [8, 128], strides = [1, 1]} : vector<8x384xf32> to vector<8x128xf32>
    %65 = arith.addf %63, %64 : vector<8x128xf32>
    %66 = arith.negf %65 : vector<8x128xf32>
    %67 = math.exp %66 : vector<8x128xf32>
    %cst_29 = arith.constant 1.000000e+00 : f32
    %68 = vector.broadcast %cst_29 : f32 to vector<8x128xf32>
    %69 = arith.addf %68, %67 : vector<8x128xf32>
    %70 = arith.divf %68, %69 : vector<8x128xf32>
    %71 = vector.extract_strided_slice %53 {offsets = [0, 256], sizes = [8, 128], strides = [1, 1]} : vector<8x384xf32> to vector<8x128xf32>
    %72 = vector.extract_strided_slice %54 {offsets = [0, 256], sizes = [8, 128], strides = [1, 1]} : vector<8x384xf32> to vector<8x128xf32>
    %73 = vector.broadcast %13 : vector<1x128xf32> to vector<8x128xf32>
    %74 = arith.addf %72, %73 : vector<8x128xf32>
    %75 = arith.mulf %62, %74 : vector<8x128xf32>
    %76 = arith.addf %71, %75 : vector<8x128xf32>
    %77 = math.tanh %76 : vector<8x128xf32>
    %cst_30 = arith.constant 1.000000e+00 : f32
    %78 = vector.broadcast %cst_30 : f32 to vector<8x128xf32>
    %79 = arith.subf %78, %70 : vector<8x128xf32>
    %80 = arith.mulf %79, %77 : vector<8x128xf32>
    %81 = arith.mulf %70, %46 : vector<8x128xf32>
    %82 = arith.addf %80, %81 : vector<8x128xf32>
    %83 = arith.index_cast %c1_i32 : i32 to index
    %c0_31 = arith.constant 0 : index
    %c0_32 = arith.constant 0 : index
    %84 = vector.load %arg10[%83, %c0_31, %c0_32] : memref<8x8x128xf32, #tpu.memory_space<vmem>>, vector<1x8x128xf32>
    %85 = vector.shape_cast %84 : vector<1x8x128xf32> to vector<8x128xf32>
    %86 = vector.shape_cast %82 : vector<8x128xf32> to vector<1x8x128xf32>
    tpu.vector_store %arg10[%83, %c0_31, %c0_32], %86 {strides = array<i32>} : memref<8x8x128xf32, #tpu.memory_space<vmem>>, vector<1x8x128xf32>,
    %c2_i32 = arith.constant 2 : i32
    %87 = arith.index_cast %c2_i32 : i32 to index
    %c0_33 = arith.constant 0 : index
    %c0_34 = arith.constant 0 : index
    %88 = vector.load %arg9[%87, %c0_33, %c0_34] : memref<8x8x384xf32, #tpu.memory_space<vmem>>, vector<1x8x384xf32>
    %89 = vector.shape_cast %88 : vector<1x8x384xf32> to vector<8x384xf32>
    %cst_35 = arith.constant dense<0.000000e+00> : vector<8x384xf32>
    %90 = tpu.matmul %82, %12, %cst_35 {dimension_numbers = #tpu.dot_dimension_numbers<[1], [0], [0], [1], [0, 0, 1, 1], [], []>} : vector<8x128xf32>, vector<128x384xf32>, vector<8x384xf32> -> vector<8x384xf32>
    %91 = vector.extract_strided_slice %89 {offsets = [0, 0], sizes = [8, 128], strides = [1, 1]} : vector<8x384xf32> to vector<8x128xf32>
    %92 = vector.extract_strided_slice %90 {offsets = [0, 0], sizes = [8, 128], strides = [1, 1]} : vector<8x384xf32> to vector<8x128xf32>
    %93 = arith.addf %91, %92 : vector<8x128xf32>
    %94 = arith.negf %93 : vector<8x128xf32>
    %95 = math.exp %94 : vector<8x128xf32>
    %cst_36 = arith.constant 1.000000e+00 : f32
    %96 = vector.broadcast %cst_36 : f32 to vector<8x128xf32>
    %97 = arith.addf %96, %95 : vector<8x128xf32>
    %98 = arith.divf %96, %97 : vector<8x128xf32>
    %99 = vector.extract_strided_slice %89 {offsets = [0, 128], sizes = [8, 128], strides = [1, 1]} : vector<8x384xf32> to vector<8x128xf32>
    %100 = vector.extract_strided_slice %90 {offsets = [0, 128], sizes = [8, 128], strides = [1, 1]} : vector<8x384xf32> to vector<8x128xf32>
    %101 = arith.addf %99, %100 : vector<8x128xf32>
    %102 = arith.negf %101 : vector<8x128xf32>
    %103 = math.exp %102 : vector<8x128xf32>
    %cst_37 = arith.constant 1.000000e+00 : f32
    %104 = vector.broadcast %cst_37 : f32 to vector<8x128xf32>
    %105 = arith.addf %104, %103 : vector<8x128xf32>
    %106 = arith.divf %104, %105 : vector<8x128xf32>
    %107 = vector.extract_strided_slice %89 {offsets = [0, 256], sizes = [8, 128], strides = [1, 1]} : vector<8x384xf32> to vector<8x128xf32>
    %108 = vector.extract_strided_slice %90 {offsets = [0, 256], sizes = [8, 128], strides = [1, 1]} : vector<8x384xf32> to vector<8x128xf32>
    %109 = vector.broadcast %13 : vector<1x128xf32> to vector<8x128xf32>
    %110 = arith.addf %108, %109 : vector<8x128xf32>
    %111 = arith.mulf %98, %110 : vector<8x128xf32>
    %112 = arith.addf %107, %111 : vector<8x128xf32>
    %113 = math.tanh %112 : vector<8x128xf32>
    %cst_38 = arith.constant 1.000000e+00 : f32
    %114 = vector.broadcast %cst_38 : f32 to vector<8x128xf32>
    %115 = arith.subf %114, %106 : vector<8x128xf32>
    %116 = arith.mulf %115, %113 : vector<8x128xf32>
    %117 = arith.mulf %106, %82 : vector<8x128xf32>
    %118 = arith.addf %116, %117 : vector<8x128xf32>
    %119 = arith.index_cast %c2_i32 : i32 to index
    %c0_39 = arith.constant 0 : index
    %c0_40 = arith.constant 0 : index
    %120 = vector.load %arg10[%119, %c0_39, %c0_40] : memref<8x8x128xf32, #tpu.memory_space<vmem>>, vector<1x8x128xf32>
    %121 = vector.shape_cast %120 : vector<1x8x128xf32> to vector<8x128xf32>
    %122 = vector.shape_cast %118 : vector<8x128xf32> to vector<1x8x128xf32>
    tpu.vector_store %arg10[%119, %c0_39, %c0_40], %122 {strides = array<i32>} : memref<8x8x128xf32, #tpu.memory_space<vmem>>, vector<1x8x128xf32>,
    %c3_i32 = arith.constant 3 : i32
    %123 = arith.index_cast %c3_i32 : i32 to index
    %c0_41 = arith.constant 0 : index
    %c0_42 = arith.constant 0 : index
    %124 = vector.load %arg9[%123, %c0_41, %c0_42] : memref<8x8x384xf32, #tpu.memory_space<vmem>>, vector<1x8x384xf32>
    %125 = vector.shape_cast %124 : vector<1x8x384xf32> to vector<8x384xf32>
    %cst_43 = arith.constant dense<0.000000e+00> : vector<8x384xf32>
    %126 = tpu.matmul %118, %12, %cst_43 {dimension_numbers = #tpu.dot_dimension_numbers<[1], [0], [0], [1], [0, 0, 1, 1], [], []>} : vector<8x128xf32>, vector<128x384xf32>, vector<8x384xf32> -> vector<8x384xf32>
    %127 = vector.extract_strided_slice %125 {offsets = [0, 0], sizes = [8, 128], strides = [1, 1]} : vector<8x384xf32> to vector<8x128xf32>
    %128 = vector.extract_strided_slice %126 {offsets = [0, 0], sizes = [8, 128], strides = [1, 1]} : vector<8x384xf32> to vector<8x128xf32>
    %129 = arith.addf %127, %128 : vector<8x128xf32>
    %130 = arith.negf %129 : vector<8x128xf32>
    %131 = math.exp %130 : vector<8x128xf32>
    %cst_44 = arith.constant 1.000000e+00 : f32
    %132 = vector.broadcast %cst_44 : f32 to vector<8x128xf32>
    %133 = arith.addf %132, %131 : vector<8x128xf32>
    %134 = arith.divf %132, %133 : vector<8x128xf32>
    %135 = vector.extract_strided_slice %125 {offsets = [0, 128], sizes = [8, 128], strides = [1, 1]} : vector<8x384xf32> to vector<8x128xf32>
    %136 = vector.extract_strided_slice %126 {offsets = [0, 128], sizes = [8, 128], strides = [1, 1]} : vector<8x384xf32> to vector<8x128xf32>
    %137 = arith.addf %135, %136 : vector<8x128xf32>
    %138 = arith.negf %137 : vector<8x128xf32>
    %139 = math.exp %138 : vector<8x128xf32>
    %cst_45 = arith.constant 1.000000e+00 : f32
    %140 = vector.broadcast %cst_45 : f32 to vector<8x128xf32>
    %141 = arith.addf %140, %139 : vector<8x128xf32>
    %142 = arith.divf %140, %141 : vector<8x128xf32>
    %143 = vector.extract_strided_slice %125 {offsets = [0, 256], sizes = [8, 128], strides = [1, 1]} : vector<8x384xf32> to vector<8x128xf32>
    %144 = vector.extract_strided_slice %126 {offsets = [0, 256], sizes = [8, 128], strides = [1, 1]} : vector<8x384xf32> to vector<8x128xf32>
    %145 = vector.broadcast %13 : vector<1x128xf32> to vector<8x128xf32>
    %146 = arith.addf %144, %145 : vector<8x128xf32>
    %147 = arith.mulf %134, %146 : vector<8x128xf32>
    %148 = arith.addf %143, %147 : vector<8x128xf32>
    %149 = math.tanh %148 : vector<8x128xf32>
    %cst_46 = arith.constant 1.000000e+00 : f32
    %150 = vector.broadcast %cst_46 : f32 to vector<8x128xf32>
    %151 = arith.subf %150, %142 : vector<8x128xf32>
    %152 = arith.mulf %151, %149 : vector<8x128xf32>
    %153 = arith.mulf %142, %118 : vector<8x128xf32>
    %154 = arith.addf %152, %153 : vector<8x128xf32>
    %155 = arith.index_cast %c3_i32 : i32 to index
    %c0_47 = arith.constant 0 : index
    %c0_48 = arith.constant 0 : index
    %156 = vector.load %arg10[%155, %c0_47, %c0_48] : memref<8x8x128xf32, #tpu.memory_space<vmem>>, vector<1x8x128xf32>
    %157 = vector.shape_cast %156 : vector<1x8x128xf32> to vector<8x128xf32>
    %158 = vector.shape_cast %154 : vector<8x128xf32> to vector<1x8x128xf32>
    tpu.vector_store %arg10[%155, %c0_47, %c0_48], %158 {strides = array<i32>} : memref<8x8x128xf32, #tpu.memory_space<vmem>>, vector<1x8x128xf32>,
    %c4_i32 = arith.constant 4 : i32
    %159 = arith.index_cast %c4_i32 : i32 to index
    %c0_49 = arith.constant 0 : index
    %c0_50 = arith.constant 0 : index
    %160 = vector.load %arg9[%159, %c0_49, %c0_50] : memref<8x8x384xf32, #tpu.memory_space<vmem>>, vector<1x8x384xf32>
    %161 = vector.shape_cast %160 : vector<1x8x384xf32> to vector<8x384xf32>
    %cst_51 = arith.constant dense<0.000000e+00> : vector<8x384xf32>
    %162 = tpu.matmul %154, %12, %cst_51 {dimension_numbers = #tpu.dot_dimension_numbers<[1], [0], [0], [1], [0, 0, 1, 1], [], []>} : vector<8x128xf32>, vector<128x384xf32>, vector<8x384xf32> -> vector<8x384xf32>
    %163 = vector.extract_strided_slice %161 {offsets = [0, 0], sizes = [8, 128], strides = [1, 1]} : vector<8x384xf32> to vector<8x128xf32>
    %164 = vector.extract_strided_slice %162 {offsets = [0, 0], sizes = [8, 128], strides = [1, 1]} : vector<8x384xf32> to vector<8x128xf32>
    %165 = arith.addf %163, %164 : vector<8x128xf32>
    %166 = arith.negf %165 : vector<8x128xf32>
    %167 = math.exp %166 : vector<8x128xf32>
    %cst_52 = arith.constant 1.000000e+00 : f32
    %168 = vector.broadcast %cst_52 : f32 to vector<8x128xf32>
    %169 = arith.addf %168, %167 : vector<8x128xf32>
    %170 = arith.divf %168, %169 : vector<8x128xf32>
    %171 = vector.extract_strided_slice %161 {offsets = [0, 128], sizes = [8, 128], strides = [1, 1]} : vector<8x384xf32> to vector<8x128xf32>
    %172 = vector.extract_strided_slice %162 {offsets = [0, 128], sizes = [8, 128], strides = [1, 1]} : vector<8x384xf32> to vector<8x128xf32>
    %173 = arith.addf %171, %172 : vector<8x128xf32>
    %174 = arith.negf %173 : vector<8x128xf32>
    %175 = math.exp %174 : vector<8x128xf32>
    %cst_53 = arith.constant 1.000000e+00 : f32
    %176 = vector.broadcast %cst_53 : f32 to vector<8x128xf32>
    %177 = arith.addf %176, %175 : vector<8x128xf32>
    %178 = arith.divf %176, %177 : vector<8x128xf32>
    %179 = vector.extract_strided_slice %161 {offsets = [0, 256], sizes = [8, 128], strides = [1, 1]} : vector<8x384xf32> to vector<8x128xf32>
    %180 = vector.extract_strided_slice %162 {offsets = [0, 256], sizes = [8, 128], strides = [1, 1]} : vector<8x384xf32> to vector<8x128xf32>
    %181 = vector.broadcast %13 : vector<1x128xf32> to vector<8x128xf32>
    %182 = arith.addf %180, %181 : vector<8x128xf32>
    %183 = arith.mulf %170, %182 : vector<8x128xf32>
    %184 = arith.addf %179, %183 : vector<8x128xf32>
    %185 = math.tanh %184 : vector<8x128xf32>
    %cst_54 = arith.constant 1.000000e+00 : f32
    %186 = vector.broadcast %cst_54 : f32 to vector<8x128xf32>
    %187 = arith.subf %186, %178 : vector<8x128xf32>
    %188 = arith.mulf %187, %185 : vector<8x128xf32>
    %189 = arith.mulf %178, %154 : vector<8x128xf32>
    %190 = arith.addf %188, %189 : vector<8x128xf32>
    %191 = arith.index_cast %c4_i32 : i32 to index
    %c0_55 = arith.constant 0 : index
    %c0_56 = arith.constant 0 : index
    %192 = vector.load %arg10[%191, %c0_55, %c0_56] : memref<8x8x128xf32, #tpu.memory_space<vmem>>, vector<1x8x128xf32>
    %193 = vector.shape_cast %192 : vector<1x8x128xf32> to vector<8x128xf32>
    %194 = vector.shape_cast %190 : vector<8x128xf32> to vector<1x8x128xf32>
    tpu.vector_store %arg10[%191, %c0_55, %c0_56], %194 {strides = array<i32>} : memref<8x8x128xf32, #tpu.memory_space<vmem>>, vector<1x8x128xf32>,
    %c5_i32 = arith.constant 5 : i32
    %195 = arith.index_cast %c5_i32 : i32 to index
    %c0_57 = arith.constant 0 : index
    %c0_58 = arith.constant 0 : index
    %196 = vector.load %arg9[%195, %c0_57, %c0_58] : memref<8x8x384xf32, #tpu.memory_space<vmem>>, vector<1x8x384xf32>
    %197 = vector.shape_cast %196 : vector<1x8x384xf32> to vector<8x384xf32>
    %cst_59 = arith.constant dense<0.000000e+00> : vector<8x384xf32>
    %198 = tpu.matmul %190, %12, %cst_59 {dimension_numbers = #tpu.dot_dimension_numbers<[1], [0], [0], [1], [0, 0, 1, 1], [], []>} : vector<8x128xf32>, vector<128x384xf32>, vector<8x384xf32> -> vector<8x384xf32>
    %199 = vector.extract_strided_slice %197 {offsets = [0, 0], sizes = [8, 128], strides = [1, 1]} : vector<8x384xf32> to vector<8x128xf32>
    %200 = vector.extract_strided_slice %198 {offsets = [0, 0], sizes = [8, 128], strides = [1, 1]} : vector<8x384xf32> to vector<8x128xf32>
    %201 = arith.addf %199, %200 : vector<8x128xf32>
    %202 = arith.negf %201 : vector<8x128xf32>
    %203 = math.exp %202 : vector<8x128xf32>
    %cst_60 = arith.constant 1.000000e+00 : f32
    %204 = vector.broadcast %cst_60 : f32 to vector<8x128xf32>
    %205 = arith.addf %204, %203 : vector<8x128xf32>
    %206 = arith.divf %204, %205 : vector<8x128xf32>
    %207 = vector.extract_strided_slice %197 {offsets = [0, 128], sizes = [8, 128], strides = [1, 1]} : vector<8x384xf32> to vector<8x128xf32>
    %208 = vector.extract_strided_slice %198 {offsets = [0, 128], sizes = [8, 128], strides = [1, 1]} : vector<8x384xf32> to vector<8x128xf32>
    %209 = arith.addf %207, %208 : vector<8x128xf32>
    %210 = arith.negf %209 : vector<8x128xf32>
    %211 = math.exp %210 : vector<8x128xf32>
    %cst_61 = arith.constant 1.000000e+00 : f32
    %212 = vector.broadcast %cst_61 : f32 to vector<8x128xf32>
    %213 = arith.addf %212, %211 : vector<8x128xf32>
    %214 = arith.divf %212, %213 : vector<8x128xf32>
    %215 = vector.extract_strided_slice %197 {offsets = [0, 256], sizes = [8, 128], strides = [1, 1]} : vector<8x384xf32> to vector<8x128xf32>
    %216 = vector.extract_strided_slice %198 {offsets = [0, 256], sizes = [8, 128], strides = [1, 1]} : vector<8x384xf32> to vector<8x128xf32>
    %217 = vector.broadcast %13 : vector<1x128xf32> to vector<8x128xf32>
    %218 = arith.addf %216, %217 : vector<8x128xf32>
    %219 = arith.mulf %206, %218 : vector<8x128xf32>
    %220 = arith.addf %215, %219 : vector<8x128xf32>
    %221 = math.tanh %220 : vector<8x128xf32>
    %cst_62 = arith.constant 1.000000e+00 : f32
    %222 = vector.broadcast %cst_62 : f32 to vector<8x128xf32>
    %223 = arith.subf %222, %214 : vector<8x128xf32>
    %224 = arith.mulf %223, %221 : vector<8x128xf32>
    %225 = arith.mulf %214, %190 : vector<8x128xf32>
    %226 = arith.addf %224, %225 : vector<8x128xf32>
    %227 = arith.index_cast %c5_i32 : i32 to index
    %c0_63 = arith.constant 0 : index
    %c0_64 = arith.constant 0 : index
    %228 = vector.load %arg10[%227, %c0_63, %c0_64] : memref<8x8x128xf32, #tpu.memory_space<vmem>>, vector<1x8x128xf32>
    %229 = vector.shape_cast %228 : vector<1x8x128xf32> to vector<8x128xf32>
    %230 = vector.shape_cast %226 : vector<8x128xf32> to vector<1x8x128xf32>
    tpu.vector_store %arg10[%227, %c0_63, %c0_64], %230 {strides = array<i32>} : memref<8x8x128xf32, #tpu.memory_space<vmem>>, vector<1x8x128xf32>,
    %c6_i32 = arith.constant 6 : i32
    %231 = arith.index_cast %c6_i32 : i32 to index
    %c0_65 = arith.constant 0 : index
    %c0_66 = arith.constant 0 : index
    %232 = vector.load %arg9[%231, %c0_65, %c0_66] : memref<8x8x384xf32, #tpu.memory_space<vmem>>, vector<1x8x384xf32>
    %233 = vector.shape_cast %232 : vector<1x8x384xf32> to vector<8x384xf32>
    %cst_67 = arith.constant dense<0.000000e+00> : vector<8x384xf32>
    %234 = tpu.matmul %226, %12, %cst_67 {dimension_numbers = #tpu.dot_dimension_numbers<[1], [0], [0], [1], [0, 0, 1, 1], [], []>} : vector<8x128xf32>, vector<128x384xf32>, vector<8x384xf32> -> vector<8x384xf32>
    %235 = vector.extract_strided_slice %233 {offsets = [0, 0], sizes = [8, 128], strides = [1, 1]} : vector<8x384xf32> to vector<8x128xf32>
    %236 = vector.extract_strided_slice %234 {offsets = [0, 0], sizes = [8, 128], strides = [1, 1]} : vector<8x384xf32> to vector<8x128xf32>
    %237 = arith.addf %235, %236 : vector<8x128xf32>
    %238 = arith.negf %237 : vector<8x128xf32>
    %239 = math.exp %238 : vector<8x128xf32>
    %cst_68 = arith.constant 1.000000e+00 : f32
    %240 = vector.broadcast %cst_68 : f32 to vector<8x128xf32>
    %241 = arith.addf %240, %239 : vector<8x128xf32>
    %242 = arith.divf %240, %241 : vector<8x128xf32>
    %243 = vector.extract_strided_slice %233 {offsets = [0, 128], sizes = [8, 128], strides = [1, 1]} : vector<8x384xf32> to vector<8x128xf32>
    %244 = vector.extract_strided_slice %234 {offsets = [0, 128], sizes = [8, 128], strides = [1, 1]} : vector<8x384xf32> to vector<8x128xf32>
    %245 = arith.addf %243, %244 : vector<8x128xf32>
    %246 = arith.negf %245 : vector<8x128xf32>
    %247 = math.exp %246 : vector<8x128xf32>
    %cst_69 = arith.constant 1.000000e+00 : f32
    %248 = vector.broadcast %cst_69 : f32 to vector<8x128xf32>
    %249 = arith.addf %248, %247 : vector<8x128xf32>
    %250 = arith.divf %248, %249 : vector<8x128xf32>
    %251 = vector.extract_strided_slice %233 {offsets = [0, 256], sizes = [8, 128], strides = [1, 1]} : vector<8x384xf32> to vector<8x128xf32>
    %252 = vector.extract_strided_slice %234 {offsets = [0, 256], sizes = [8, 128], strides = [1, 1]} : vector<8x384xf32> to vector<8x128xf32>
    %253 = vector.broadcast %13 : vector<1x128xf32> to vector<8x128xf32>
    %254 = arith.addf %252, %253 : vector<8x128xf32>
    %255 = arith.mulf %242, %254 : vector<8x128xf32>
    %256 = arith.addf %251, %255 : vector<8x128xf32>
    %257 = math.tanh %256 : vector<8x128xf32>
    %cst_70 = arith.constant 1.000000e+00 : f32
    %258 = vector.broadcast %cst_70 : f32 to vector<8x128xf32>
    %259 = arith.subf %258, %250 : vector<8x128xf32>
    %260 = arith.mulf %259, %257 : vector<8x128xf32>
    %261 = arith.mulf %250, %226 : vector<8x128xf32>
    %262 = arith.addf %260, %261 : vector<8x128xf32>
    %263 = arith.index_cast %c6_i32 : i32 to index
    %c0_71 = arith.constant 0 : index
    %c0_72 = arith.constant 0 : index
    %264 = vector.load %arg10[%263, %c0_71, %c0_72] : memref<8x8x128xf32, #tpu.memory_space<vmem>>, vector<1x8x128xf32>
    %265 = vector.shape_cast %264 : vector<1x8x128xf32> to vector<8x128xf32>
    %266 = vector.shape_cast %262 : vector<8x128xf32> to vector<1x8x128xf32>
    tpu.vector_store %arg10[%263, %c0_71, %c0_72], %266 {strides = array<i32>} : memref<8x8x128xf32, #tpu.memory_space<vmem>>, vector<1x8x128xf32>,
    %c7_i32 = arith.constant 7 : i32
    %267 = arith.index_cast %c7_i32 : i32 to index
    %c0_73 = arith.constant 0 : index
    %c0_74 = arith.constant 0 : index
    %268 = vector.load %arg9[%267, %c0_73, %c0_74] : memref<8x8x384xf32, #tpu.memory_space<vmem>>, vector<1x8x384xf32>
    %269 = vector.shape_cast %268 : vector<1x8x384xf32> to vector<8x384xf32>
    %cst_75 = arith.constant dense<0.000000e+00> : vector<8x384xf32>
    %270 = tpu.matmul %262, %12, %cst_75 {dimension_numbers = #tpu.dot_dimension_numbers<[1], [0], [0], [1], [0, 0, 1, 1], [], []>} : vector<8x128xf32>, vector<128x384xf32>, vector<8x384xf32> -> vector<8x384xf32>
    %271 = vector.extract_strided_slice %269 {offsets = [0, 0], sizes = [8, 128], strides = [1, 1]} : vector<8x384xf32> to vector<8x128xf32>
    %272 = vector.extract_strided_slice %270 {offsets = [0, 0], sizes = [8, 128], strides = [1, 1]} : vector<8x384xf32> to vector<8x128xf32>
    %273 = arith.addf %271, %272 : vector<8x128xf32>
    %274 = arith.negf %273 : vector<8x128xf32>
    %275 = math.exp %274 : vector<8x128xf32>
    %cst_76 = arith.constant 1.000000e+00 : f32
    %276 = vector.broadcast %cst_76 : f32 to vector<8x128xf32>
    %277 = arith.addf %276, %275 : vector<8x128xf32>
    %278 = arith.divf %276, %277 : vector<8x128xf32>
    %279 = vector.extract_strided_slice %269 {offsets = [0, 128], sizes = [8, 128], strides = [1, 1]} : vector<8x384xf32> to vector<8x128xf32>
    %280 = vector.extract_strided_slice %270 {offsets = [0, 128], sizes = [8, 128], strides = [1, 1]} : vector<8x384xf32> to vector<8x128xf32>
    %281 = arith.addf %279, %280 : vector<8x128xf32>
    %282 = arith.negf %281 : vector<8x128xf32>
    %283 = math.exp %282 : vector<8x128xf32>
    %cst_77 = arith.constant 1.000000e+00 : f32
    %284 = vector.broadcast %cst_77 : f32 to vector<8x128xf32>
    %285 = arith.addf %284, %283 : vector<8x128xf32>
    %286 = arith.divf %284, %285 : vector<8x128xf32>
    %287 = vector.extract_strided_slice %269 {offsets = [0, 256], sizes = [8, 128], strides = [1, 1]} : vector<8x384xf32> to vector<8x128xf32>
    %288 = vector.extract_strided_slice %270 {offsets = [0, 256], sizes = [8, 128], strides = [1, 1]} : vector<8x384xf32> to vector<8x128xf32>
    %289 = vector.broadcast %13 : vector<1x128xf32> to vector<8x128xf32>
    %290 = arith.addf %288, %289 : vector<8x128xf32>
    %291 = arith.mulf %278, %290 : vector<8x128xf32>
    %292 = arith.addf %287, %291 : vector<8x128xf32>
    %293 = math.tanh %292 : vector<8x128xf32>
    %cst_78 = arith.constant 1.000000e+00 : f32
    %294 = vector.broadcast %cst_78 : f32 to vector<8x128xf32>
    %295 = arith.subf %294, %286 : vector<8x128xf32>
    %296 = arith.mulf %295, %293 : vector<8x128xf32>
    %297 = arith.mulf %286, %262 : vector<8x128xf32>
    %298 = arith.addf %296, %297 : vector<8x128xf32>
    %299 = arith.index_cast %c7_i32 : i32 to index
    %c0_79 = arith.constant 0 : index
    %c0_80 = arith.constant 0 : index
    %300 = vector.load %arg10[%299, %c0_79, %c0_80] : memref<8x8x128xf32, #tpu.memory_space<vmem>>, vector<1x8x128xf32>
    %301 = vector.shape_cast %300 : vector<1x8x128xf32> to vector<8x128xf32>
    %302 = vector.shape_cast %298 : vector<8x128xf32> to vector<1x8x128xf32>
    tpu.vector_store %arg10[%299, %c0_79, %c0_80], %302 {strides = array<i32>} : memref<8x8x128xf32, #tpu.memory_space<vmem>>, vector<1x8x128xf32>,
    %c8_i32 = arith.constant 8 : i32
    %c0_81 = arith.constant 0 : index
    %c0_82 = arith.constant 0 : index
    %303 = vector.load %arg11[%c0_81, %c0_82] : memref<8x128xf32, #tpu.memory_space<vmem>>, vector<8x128xf32>
    tpu.vector_store %arg11[%c0_81, %c0_82], %298 {strides = array<i32>} : memref<8x128xf32, #tpu.memory_space<vmem>>, vector<8x128xf32>,
    %c0_83 = arith.constant 0 : index
    %c0_84 = arith.constant 0 : index
    %c0_85 = arith.constant 0 : index
    %304 = vector.load %arg10[%c0_83, %c0_84, %c0_85] : memref<8x8x128xf32, #tpu.memory_space<vmem>>, vector<8x8x128xf32>
    %305 = vector.shape_cast %304 : vector<8x8x128xf32> to vector<64x128xf32>
    %c0_86 = arith.constant 0 : index
    %c0_87 = arith.constant 0 : index
    %306 = vector.load %arg6[%c0_86, %c0_87] : memref<128x128xf32, #tpu.memory_space<vmem>>, vector<128x128xf32>
    %cst_88 = arith.constant dense<0.000000e+00> : vector<64x128xf32>
    %307 = tpu.matmul %305, %306, %cst_88 {dimension_numbers = #tpu.dot_dimension_numbers<[1], [0], [0], [1], [0, 0, 1, 1], [], []>} : vector<64x128xf32>, vector<128x128xf32>, vector<64x128xf32> -> vector<64x128xf32>
    %c0_89 = arith.constant 0 : index
    %c0_90 = arith.constant 0 : index
    %308 = vector.load %arg7[%c0_89, %c0_90] : memref<1x128xf32, #tpu.memory_space<vmem>>, vector<1x128xf32>
    %309 = vector.broadcast %308 : vector<1x128xf32> to vector<64x128xf32>
    %310 = arith.addf %307, %309 : vector<64x128xf32>
    %311 = vector.extract_strided_slice %310 {offsets = [0, 0], sizes = [8, 128], strides = [1, 1]} : vector<64x128xf32> to vector<8x128xf32>
    %c0_91 = arith.constant 0 : index
    %c0_92 = arith.constant 0 : index
    %c0_93 = arith.constant 0 : index
    %312 = vector.load %arg8[%c0_91, %c0_92, %c0_93] : memref<8x8x128xf32, #tpu.memory_space<vmem>>, vector<8x1x128xf32>
    %313 = vector.shape_cast %312 : vector<8x1x128xf32> to vector<8x128xf32>
    %314 = vector.shape_cast %311 : vector<8x128xf32> to vector<8x1x128xf32>
    tpu.vector_store %arg8[%c0_91, %c0_92, %c0_93], %314 {strides = array<i32>} : memref<8x8x128xf32, #tpu.memory_space<vmem>>, vector<8x1x128xf32>,
    %315 = vector.extract_strided_slice %310 {offsets = [8, 0], sizes = [8, 128], strides = [1, 1]} : vector<64x128xf32> to vector<8x128xf32>
    %c0_94 = arith.constant 0 : index
    %c1 = arith.constant 1 : index
    %c0_95 = arith.constant 0 : index
    %316 = vector.load %arg8[%c0_94, %c1, %c0_95] : memref<8x8x128xf32, #tpu.memory_space<vmem>>, vector<8x1x128xf32>
    %317 = vector.shape_cast %316 : vector<8x1x128xf32> to vector<8x128xf32>
    %318 = vector.shape_cast %315 : vector<8x128xf32> to vector<8x1x128xf32>
    tpu.vector_store %arg8[%c0_94, %c1, %c0_95], %318 {strides = array<i32>} : memref<8x8x128xf32, #tpu.memory_space<vmem>>, vector<8x1x128xf32>,
    %319 = vector.extract_strided_slice %310 {offsets = [16, 0], sizes = [8, 128], strides = [1, 1]} : vector<64x128xf32> to vector<8x128xf32>
    %c0_96 = arith.constant 0 : index
    %c2 = arith.constant 2 : index
    %c0_97 = arith.constant 0 : index
    %320 = vector.load %arg8[%c0_96, %c2, %c0_97] : memref<8x8x128xf32, #tpu.memory_space<vmem>>, vector<8x1x128xf32>
    %321 = vector.shape_cast %320 : vector<8x1x128xf32> to vector<8x128xf32>
    %322 = vector.shape_cast %319 : vector<8x128xf32> to vector<8x1x128xf32>
    tpu.vector_store %arg8[%c0_96, %c2, %c0_97], %322 {strides = array<i32>} : memref<8x8x128xf32, #tpu.memory_space<vmem>>, vector<8x1x128xf32>,
    %323 = vector.extract_strided_slice %310 {offsets = [24, 0], sizes = [8, 128], strides = [1, 1]} : vector<64x128xf32> to vector<8x128xf32>
    %c0_98 = arith.constant 0 : index
    %c3 = arith.constant 3 : index
    %c0_99 = arith.constant 0 : index
    %324 = vector.load %arg8[%c0_98, %c3, %c0_99] : memref<8x8x128xf32, #tpu.memory_space<vmem>>, vector<8x1x128xf32>
    %325 = vector.shape_cast %324 : vector<8x1x128xf32> to vector<8x128xf32>
    %326 = vector.shape_cast %323 : vector<8x128xf32> to vector<8x1x128xf32>
    tpu.vector_store %arg8[%c0_98, %c3, %c0_99], %326 {strides = array<i32>} : memref<8x8x128xf32, #tpu.memory_space<vmem>>, vector<8x1x128xf32>,
    %327 = vector.extract_strided_slice %310 {offsets = [32, 0], sizes = [8, 128], strides = [1, 1]} : vector<64x128xf32> to vector<8x128xf32>
    %c0_100 = arith.constant 0 : index
    %c4 = arith.constant 4 : index
    %c0_101 = arith.constant 0 : index
    %328 = vector.load %arg8[%c0_100, %c4, %c0_101] : memref<8x8x128xf32, #tpu.memory_space<vmem>>, vector<8x1x128xf32>
    %329 = vector.shape_cast %328 : vector<8x1x128xf32> to vector<8x128xf32>
    %330 = vector.shape_cast %327 : vector<8x128xf32> to vector<8x1x128xf32>
    tpu.vector_store %arg8[%c0_100, %c4, %c0_101], %330 {strides = array<i32>} : memref<8x8x128xf32, #tpu.memory_space<vmem>>, vector<8x1x128xf32>,
    %331 = vector.extract_strided_slice %310 {offsets = [40, 0], sizes = [8, 128], strides = [1, 1]} : vector<64x128xf32> to vector<8x128xf32>
    %c0_102 = arith.constant 0 : index
    %c5 = arith.constant 5 : index
    %c0_103 = arith.constant 0 : index
    %332 = vector.load %arg8[%c0_102, %c5, %c0_103] : memref<8x8x128xf32, #tpu.memory_space<vmem>>, vector<8x1x128xf32>
    %333 = vector.shape_cast %332 : vector<8x1x128xf32> to vector<8x128xf32>
    %334 = vector.shape_cast %331 : vector<8x128xf32> to vector<8x1x128xf32>
    tpu.vector_store %arg8[%c0_102, %c5, %c0_103], %334 {strides = array<i32>} : memref<8x8x128xf32, #tpu.memory_space<vmem>>, vector<8x1x128xf32>,
    %335 = vector.extract_strided_slice %310 {offsets = [48, 0], sizes = [8, 128], strides = [1, 1]} : vector<64x128xf32> to vector<8x128xf32>
    %c0_104 = arith.constant 0 : index
    %c6 = arith.constant 6 : index
    %c0_105 = arith.constant 0 : index
    %336 = vector.load %arg8[%c0_104, %c6, %c0_105] : memref<8x8x128xf32, #tpu.memory_space<vmem>>, vector<8x1x128xf32>
    %337 = vector.shape_cast %336 : vector<8x1x128xf32> to vector<8x128xf32>
    %338 = vector.shape_cast %335 : vector<8x128xf32> to vector<8x1x128xf32>
    tpu.vector_store %arg8[%c0_104, %c6, %c0_105], %338 {strides = array<i32>} : memref<8x8x128xf32, #tpu.memory_space<vmem>>, vector<8x1x128xf32>,
    %339 = vector.extract_strided_slice %310 {offsets = [56, 0], sizes = [8, 128], strides = [1, 1]} : vector<64x128xf32> to vector<8x128xf32>
    %c0_106 = arith.constant 0 : index
    %c7 = arith.constant 7 : index
    %c0_107 = arith.constant 0 : index
    %340 = vector.load %arg8[%c0_106, %c7, %c0_107] : memref<8x8x128xf32, #tpu.memory_space<vmem>>, vector<8x1x128xf32>
    %341 = vector.shape_cast %340 : vector<8x1x128xf32> to vector<8x128xf32>
    %342 = vector.shape_cast %339 : vector<8x128xf32> to vector<8x1x128xf32>
    tpu.vector_store %arg8[%c0_106, %c7, %c0_107], %342 {strides = array<i32>} : memref<8x8x128xf32, #tpu.memory_space<vmem>>, vector<8x1x128xf32>,
    return
  }
  func.func @transform_0(%arg0: i32) -> (i32, i32, i32) {
    %c0_i32 = arith.constant 0 : i32
    %c0_i32_0 = arith.constant 0 : i32
    %c0_i32_1 = arith.constant 0 : i32
    return %arg0, %c0_i32, %c0_i32_0 : i32, i32, i32
  }
  func.func @transform_1(%arg0: i32) -> (i32, i32) {
    %c0_i32 = arith.constant 0 : i32
    %c0_i32_0 = arith.constant 0 : i32
    %c0_i32_1 = arith.constant 0 : i32
    return %c0_i32, %c0_i32_0 : i32, i32
  }
  func.func @transform_2(%arg0: i32) -> (i32, i32) {
    %c0_i32 = arith.constant 0 : i32
    %c0_i32_0 = arith.constant 0 : i32
    %c0_i32_1 = arith.constant 0 : i32
    return %c0_i32, %c0_i32_0 : i32, i32
  }
  func.func @transform_3(%arg0: i32) -> (i32, i32) {
    %c0_i32 = arith.constant 0 : i32
    %c0_i32_0 = arith.constant 0 : i32
    %c0_i32_1 = arith.constant 0 : i32
    return %c0_i32, %c0_i32_0 : i32, i32
  }
  func.func @transform_4(%arg0: i32) -> (i32, i32) {
    %c0_i32 = arith.constant 0 : i32
    %c0_i32_0 = arith.constant 0 : i32
    %c0_i32_1 = arith.constant 0 : i32
    return %c0_i32, %c0_i32_0 : i32, i32
  }
  func.func @transform_5(%arg0: i32) -> (i32, i32) {
    %c0_i32 = arith.constant 0 : i32
    %c0_i32_0 = arith.constant 0 : i32
    %c0_i32_1 = arith.constant 0 : i32
    return %c0_i32, %c0_i32_0 : i32, i32
  }
  func.func @transform_6(%arg0: i32) -> (i32, i32) {
    %c0_i32 = arith.constant 0 : i32
    %c0_i32_0 = arith.constant 0 : i32
    %c0_i32_1 = arith.constant 0 : i32
    return %c0_i32, %c0_i32_0 : i32, i32
  }
  func.func @transform_7(%arg0: i32) -> (i32, i32, i32) {
    %c0_i32 = arith.constant 0 : i32
    %c0_i32_0 = arith.constant 0 : i32
    %c0_i32_1 = arith.constant 0 : i32
    return %c0_i32, %arg0, %c0_i32_0 : i32, i32, i32
  }
}

</mosaic_0001>

<llo_original>
// kernel: tpu_custom_call.1
$region0: #{tpu_custom_call.1}
  #allocation0 [shape = 'u32[]', space=smem, size = 0x4, offset = 0x4, fixed_abs, tag = 'smem constant byte address 0x4 - core index']
  #allocation1 [shape = 'u32[144,128]{1,0:T(1,128)}', space=vmem, size = 0x12000, scoped, tag = 'internal scratch']
  #allocation2 [shape = 'f32[8,8,384]{2,1,0:T(8,128)}', space=vmem, size = 0x18000, scoped, tag = 'scratch operand']
  #allocation3 [shape = 'f32[8,8,128]{2,1,0:T(8,128)}', space=vmem, size = 0x8000, scoped, tag = 'scratch operand']
  #allocation4 [shape = 'f32[8,128]{1,0:T(8,128)}', space=vmem, size = 0x1000, scoped, tag = 'scratch operand']
  %s0 = inlined_call_operand.hbm [shape: f32[8,8,16], index: 0, kind: input, shape index: {}]
  %s1 = inlined_call_operand.hbm [shape: f32[16,384], index: 1, kind: input, shape index: {}]
  %s2 = inlined_call_operand.vmem [shape: f32[1,384], index: 2, kind: input, shape index: {}]
  %s3 = inlined_call_operand.hbm [shape: f32[128,384], index: 3, kind: input, shape index: {}]
  %s4 = inlined_call_operand.vmem [shape: f32[1,128], index: 4, kind: input, shape index: {}]
  %s5 = inlined_call_operand.hbm [shape: f32[128,128], index: 5, kind: input, shape index: {}]
  %s6 = inlined_call_operand.vmem [shape: f32[1,128], index: 6, kind: input, shape index: {}]
  %s7 = inlined_call_operand.hbm [shape: f32[8,8,128], index: 7, kind: output, shape index: {}]
  %s8 = sld [smem:[#allocation0]]
  $region58: #{tpu_custom_call.1} parent=0
    _
  %s10 = ssub.s32 1, %s8
  %s11 = scalar_select 0, %s10, %s8
  $region1: #{tpu_custom_call.1} parent=0
    #allocation5 [shape = 'u8[32768]{0}', space=vmem, size = 0x8000, scoped, tag = 'input window, operand 0, single buffered']
    #allocation6 [shape = 's32[1]{0}', space=sflag, size = 0x4, scoped, tag = 'scoped memory for tpu_custom_call.1']
    #allocation7 [shape = 's32[1]{0}', space=sflag, size = 0x4, scoped, tag = 'scoped memory for tpu_custom_call.1']
    #allocation8 [shape = 'u8[24576]{0}', space=vmem, size = 0x6000, scoped, tag = 'input window, operand 1, single buffered']
    #allocation9 [shape = 's32[1]{0}', space=sflag, size = 0x4, scoped, tag = 'scoped memory for tpu_custom_call.1']
    #allocation10 [shape = 'u8[196608]{0}', space=vmem, size = 0x30000, scoped, tag = 'input window, operand 3, single buffered']
    #allocation11 [shape = 'u8[65536]{0}', space=vmem, size = 0x10000, scoped, tag = 'input window, operand 5, single buffered']
    #allocation12 [shape = 's32[1]{0}', space=sflag, size = 0x4, scoped, tag = 'scoped memory for tpu_custom_call.1']
    #allocation13 [shape = 'u8[32768]{0}', space=vmem, size = 0x8000, scoped, tag = 'output window, operand 0, single buffered']
    %12 = vsyncpa [#allocation6], 0
    %13 = vsyncpa [#allocation9], 0
    %14 = vsyncpa [#allocation12], 0
    %15 = vsyncpa [#allocation7], 0
    // Predicated region
    $region2: #{tpu_custom_call.1} parent=1 // pred_check
      _
    $region3: #{tpu_custom_call.1} parent=1 // pred_check_branch
      %17 = sbr.rel (0) target = $region5
    $region4: #{tpu_custom_call.1} parent=1 // pred_region
      %s19 = ssub.s32 1024, 1024
      %20 = vsyncadd [#allocation6], %s19
      %s21 = sshll.u32 [#allocation5], 4
      %s22 = int_to_ptr.vmem [resolvable:$true] %s21
      %27 = dma.hbm_to_vmem [thread:$0]  %s0, 1024, %s22, [#allocation6], 128, 128, 8
    $region5: #{tpu_custom_call.1} parent=1 // pred_fallthru
      _
    // Predicated region
    $region6: #{tpu_custom_call.1} parent=1 // pred_check
      _
    $region7: #{tpu_custom_call.1} parent=1 // pred_check_branch
      %29 = sbr.rel (0) target = $region9
    $region8: #{tpu_custom_call.1} parent=1 // pred_region
      %s31 = ssub.s32 768, 768
      %32 = vsyncadd [#allocation9], %s31
      %s33 = sshll.u32 [#allocation8], 4
      %s34 = int_to_ptr.vmem [resolvable:$true] %s33
      %39 = dma.hbm_to_vmem [thread:$0]  %s1, 768, %s34, [#allocation9], 384, 384, 24
    $region9: #{tpu_custom_call.1} parent=1 // pred_fallthru
      _
    // Predicated region
    $region10: #{tpu_custom_call.1} parent=1 // pred_check
      _
    $region11: #{tpu_custom_call.1} parent=1 // pred_check_branch
      %41 = sbr.rel (0) target = $region13
    $region12: #{tpu_custom_call.1} parent=1 // pred_region
      _
    $region13: #{tpu_custom_call.1} parent=1 // pred_fallthru
      _
    // Predicated region
    $region14: #{tpu_custom_call.1} parent=1 // pred_check
      _
    $region15: #{tpu_custom_call.1} parent=1 // pred_check_branch
      %43 = sbr.rel (0) target = $region17
    $region16: #{tpu_custom_call.1} parent=1 // pred_region
      %s45 = ssub.s32 6144, 6144
      %46 = vsyncadd [#allocation9], %s45
      %s47 = sshll.u32 [#allocation10], 4
      %s48 = int_to_ptr.vmem [resolvable:$true] %s47
      %53 = dma.hbm_to_vmem [thread:$0]  %s3, 6144, %s48, [#allocation9], 384, 384, 24
    $region17: #{tpu_custom_call.1} parent=1 // pred_fallthru
      _
    // Predicated region
    $region18: #{tpu_custom_call.1} parent=1 // pred_check
      _
    $region19: #{tpu_custom_call.1} parent=1 // pred_check_branch
      %55 = sbr.rel (0) target = $region21
    $region20: #{tpu_custom_call.1} parent=1 // pred_region
      _
    $region21: #{tpu_custom_call.1} parent=1 // pred_fallthru
      _
    // Predicated region
    $region22: #{tpu_custom_call.1} parent=1 // pred_check
      _
    $region23: #{tpu_custom_call.1} parent=1 // pred_check_branch
      %57 = sbr.rel (0) target = $region25
    $region24: #{tpu_custom_call.1} parent=1 // pred_region
      %s59 = ssub.s32 2048, 2048
      %60 = vsyncadd [#allocation12], %s59
      %s61 = sshll.u32 [#allocation11], 4
      %s62 = int_to_ptr.vmem [resolvable:$true] %s61
      %67 = dma.hbm_to_vmem [thread:$0]  %s5, 2048, %s62, [#allocation12], 128, 128, 8
    $region25: #{tpu_custom_call.1} parent=1 // pred_fallthru
      _
    // Predicated region
    $region26: #{tpu_custom_call.1} parent=1 // pred_check
      _
    $region27: #{tpu_custom_call.1} parent=1 // pred_check_branch
      %69 = sbr.rel (0) target = $region29
    $region28: #{tpu_custom_call.1} parent=1 // pred_region
      _
    $region29: #{tpu_custom_call.1} parent=1 // pred_fallthru
      _
    // Predicated region
    $region30: #{tpu_custom_call.1} parent=1 // pred_check
      _
    $region31: #{tpu_custom_call.1} parent=1 // pred_check_branch
      %71 = sbr.rel (0) target = $region33
    $region32: #{tpu_custom_call.1} parent=1 // pred_region
      %72 = dma.done [#allocation6], 1024
    $region33: #{tpu_custom_call.1} parent=1 // pred_fallthru
      _
    // Predicated region
    $region34: #{tpu_custom_call.1} parent=1 // pred_check
      _
    $region35: #{tpu_custom_call.1} parent=1 // pred_check_branch
      %74 = sbr.rel (0) target = $region37
    $region36: #{tpu_custom_call.1} parent=1 // pred_region
      %75 = dma.done [#allocation9], 768
    $region37: #{tpu_custom_call.1} parent=1 // pred_fallthru
      _
    // Predicated region
    $region38: #{tpu_custom_call.1} parent=1 // pred_check
      _
    $region39: #{tpu_custom_call.1} parent=1 // pred_check_branch
      %77 = sbr.rel (0) target = $region41
    $region40: #{tpu_custom_call.1} parent=1 // pred_region
      %78 = dma.done [#allocation9], 6144
    $region41: #{tpu_custom_call.1} parent=1 // pred_fallthru
      _
    // Predicated region
    $region42: #{tpu_custom_call.1} parent=1 // pred_check
      _
    $region43: #{tpu_custom_call.1} parent=1 // pred_check_branch
      %80 = sbr.rel (0) target = $region45
    $region44: #{tpu_custom_call.1} parent=1 // pred_region
      %81 = dma.done [#allocation12], 2048
    $region45: #{tpu_custom_call.1} parent=1 // pred_fallthru
      _
    %p82 = scmp.eq.s32.totalorder 0, 0
    // Predicated region
    $region46: #{tpu_custom_call.1} parent=1 // pred_check
      %p83 = pneg %p82
    $region47: #{tpu_custom_call.1} parent=1 // pred_check_branch
      %85 = sbr.rel (%p83) target = $region49
    $region48: #{tpu_custom_call.1} parent=1 // pred_region
      %86 = vst [vmem:[#allocation4] sm:$0xff] 0.0
    $region49: #{tpu_custom_call.1} parent=1 // pred_fallthru
      _
    %v87 = vld [vmem:[#allocation5] sm:$0xff]
    %v88 = vld [vmem:[#allocation5 + $0x8] sm:$0xff]
    %v89 = vld [vmem:[#allocation5 + $0x10] sm:$0xff]
    %v90 = vld [vmem:[#allocation5 + $0x18] sm:$0xff]
    %v91 = vld [vmem:[#allocation5 + $0x20] sm:$0xff]
    %v92 = vld [vmem:[#allocation5 + $0x28] sm:$0xff]
    %v93 = vld [vmem:[#allocation5 + $0x30] sm:$0xff]
    %v94 = vld [vmem:[#allocation5 + $0x38] sm:$0xff]
    %v95 = vld [vmem:[#allocation8] sm:$0xff]
    %v96 = vld [vmem:[#allocation8 + $0x8] sm:$0xff]
    %v97 = vld [vmem:[#allocation8 + $0x10] sm:$0xff]
    %v98 = vld [vmem:[#allocation8 + $0x18] sm:$0xff]
    %v99 = vld [vmem:[#allocation8 + $0x20] sm:$0xff]
    %v100 = vld [vmem:[#allocation8 + $0x28] sm:$0xff]
    %v101 = vld [vmem:[%s2] sm:$0x7]
    %v103 = vlaneseq
    %v104 = vshrl.u32 %v103, 7
    %v105 = vsub.s32 0, %v104
    %v106 = vrot.slane %v101, %v105
    %v107 = vlaneseq
    %v108 = vshrl.u32 %v107, 7
    %v109 = vsub.s32 1, %v108
    %v110 = vrot.slane %v101, %v109
    %v111 = vlaneseq
    %v112 = vshrl.u32 %v111, 7
    %v113 = vsub.s32 2, %v112
    %v114 = vrot.slane %v101, %v113
    %vm118 = vcmask 130048
    %v120 = vsel %vm118, %v87, 0
    %v123 = vsel %vm118, %v88, 0
    %v126 = vsel %vm118, %v89, 0
    %v129 = vsel %vm118, %v90, 0
    %v132 = vsel %vm118, %v91, 0
    %v135 = vsel %vm118, %v92, 0
    %v138 = vsel %vm118, %v93, 0
    %v141 = vsel %vm118, %v94, 0
    %143 = vmatprep.subr.mxu0 0.0
    %144 = vmatpush1.msra.mxu0 0.0
    %145 = vmatprep.subr.mxu0 0.0
    %146 = vmatpush1.msra.mxu0 0.0
    %147 = vmatprep.subr.mxu0 0.0
    %148 = vmatpush1.msra.mxu0 0.0
    %149 = vmatprep.subr.mxu0 0.0
    %150 = vmatpush1.msra.mxu0 0.0
    %151 = vmatprep.subr.mxu0 0.0
    %152 = vmatpush1.msra.mxu0 0.0
    %153 = vmatprep.subr.mxu0 0.0
    %154 = vmatpush1.msra.mxu0 0.0
    %155 = vmatprep.subr.mxu0 0.0
    %156 = vmatpush1.msra.mxu0 0.0
    %157 = vmatprep.subr.mxu0 0.0
    %158 = vmatpush1.msra.mxu0 0.0
    %159 = vmatprep.subr.mxu0 0.0
    %160 = vmatpush1.msra.mxu0 0.0
    %161 = vmatprep.subr.mxu0 0.0
    %162 = vmatpush1.msra.mxu0 0.0
    %163 = vmatprep.subr.mxu0 0.0
    %164 = vmatpush1.msra.mxu0 0.0
    %165 = vmatprep.subr.mxu0 0.0
    %166 = vmatpush1.msra.mxu0 0.0
    %167 = vmatprep.subr.mxu0 0.0
    %168 = vmatpush1.msra.mxu0 0.0
    %169 = vmatprep.subr.mxu0 0.0
    %170 = vmatpush1.msra.mxu0 0.0
    %171 = vmatprep.subr.mxu0 %v99
    %172 = vmatpush1.msra.mxu0 %v98
    %173 = vmatprep.subr.mxu0 %v96
    %174 = vmatpush1.msra.mxu0 %v95
    %175 = vmatprep.subr.mxu0 0.0
    %176 = vmatpush2.msra.mxu0 0.0
    %177 = vmatprep.subr.mxu0 0.0
    %178 = vmatpush2.msra.mxu0 0.0
    %179 = vmatprep.subr.mxu0 0.0
    %180 = vmatpush2.msra.mxu0 0.0
    %181 = vmatprep.subr.mxu0 0.0
    %182 = vmatpush2.msra.mxu0 0.0
    %183 = vmatprep.subr.mxu0 0.0
    %184 = vmatpush2.msra.mxu0 0.0
    %185 = vmatprep.subr.mxu0 0.0
    %186 = vmatpush2.msra.mxu0 0.0
    %187 = vmatprep.subr.mxu0 0.0
    %188 = vmatpush2.msra.mxu0 0.0
    %189 = vmatprep.subr.mxu0 0.0
    %190 = vmatpush2.msra.mxu0 0.0
    %191 = vmatprep.subr.mxu0 0.0
    %192 = vmatpush2.msra.mxu0 0.0
    %193 = vmatprep.subr.mxu0 0.0
    %194 = vmatpush2.msra.mxu0 0.0
    %195 = vmatprep.subr.mxu0 0.0
    %196 = vmatpush2.msra.mxu0 0.0
    %197 = vmatprep.subr.mxu0 0.0
    %198 = vmatpush2.msra.mxu0 0.0
    %199 = vmatprep.subr.mxu0 0.0
    %200 = vmatpush2.msra.mxu0 0.0
    %201 = vmatprep.subr.mxu0 0.0
    %202 = vmatpush2.msra.mxu0 0.0
    %203 = vmatprep.subr.mxu0 0.0
    %204 = vmatpush2.msra.mxu0 0.0
    %205 = vmatprep.subr.mxu0 0.0
    %206 = vmatpush2.msra.mxu0 0.0
    %207 = vmatprep.mubr.f32.mxu0 0.0
    %208 = vmatmul.mubr.f32.gmra.mxu0 %v120
    %v209 = vpop.f32.mrf.mxu0
    %v210 = vadd.f32 %v106, %v209
    %v211 = vpop.f32.mrf.mxu0
    %v212 = vadd.f32 %v110, %v211
    %213 = vmatprep.mubr.f32.mxu0 0.0
    %214 = vmatmul.mubr.f32.gmra.mxu0 %v123
    %v215 = vpop.f32.mrf.mxu0
    %v216 = vadd.f32 %v106, %v215
    %v217 = vpop.f32.mrf.mxu0
    %v218 = vadd.f32 %v110, %v217
    %219 = vmatprep.mubr.f32.mxu0 0.0
    %220 = vmatmul.mubr.f32.gmra.mxu0 %v126
    %v221 = vpop.f32.mrf.mxu0
    %v222 = vadd.f32 %v106, %v221
    %v223 = vpop.f32.mrf.mxu0
    %v224 = vadd.f32 %v110, %v223
    %225 = vmatprep.mubr.f32.mxu0 0.0
    %226 = vmatmul.mubr.f32.gmra.mxu0 %v129
    %v227 = vpop.f32.mrf.mxu0
    %v228 = vadd.f32 %v106, %v227
    %v229 = vpop.f32.mrf.mxu0
    %v230 = vadd.f32 %v110, %v229
    %231 = vmatprep.mubr.f32.mxu0 0.0
    %232 = vmatmul.mubr.f32.gmra.mxu0 %v132
    %v233 = vpop.f32.mrf.mxu0
    %v234 = vadd.f32 %v106, %v233
    %v235 = vpop.f32.mrf.mxu0
    %v236 = vadd.f32 %v110, %v235
    %237 = vmatprep.mubr.f32.mxu0 0.0
    %238 = vmatmul.mubr.f32.gmra.mxu0 %v135
    %v239 = vpop.f32.mrf.mxu0
    %v240 = vadd.f32 %v106, %v239
    %v241 = vpop.f32.mrf.mxu0
    %v242 = vadd.f32 %v110, %v241
    %243 = vmatprep.mubr.f32.mxu0 0.0
    %244 = vmatmul.mubr.f32.gmra.mxu0 %v138
    %v245 = vpop.f32.mrf.mxu0
    %v246 = vadd.f32 %v106, %v245
    %v247 = vpop.f32.mrf.mxu0
    %v248 = vadd.f32 %v110, %v247
    %249 = vmatprep.mubr.f32.mxu0 0.0
    %250 = vmatmul.mubr.f32.gmra.mxu0 %v141
    %v251 = vpop.f32.mrf.mxu0
    %v252 = vadd.f32 %v106, %v251
    %v253 = vpop.f32.mrf.mxu0
    %v254 = vadd.f32 %v110, %v253
    %255 = vdwg.mxu0
    %256 = vmatprep.subr.mxu0 0.0
    %257 = vmatpush1.msra.mxu0 0.0
    %258 = vmatprep.subr.mxu0 0.0
    %259 = vmatpush1.msra.mxu0 0.0
    %260 = vmatprep.subr.mxu0 0.0
    %261 = vmatpush1.msra.mxu0 0.0
    %262 = vmatprep.subr.mxu0 0.0
    %263 = vmatpush1.msra.mxu0 0.0
    %264 = vmatprep.subr.mxu0 0.0
    %265 = vmatpush1.msra.mxu0 0.0
    %266 = vmatprep.subr.mxu0 0.0
    %267 = vmatpush1.msra.mxu0 0.0
    %268 = vmatprep.subr.mxu0 0.0
    %269 = vmatpush1.msra.mxu0 0.0
    %270 = vmatprep.subr.mxu0 0.0
    %271 = vmatpush1.msra.mxu0 0.0
    %272 = vmatprep.subr.mxu0 0.0
    %273 = vmatpush1.msra.mxu0 0.0
    %274 = vmatprep.subr.mxu0 0.0
    %275 = vmatpush1.msra.mxu0 0.0
    %276 = vmatprep.subr.mxu0 0.0
    %277 = vmatpush1.msra.mxu0 0.0
    %278 = vmatprep.subr.mxu0 0.0
    %279 = vmatpush1.msra.mxu0 0.0
    %280 = vmatprep.subr.mxu0 0.0
    %281 = vmatpush1.msra.mxu0 0.0
    %282 = vmatprep.subr.mxu0 0.0
    %283 = vmatpush1.msra.mxu0 0.0
    %284 = vmatprep.subr.mxu0 0.0
    %285 = vmatpush1.msra.mxu0 %v100
    %286 = vmatprep.subr.mxu0 0.0
    %287 = vmatpush1.msra.mxu0 %v97
    %288 = vmatprep.subr.mxu0 0.0
    %289 = vmatpush2.msra.mxu0 0.0
    %290 = vmatprep.subr.mxu0 0.0
    %291 = vmatpush2.msra.mxu0 0.0
    %292 = vmatprep.subr.mxu0 0.0
    %293 = vmatpush2.msra.mxu0 0.0
    %294 = vmatprep.subr.mxu0 0.0
    %295 = vmatpush2.msra.mxu0 0.0
    %296 = vmatprep.subr.mxu0 0.0
    %297 = vmatpush2.msra.mxu0 0.0
    %298 = vmatprep.subr.mxu0 0.0
    %299 = vmatpush2.msra.mxu0 0.0
    %300 = vmatprep.subr.mxu0 0.0
    %301 = vmatpush2.msra.mxu0 0.0
    %302 = vmatprep.subr.mxu0 0.0
    %303 = vmatpush2.msra.mxu0 0.0
    %304 = vmatprep.subr.mxu0 0.0
    %305 = vmatpush2.msra.mxu0 0.0
    %306 = vmatprep.subr.mxu0 0.0
    %307 = vmatpush2.msra.mxu0 0.0
    %308 = vmatprep.subr.mxu0 0.0
    %309 = vmatpush2.msra.mxu0 0.0
    %310 = vmatprep.subr.mxu0 0.0
    %311 = vmatpush2.msra.mxu0 0.0
    %312 = vmatprep.subr.mxu0 0.0
    %313 = vmatpush2.msra.mxu0 0.0
    %314 = vmatprep.subr.mxu0 0.0
    %315 = vmatpush2.msra.mxu0 0.0
    %316 = vmatprep.subr.mxu0 0.0
    %317 = vmatpush2.msra.mxu0 0.0
    %318 = vmatprep.subr.mxu0 0.0
    %319 = vmatpush2.msra.mxu0 0.0
    %320 = vmatprep.mubr.f32.mxu0 0.0
    %321 = vmatmul.mubr.f32.gmra.mxu0 %v120
    %v322 = vpop.f32.mrf.mxu0
    %v323 = vadd.f32 %v114, %v322
    %v324 = vpop.f32.mrf.mxu0
    %325 = vmatprep.mubr.f32.mxu0 0.0
    %326 = vmatmul.mubr.f32.gmra.mxu0 %v123
    %v327 = vpop.f32.mrf.mxu0
    %v328 = vadd.f32 %v114, %v327
    %v329 = vpop.f32.mrf.mxu0
    %330 = vmatprep.mubr.f32.mxu0 0.0
    %331 = vmatmul.mubr.f32.gmra.mxu0 %v126
    %v332 = vpop.f32.mrf.mxu0
    %v333 = vadd.f32 %v114, %v332
    %v334 = vpop.f32.mrf.mxu0
    %335 = vmatprep.mubr.f32.mxu0 0.0
    %336 = vmatmul.mubr.f32.gmra.mxu0 %v129
    %v337 = vpop.f32.mrf.mxu0
    %v338 = vadd.f32 %v114, %v337
    %v339 = vpop.f32.mrf.mxu0
    %340 = vmatprep.mubr.f32.mxu0 0.0
    %341 = vmatmul.mubr.f32.gmra.mxu0 %v132
    %v342 = vpop.f32.mrf.mxu0
    %v343 = vadd.f32 %v114, %v342
    %v344 = vpop.f32.mrf.mxu0
    %345 = vmatprep.mubr.f32.mxu0 0.0
    %346 = vmatmul.mubr.f32.gmra.mxu0 %v135
    %v347 = vpop.f32.mrf.mxu0
    %v348 = vadd.f32 %v114, %v347
    %v349 = vpop.f32.mrf.mxu0
    %350 = vmatprep.mubr.f32.mxu0 0.0
    %351 = vmatmul.mubr.f32.gmra.mxu0 %v138
    %v352 = vpop.f32.mrf.mxu0
    %v353 = vadd.f32 %v114, %v352
    %v354 = vpop.f32.mrf.mxu0
    %355 = vmatprep.mubr.f32.mxu0 0.0
    %356 = vmatmul.mubr.f32.gmra.mxu0 %v141
    %v357 = vpop.f32.mrf.mxu0
    %v358 = vadd.f32 %v114, %v357
    %v359 = vpop.f32.mrf.mxu0
    %360 = vdwg.mxu0
    %361 = vst [vmem:[#allocation2] sm:$0xff] %v210
    %362 = vst [vmem:[#allocation2 + $0x8] sm:$0xff] %v212
    %363 = vst [vmem:[#allocation2 + $0x10] sm:$0xff] %v323
    %364 = vst [vmem:[#allocation2 + $0x18] sm:$0xff] %v216
    %365 = vst [vmem:[#allocation2 + $0x20] sm:$0xff] %v218
    %366 = vst [vmem:[#allocation2 + $0x28] sm:$0xff] %v328
    %367 = vst [vmem:[#allocation2 + $0x30] sm:$0xff] %v222
    %368 = vst [vmem:[#allocation2 + $0x38] sm:$0xff] %v224
    %369 = vst [vmem:[#allocation2 + $0x40] sm:$0xff] %v333
    %370 = vst [vmem:[#allocation2 + $0x48] sm:$0xff] %v228
    %371 = vst [vmem:[#allocation2 + $0x50] sm:$0xff] %v230
    %372 = vst [vmem:[#allocation2 + $0x58] sm:$0xff] %v338
    %373 = vst [vmem:[#allocation2 + $0x60] sm:$0xff] %v234
    %374 = vst [vmem:[#allocation2 + $0x68] sm:$0xff] %v236
    %375 = vst [vmem:[#allocation2 + $0x70] sm:$0xff] %v343
    %376 = vst [vmem:[#allocation2 + $0x78] sm:$0xff] %v240
    %377 = vst [vmem:[#allocation2 + $0x80] sm:$0xff] %v242
    %378 = vst [vmem:[#allocation2 + $0x88] sm:$0xff] %v348
    %379 = vst [vmem:[#allocation2 + $0x90] sm:$0xff] %v246
    %380 = vst [vmem:[#allocation2 + $0x98] sm:$0xff] %v248
    %381 = vst [vmem:[#allocation2 + $0xa0] sm:$0xff] %v353
    %382 = vst [vmem:[#allocation2 + $0xa8] sm:$0xff] %v252
    %383 = vst [vmem:[#allocation2 + $0xb0] sm:$0xff] %v254
    %384 = vst [vmem:[#allocation2 + $0xb8] sm:$0xff] %v358
    %v385 = vld [vmem:[#allocation10] sm:$0xff]
    %v386 = vld [vmem:[#allocation10 + $0x8] sm:$0xff]
    %v387 = vld [vmem:[#allocation10 + $0x10] sm:$0xff]
    %v388 = vld [vmem:[#allocation10 + $0x18] sm:$0xff]
    %v389 = vld [vmem:[#allocation10 + $0x20] sm:$0xff]
    %v390 = vld [vmem:[#allocation10 + $0x28] sm:$0xff]
    %v391 = vld [vmem:[#allocation10 + $0x30] sm:$0xff]
    %v392 = vld [vmem:[#allocation10 + $0x38] sm:$0xff]
    %v393 = vld [vmem:[#allocation10 + $0x40] sm:$0xff]
    %v394 = vld [vmem:[#allocation10 + $0x48] sm:$0xff]
    %v395 = vld [vmem:[#allocation10 + $0x50] sm:$0xff]
    %v396 = vld [vmem:[#allocation10 + $0x58] sm:$0xff]
    %v397 = vld [vmem:[#allocation10 + $0x60] sm:$0xff]
    %v398 = vld [vmem:[#allocation10 + $0x68] sm:$0xff]
    %v399 = vld [vmem:[#allocation10 + $0x70] sm:$0xff]
    %v400 = vld [vmem:[#allocation10 + $0x78] sm:$0xff]
    %v401 = vld [vmem:[#allocation10 + $0x80] sm:$0xff]
    %v402 = vld [vmem:[#allocation10 + $0x88] sm:$0xff]
    %v403 = vld [vmem:[#allocation10 + $0x90] sm:$0xff]
    %v404 = vld [vmem:[#allocation10 + $0x98] sm:$0xff]
    %v405 = vld [vmem:[#allocation10 + $0xa0] sm:$0xff]
    %v406 = vld [vmem:[#allocation10 + $0xa8] sm:$0xff]
    %v407 = vld [vmem:[#allocation10 + $0xb0] sm:$0xff]
    %v408 = vld [vmem:[#allocation10 + $0xb8] sm:$0xff]
    %v409 = vld [vmem:[#allocation10 + $0xc0] sm:$0xff]
    %v410 = vld [vmem:[#allocation10 + $0xc8] sm:$0xff]
    %v411 = vld [vmem:[#allocation10 + $0xd0] sm:$0xff]
    %v412 = vld [vmem:[#allocation10 + $0xd8] sm:$0xff]
    %v413 = vld [vmem:[#allocation10 + $0xe0] sm:$0xff]
    %v414 = vld [vmem:[#allocation10 + $0xe8] sm:$0xff]
    %v415 = vld [vmem:[#allocation10 + $0xf0] sm:$0xff]
    %v416 = vld [vmem:[#allocation10 + $0xf8] sm:$0xff]
    %v417 = vld [vmem:[#allocation10 + $0x100] sm:$0xff]
    %v418 = vld [vmem:[#allocation10 + $0x108] sm:$0xff]
    %v419 = vld [vmem:[#allocation10 + $0x110] sm:$0xff]
    %v420 = vld [vmem:[#allocation10 + $0x118] sm:$0xff]
    %v421 = vld [vmem:[#allocation10 + $0x120] sm:$0xff]
    %v422 = vld [vmem:[#allocation10 + $0x128] sm:$0xff]
    %v423 = vld [vmem:[#allocation10 + $0x130] sm:$0xff]
    %v424 = vld [vmem:[#allocation10 + $0x138] sm:$0xff]
    %v425 = vld [vmem:[#allocation10 + $0x140] sm:$0xff]
    %v426 = vld [vmem:[#allocation10 + $0x148] sm:$0xff]
    %v427 = vld [vmem:[#allocation10 + $0x150] sm:$0xff]
    %v428 = vld [vmem:[#allocation10 + $0x158] sm:$0xff]
    %v429 = vld [vmem:[#allocation10 + $0x160] sm:$0xff]
    %v430 = vld [vmem:[#allocation10 + $0x168] sm:$0xff]
    %v431 = vld [vmem:[#allocation10 + $0x170] sm:$0xff]
    %v432 = vld [vmem:[#allocation10 + $0x178] sm:$0xff]
    %v433 = vld [vmem:[%s4] sm:$0x1]
    %v434 = vld [vmem:[#allocation4] sm:$0xff]
    %v435 = vld [vmem:[#allocation2] sm:$0xff]
    %v436 = vld [vmem:[#allocation2 + $0x8] sm:$0xff]
    %v437 = vld [vmem:[#allocation2 + $0x10] sm:$0xff]
    %438 = vmatprep.subr.mxu0 %v431
    %439 = vmatpush1.msra.mxu0 %v430
    %440 = vmatprep.subr.mxu0 %v428
    %441 = vmatpush1.msra.mxu0 %v427
    %442 = vmatprep.subr.mxu0 %v425
    %443 = vmatpush1.msra.mxu0 %v424
    %444 = vmatprep.subr.mxu0 %v422
    %445 = vmatpush1.msra.mxu0 %v421
    %446 = vmatprep.subr.mxu0 %v419
    %447 = vmatpush1.msra.mxu0 %v418
    %448 = vmatprep.subr.mxu0 %v416
    %449 = vmatpush1.msra.mxu0 %v415
    %450 = vmatprep.subr.mxu0 %v413
    %451 = vmatpush1.msra.mxu0 %v412
    %452 = vmatprep.subr.mxu0 %v410
    %453 = vmatpush1.msra.mxu0 %v409
    %454 = vmatprep.subr.mxu0 %v407
    %455 = vmatpush1.msra.mxu0 %v406
    %456 = vmatprep.subr.mxu0 %v404
    %457 = vmatpush1.msra.mxu0 %v403
    %458 = vmatprep.subr.mxu0 %v401
    %459 = vmatpush1.msra.mxu0 %v400
    %460 = vmatprep.subr.mxu0 %v398
    %461 = vmatpush1.msra.mxu0 %v397
    %462 = vmatprep.subr.mxu0 %v395
    %463 = vmatpush1.msra.mxu0 %v394
    %464 = vmatprep.subr.mxu0 %v392
    %465 = vmatpush1.msra.mxu0 %v391
    %466 = vmatprep.subr.mxu0 %v389
    %467 = vmatpush1.msra.mxu0 %v388
    %468 = vmatprep.subr.mxu0 %v386
    %469 = vmatpush1.msra.mxu0 %v385
    %470 = vmatprep.subr.mxu0 0.0
    %471 = vmatpush2.msra.mxu0 0.0
    %472 = vmatprep.subr.mxu0 0.0
    %473 = vmatpush2.msra.mxu0 0.0
    %474 = vmatprep.subr.mxu0 0.0
    %475 = vmatpush2.msra.mxu0 0.0
    %476 = vmatprep.subr.mxu0 0.0
    %477 = vmatpush2.msra.mxu0 0.0
    %478 = vmatprep.subr.mxu0 0.0
    %479 = vmatpush2.msra.mxu0 0.0
    %480 = vmatprep.subr.mxu0 0.0
    %481 = vmatpush2.msra.mxu0 0.0
    %482 = vmatprep.subr.mxu0 0.0
    %483 = vmatpush2.msra.mxu0 0.0
    %484 = vmatprep.subr.mxu0 0.0
    %485 = vmatpush2.msra.mxu0 0.0
    %486 = vmatprep.subr.mxu0 0.0
    %487 = vmatpush2.msra.mxu0 0.0
    %488 = vmatprep.subr.mxu0 0.0
    %489 = vmatpush2.msra.mxu0 0.0
    %490 = vmatprep.subr.mxu0 0.0
    %491 = vmatpush2.msra.mxu0 0.0
    %492 = vmatprep.subr.mxu0 0.0
    %493 = vmatpush2.msra.mxu0 0.0
    %494 = vmatprep.subr.mxu0 0.0
    %495 = vmatpush2.msra.mxu0 0.0
    %496 = vmatprep.subr.mxu0 0.0
    %497 = vmatpush2.msra.mxu0 0.0
    %498 = vmatprep.subr.mxu0 0.0
    %499 = vmatpush2.msra.mxu0 0.0
    %500 = vmatprep.subr.mxu0 0.0
    %501 = vmatpush2.msra.mxu0 0.0
    %502 = vmatprep.mubr.f32.mxu0 0.0
    %503 = vmatmul.mubr.f32.gmra.mxu0 %v434
    %v504 = vpop.f32.mrf.mxu0
    %v505 = vadd.f32 0.0, %v504
    %v506 = vpop.f32.mrf.mxu0
    %v507 = vadd.f32 0.0, %v506
    %508 = vdwg.mxu0
    %509 = vmatprep.subr.mxu0 0.0
    %510 = vmatpush1.msra.mxu0 %v432
    %511 = vmatprep.subr.mxu0 0.0
    %512 = vmatpush1.msra.mxu0 %v429
    %513 = vmatprep.subr.mxu0 0.0
    %514 = vmatpush1.msra.mxu0 %v426
    %515 = vmatprep.subr.mxu0 0.0
    %516 = vmatpush1.msra.mxu0 %v423
    %517 = vmatprep.subr.mxu0 0.0
    %518 = vmatpush1.msra.mxu0 %v420
    %519 = vmatprep.subr.mxu0 0.0
    %520 = vmatpush1.msra.mxu0 %v417
    %521 = vmatprep.subr.mxu0 0.0
    %522 = vmatpush1.msra.mxu0 %v414
    %523 = vmatprep.subr.mxu0 0.0
    %524 = vmatpush1.msra.mxu0 %v411
    %525 = vmatprep.subr.mxu0 0.0
    %526 = vmatpush1.msra.mxu0 %v408
    %527 = vmatprep.subr.mxu0 0.0
    %528 = vmatpush1.msra.mxu0 %v405
    %529 = vmatprep.subr.mxu0 0.0
    %530 = vmatpush1.msra.mxu0 %v402
    %531 = vmatprep.subr.mxu0 0.0
    %532 = vmatpush1.msra.mxu0 %v399
    %533 = vmatprep.subr.mxu0 0.0
    %534 = vmatpush1.msra.mxu0 %v396
    %535 = vmatprep.subr.mxu0 0.0
    %536 = vmatpush1.msra.mxu0 %v393
    %537 = vmatprep.subr.mxu0 0.0
    %538 = vmatpush1.msra.mxu0 %v390
    %539 = vmatprep.subr.mxu0 0.0
    %540 = vmatpush1.msra.mxu0 %v387
    %541 = vmatprep.subr.mxu0 0.0
    %542 = vmatpush2.msra.mxu0 0.0
    %543 = vmatprep.subr.mxu0 0.0
    %544 = vmatpush2.msra.mxu0 0.0
    %545 = vmatprep.subr.mxu0 0.0
    %546 = vmatpush2.msra.mxu0 0.0
    %547 = vmatprep.subr.mxu0 0.0
    %548 = vmatpush2.msra.mxu0 0.0
    %549 = vmatprep.subr.mxu0 0.0
    %550 = vmatpush2.msra.mxu0 0.0
    %551 = vmatprep.subr.mxu0 0.0
    %552 = vmatpush2.msra.mxu0 0.0
    %553 = vmatprep.subr.mxu0 0.0
    %554 = vmatpush2.msra.mxu0 0.0
    %555 = vmatprep.subr.mxu0 0.0
    %556 = vmatpush2.msra.mxu0 0.0
    %557 = vmatprep.subr.mxu0 0.0
    %558 = vmatpush2.msra.mxu0 0.0
    %559 = vmatprep.subr.mxu0 0.0
    %560 = vmatpush2.msra.mxu0 0.0
    %561 = vmatprep.subr.mxu0 0.0
    %562 = vmatpush2.msra.mxu0 0.0
    %563 = vmatprep.subr.mxu0 0.0
    %564 = vmatpush2.msra.mxu0 0.0
    %565 = vmatprep.subr.mxu0 0.0
    %566 = vmatpush2.msra.mxu0 0.0
    %567 = vmatprep.subr.mxu0 0.0
    %568 = vmatpush2.msra.mxu0 0.0
    %569 = vmatprep.subr.mxu0 0.0
    %570 = vmatpush2.msra.mxu0 0.0
    %571 = vmatprep.subr.mxu0 0.0
    %572 = vmatpush2.msra.mxu0 0.0
    %573 = vmatprep.mubr.f32.mxu0 0.0
    %574 = vmatmul.mubr.f32.gmra.mxu0 %v434
    %v575 = vpop.f32.mrf.mxu0
    %v576 = vadd.f32 0.0, %v575
    %v577 = vpop.f32.mrf.mxu0
    %578 = vdwg.mxu0
    %v579 = vadd.f32 %v435, %v505
    %v580 = vxor.u32 %v579, 2147483648
    %v581 = vmul.f32 %v580, 1.442695
    %v582 = vpow.pop %v581
    %v583 = vadd.f32 %v582, 1.0
    %v584 = vrcp.pop %v583
    %v585 = vmul.f32 1.0, %v584
    %v586 = vadd.f32 %v436, %v507
    %v587 = vxor.u32 %v586, 2147483648
    %v588 = vmul.f32 %v587, 1.442695
    %v589 = vpow.pop %v588
    %v590 = vadd.f32 %v589, 1.0
    %v591 = vrcp.pop %v590
    %v592 = vmul.f32 1.0, %v591
    %v594 = vlaneseq
    %v595 = vshrl.u32 %v594, 7
    %v596 = vsub.s32 0, %v595
    %v597 = vrot.slane %v433, %v596
    %v599 = vadd.f32 %v576, %v597
    %v600 = vmul.f32 %v585, %v599
    %v601 = vadd.f32 %v437, %v600
    %v602 = vtanh.pop %v601
    %v603 = vsub.f32 1.0, %v592
    %v604 = vmul.f32 %v603, %v602
    %v605 = vmul.f32 %v592, %v434
    %v606 = vadd.f32 %v604, %v605
    %607 = vst [vmem:[#allocation3] sm:$0xff] %v606
    %s608 = scalar_lea.vmem [#allocation2], 24
    %v609 = vld [vmem:[%s608] sm:$0xff]
    %v610 = vld [vmem:[%s608 + $0x8] sm:$0xff]
    %v611 = vld [vmem:[%s608 + $0x10] sm:$0xff]
    %612 = vmatprep.subr.mxu0 %v431
    %613 = vmatpush1.msra.mxu0 %v430
    %614 = vmatprep.subr.mxu0 %v428
    %615 = vmatpush1.msra.mxu0 %v427
    %616 = vmatprep.subr.mxu0 %v425
    %617 = vmatpush1.msra.mxu0 %v424
    %618 = vmatprep.subr.mxu0 %v422
    %619 = vmatpush1.msra.mxu0 %v421
    %620 = vmatprep.subr.mxu0 %v419
    %621 = vmatpush1.msra.mxu0 %v418
    %622 = vmatprep.subr.mxu0 %v416
    %623 = vmatpush1.msra.mxu0 %v415
    %624 = vmatprep.subr.mxu0 %v413
    %625 = vmatpush1.msra.mxu0 %v412
    %626 = vmatprep.subr.mxu0 %v410
    %627 = vmatpush1.msra.mxu0 %v409
    %628 = vmatprep.subr.mxu0 %v407
    %629 = vmatpush1.msra.mxu0 %v406
    %630 = vmatprep.subr.mxu0 %v404
    %631 = vmatpush1.msra.mxu0 %v403
    %632 = vmatprep.subr.mxu0 %v401
    %633 = vmatpush1.msra.mxu0 %v400
    %634 = vmatprep.subr.mxu0 %v398
    %635 = vmatpush1.msra.mxu0 %v397
    %636 = vmatprep.subr.mxu0 %v395
    %637 = vmatpush1.msra.mxu0 %v394
    %638 = vmatprep.subr.mxu0 %v392
    %639 = vmatpush1.msra.mxu0 %v391
    %640 = vmatprep.subr.mxu0 %v389
    %641 = vmatpush1.msra.mxu0 %v388
    %642 = vmatprep.subr.mxu0 %v386
    %643 = vmatpush1.msra.mxu0 %v385
    %644 = vmatprep.subr.mxu0 0.0
    %645 = vmatpush2.msra.mxu0 0.0
    %646 = vmatprep.subr.mxu0 0.0
    %647 = vmatpush2.msra.mxu0 0.0
    %648 = vmatprep.subr.mxu0 0.0
    %649 = vmatpush2.msra.mxu0 0.0
    %650 = vmatprep.subr.mxu0 0.0
    %651 = vmatpush2.msra.mxu0 0.0
    %652 = vmatprep.subr.mxu0 0.0
    %653 = vmatpush2.msra.mxu0 0.0
    %654 = vmatprep.subr.mxu0 0.0
    %655 = vmatpush2.msra.mxu0 0.0
    %656 = vmatprep.subr.mxu0 0.0
    %657 = vmatpush2.msra.mxu0 0.0
    %658 = vmatprep.subr.mxu0 0.0
    %659 = vmatpush2.msra.mxu0 0.0
    %660 = vmatprep.subr.mxu0 0.0
    %661 = vmatpush2.msra.mxu0 0.0
    %662 = vmatprep.subr.mxu0 0.0
    %663 = vmatpush2.msra.mxu0 0.0
    %664 = vmatprep.subr.mxu0 0.0
    %665 = vmatpush2.msra.mxu0 0.0
    %666 = vmatprep.subr.mxu0 0.0
    %667 = vmatpush2.msra.mxu0 0.0
    %668 = vmatprep.subr.mxu0 0.0
    %669 = vmatpush2.msra.mxu0 0.0
    %670 = vmatprep.subr.mxu0 0.0
    %671 = vmatpush2.msra.mxu0 0.0
    %672 = vmatprep.subr.mxu0 0.0
    %673 = vmatpush2.msra.mxu0 0.0
    %674 = vmatprep.subr.mxu0 0.0
    %675 = vmatpush2.msra.mxu0 0.0
    %676 = vmatprep.mubr.f32.mxu0 0.0
    %677 = vmatmul.mubr.f32.gmra.mxu0 %v606
    %v678 = vpop.f32.mrf.mxu0
    %v679 = vadd.f32 0.0, %v678
    %v680 = vpop.f32.mrf.mxu0
    %v681 = vadd.f32 0.0, %v680
    %682 = vdwg.mxu0
    %683 = vmatprep.subr.mxu0 0.0
    %684 = vmatpush1.msra.mxu0 %v432
    %685 = vmatprep.subr.mxu0 0.0
    %686 = vmatpush1.msra.mxu0 %v429
    %687 = vmatprep.subr.mxu0 0.0
    %688 = vmatpush1.msra.mxu0 %v426
    %689 = vmatprep.subr.mxu0 0.0
    %690 = vmatpush1.msra.mxu0 %v423
    %691 = vmatprep.subr.mxu0 0.0
    %692 = vmatpush1.msra.mxu0 %v420
    %693 = vmatprep.subr.mxu0 0.0
    %694 = vmatpush1.msra.mxu0 %v417
    %695 = vmatprep.subr.mxu0 0.0
    %696 = vmatpush1.msra.mxu0 %v414
    %697 = vmatprep.subr.mxu0 0.0
    %698 = vmatpush1.msra.mxu0 %v411
    %699 = vmatprep.subr.mxu0 0.0
    %700 = vmatpush1.msra.mxu0 %v408
    %701 = vmatprep.subr.mxu0 0.0
    %702 = vmatpush1.msra.mxu0 %v405
    %703 = vmatprep.subr.mxu0 0.0
    %704 = vmatpush1.msra.mxu0 %v402
    %705 = vmatprep.subr.mxu0 0.0
    %706 = vmatpush1.msra.mxu0 %v399
    %707 = vmatprep.subr.mxu0 0.0
    %708 = vmatpush1.msra.mxu0 %v396
    %709 = vmatprep.subr.mxu0 0.0
    %710 = vmatpush1.msra.mxu0 %v393
    %711 = vmatprep.subr.mxu0 0.0
    %712 = vmatpush1.msra.mxu0 %v390
    %713 = vmatprep.subr.mxu0 0.0
    %714 = vmatpush1.msra.mxu0 %v387
    %715 = vmatprep.subr.mxu0 0.0
    %716 = vmatpush2.msra.mxu0 0.0
    %717 = vmatprep.subr.mxu0 0.0
    %718 = vmatpush2.msra.mxu0 0.0
    %719 = vmatprep.subr.mxu0 0.0
    %720 = vmatpush2.msra.mxu0 0.0
    %721 = vmatprep.subr.mxu0 0.0
    %722 = vmatpush2.msra.mxu0 0.0
    %723 = vmatprep.subr.mxu0 0.0
    %724 = vmatpush2.msra.mxu0 0.0
    %725 = vmatprep.subr.mxu0 0.0
    %726 = vmatpush2.msra.mxu0 0.0
    %727 = vmatprep.subr.mxu0 0.0
    %728 = vmatpush2.msra.mxu0 0.0
    %729 = vmatprep.subr.mxu0 0.0
    %730 = vmatpush2.msra.mxu0 0.0
    %731 = vmatprep.subr.mxu0 0.0
    %732 = vmatpush2.msra.mxu0 0.0
    %733 = vmatprep.subr.mxu0 0.0
    %734 = vmatpush2.msra.mxu0 0.0
    %735 = vmatprep.subr.mxu0 0.0
    %736 = vmatpush2.msra.mxu0 0.0
    %737 = vmatprep.subr.mxu0 0.0
    %738 = vmatpush2.msra.mxu0 0.0
    %739 = vmatprep.subr.mxu0 0.0
    %740 = vmatpush2.msra.mxu0 0.0
    %741 = vmatprep.subr.mxu0 0.0
    %742 = vmatpush2.msra.mxu0 0.0
    %743 = vmatprep.subr.mxu0 0.0
    %744 = vmatpush2.msra.mxu0 0.0
    %745 = vmatprep.subr.mxu0 0.0
    %746 = vmatpush2.msra.mxu0 0.0
    %747 = vmatprep.mubr.f32.mxu0 0.0
    %748 = vmatmul.mubr.f32.gmra.mxu0 %v606
    %v749 = vpop.f32.mrf.mxu0
    %v750 = vadd.f32 0.0, %v749
    %v751 = vpop.f32.mrf.mxu0
    %752 = vdwg.mxu0
    %v753 = vadd.f32 %v609, %v679
    %v754 = vxor.u32 %v753, 2147483648
    %v755 = vmul.f32 %v754, 1.442695
    %v756 = vpow.pop %v755
    %v757 = vadd.f32 %v756, 1.0
    %v758 = vrcp.pop %v757
    %v759 = vmul.f32 1.0, %v758
    %v760 = vadd.f32 %v610, %v681
    %v761 = vxor.u32 %v760, 2147483648
    %v762 = vmul.f32 %v761, 1.442695
    %v763 = vpow.pop %v762
    %v764 = vadd.f32 %v763, 1.0
    %v765 = vrcp.pop %v764
    %v766 = vmul.f32 1.0, %v765
    %v767 = vadd.f32 %v750, %v597
    %v768 = vmul.f32 %v759, %v767
    %v769 = vadd.f32 %v611, %v768
    %v770 = vtanh.pop %v769
    %v771 = vsub.f32 1.0, %v766
    %v772 = vmul.f32 %v771, %v770
    %v773 = vmul.f32 %v766, %v606
    %v774 = vadd.f32 %v772, %v773
    %s775 = scalar_lea.vmem [#allocation3], 8
    %776 = vst [vmem:[%s775] sm:$0xff] %v774
    %s777 = scalar_lea.vmem [#allocation2], 48
    %v778 = vld [vmem:[%s777] sm:$0xff]
    %v779 = vld [vmem:[%s777 + $0x8] sm:$0xff]
    %v780 = vld [vmem:[%s777 + $0x10] sm:$0xff]
    %781 = vmatprep.subr.mxu0 %v431
    %782 = vmatpush1.msra.mxu0 %v430
    %783 = vmatprep.subr.mxu0 %v428
    %784 = vmatpush1.msra.mxu0 %v427
    %785 = vmatprep.subr.mxu0 %v425
    %786 = vmatpush1.msra.mxu0 %v424
    %787 = vmatprep.subr.mxu0 %v422
    %788 = vmatpush1.msra.mxu0 %v421
    %789 = vmatprep.subr.mxu0 %v419
    %790 = vmatpush1.msra.mxu0 %v418
    %791 = vmatprep.subr.mxu0 %v416
    %792 = vmatpush1.msra.mxu0 %v415
    %793 = vmatprep.subr.mxu0 %v413
    %794 = vmatpush1.msra.mxu0 %v412
    %795 = vmatprep.subr.mxu0 %v410
    %796 = vmatpush1.msra.mxu0 %v409
    %797 = vmatprep.subr.mxu0 %v407
    %798 = vmatpush1.msra.mxu0 %v406
    %799 = vmatprep.subr.mxu0 %v404
    %800 = vmatpush1.msra.mxu0 %v403
    %801 = vmatprep.subr.mxu0 %v401
    %802 = vmatpush1.msra.mxu0 %v400
    %803 = vmatprep.subr.mxu0 %v398
    %804 = vmatpush1.msra.mxu0 %v397
    %805 = vmatprep.subr.mxu0 %v395
    %806 = vmatpush1.msra.mxu0 %v394
    %807 = vmatprep.subr.mxu0 %v392
    %808 = vmatpush1.msra.mxu0 %v391
    %809 = vmatprep.subr.mxu0 %v389
    %810 = vmatpush1.msra.mxu0 %v388
    %811 = vmatprep.subr.mxu0 %v386
    %812 = vmatpush1.msra.mxu0 %v385
    %813 = vmatprep.subr.mxu0 0.0
    %814 = vmatpush2.msra.mxu0 0.0
    %815 = vmatprep.subr.mxu0 0.0
    %816 = vmatpush2.msra.mxu0 0.0
    %817 = vmatprep.subr.mxu0 0.0
    %818 = vmatpush2.msra.mxu0 0.0
    %819 = vmatprep.subr.mxu0 0.0
    %820 = vmatpush2.msra.mxu0 0.0
    %821 = vmatprep.subr.mxu0 0.0
    %822 = vmatpush2.msra.mxu0 0.0
    %823 = vmatprep.subr.mxu0 0.0
    %824 = vmatpush2.msra.mxu0 0.0
    %825 = vmatprep.subr.mxu0 0.0
    %826 = vmatpush2.msra.mxu0 0.0
    %827 = vmatprep.subr.mxu0 0.0
    %828 = vmatpush2.msra.mxu0 0.0
    %829 = vmatprep.subr.mxu0 0.0
    %830 = vmatpush2.msra.mxu0 0.0
    %831 = vmatprep.subr.mxu0 0.0
    %832 = vmatpush2.msra.mxu0 0.0
    %833 = vmatprep.subr.mxu0 0.0
    %834 = vmatpush2.msra.mxu0 0.0
    %835 = vmatprep.subr.mxu0 0.0
    %836 = vmatpush2.msra.mxu0 0.0
    %837 = vmatprep.subr.mxu0 0.0
    %838 = vmatpush2.msra.mxu0 0.0
    %839 = vmatprep.subr.mxu0 0.0
    %840 = vmatpush2.msra.mxu0 0.0
    %841 = vmatprep.subr.mxu0 0.0
    %842 = vmatpush2.msra.mxu0 0.0
    %843 = vmatprep.subr.mxu0 0.0
    %844 = vmatpush2.msra.mxu0 0.0
    %845 = vmatprep.mubr.f32.mxu0 0.0
    %846 = vmatmul.mubr.f32.gmra.mxu0 %v774
    %v847 = vpop.f32.mrf.mxu0
    %v848 = vadd.f32 0.0, %v847
    %v849 = vpop.f32.mrf.mxu0
    %v850 = vadd.f32 0.0, %v849
    %851 = vdwg.mxu0
    %852 = vmatprep.subr.mxu0 0.0
    %853 = vmatpush1.msra.mxu0 %v432
    %854 = vmatprep.subr.mxu0 0.0
    %855 = vmatpush1.msra.mxu0 %v429
    %856 = vmatprep.subr.mxu0 0.0
    %857 = vmatpush1.msra.mxu0 %v426
    %858 = vmatprep.subr.mxu0 0.0
    %859 = vmatpush1.msra.mxu0 %v423
    %860 = vmatprep.subr.mxu0 0.0
    %861 = vmatpush1.msra.mxu0 %v420
    %862 = vmatprep.subr.mxu0 0.0
    %863 = vmatpush1.msra.mxu0 %v417
    %864 = vmatprep.subr.mxu0 0.0
    %865 = vmatpush1.msra.mxu0 %v414
    %866 = vmatprep.subr.mxu0 0.0
    %867 = vmatpush1.msra.mxu0 %v411
    %868 = vmatprep.subr.mxu0 0.0
    %869 = vmatpush1.msra.mxu0 %v408
    %870 = vmatprep.subr.mxu0 0.0
    %871 = vmatpush1.msra.mxu0 %v405
    %872 = vmatprep.subr.mxu0 0.0
    %873 = vmatpush1.msra.mxu0 %v402
    %874 = vmatprep.subr.mxu0 0.0
    %875 = vmatpush1.msra.mxu0 %v399
    %876 = vmatprep.subr.mxu0 0.0
    %877 = vmatpush1.msra.mxu0 %v396
    %878 = vmatprep.subr.mxu0 0.0
    %879 = vmatpush1.msra.mxu0 %v393
    %880 = vmatprep.subr.mxu0 0.0
    %881 = vmatpush1.msra.mxu0 %v390
    %882 = vmatprep.subr.mxu0 0.0
    %883 = vmatpush1.msra.mxu0 %v387
    %884 = vmatprep.subr.mxu0 0.0
    %885 = vmatpush2.msra.mxu0 0.0
    %886 = vmatprep.subr.mxu0 0.0
    %887 = vmatpush2.msra.mxu0 0.0
    %888 = vmatprep.subr.mxu0 0.0
    %889 = vmatpush2.msra.mxu0 0.0
    %890 = vmatprep.subr.mxu0 0.0
    %891 = vmatpush2.msra.mxu0 0.0
    %892 = vmatprep.subr.mxu0 0.0
    %893 = vmatpush2.msra.mxu0 0.0
    %894 = vmatprep.subr.mxu0 0.0
    %895 = vmatpush2.msra.mxu0 0.0
    %896 = vmatprep.subr.mxu0 0.0
    %897 = vmatpush2.msra.mxu0 0.0
    %898 = vmatprep.subr.mxu0 0.0
    %899 = vmatpush2.msra.mxu0 0.0
    %900 = vmatprep.subr.mxu0 0.0
    %901 = vmatpush2.msra.mxu0 0.0
    %902 = vmatprep.subr.mxu0 0.0
    %903 = vmatpush2.msra.mxu0 0.0
    %904 = vmatprep.subr.mxu0 0.0
    %905 = vmatpush2.msra.mxu0 0.0
    %906 = vmatprep.subr.mxu0 0.0
    %907 = vmatpush2.msra.mxu0 0.0
    %908 = vmatprep.subr.mxu0 0.0
    %909 = vmatpush2.msra.mxu0 0.0
    %910 = vmatprep.subr.mxu0 0.0
    %911 = vmatpush2.msra.mxu0 0.0
    %912 = vmatprep.subr.mxu0 0.0
    %913 = vmatpush2.msra.mxu0 0.0
    %914 = vmatprep.subr.mxu0 0.0
    %915 = vmatpush2.msra.mxu0 0.0
    %916 = vmatprep.mubr.f32.mxu0 0.0
    %917 = vmatmul.mubr.f32.gmra.mxu0 %v774
    %v918 = vpop.f32.mrf.mxu0
    %v919 = vadd.f32 0.0, %v918
    %v920 = vpop.f32.mrf.mxu0
    %921 = vdwg.mxu0
    %v922 = vadd.f32 %v778, %v848
    %v923 = vxor.u32 %v922, 2147483648
    %v924 = vmul.f32 %v923, 1.442695
    %v925 = vpow.pop %v924
    %v926 = vadd.f32 %v925, 1.0
    %v927 = vrcp.pop %v926
    %v928 = vmul.f32 1.0, %v927
    %v929 = vadd.f32 %v779, %v850
    %v930 = vxor.u32 %v929, 2147483648
    %v931 = vmul.f32 %v930, 1.442695
    %v932 = vpow.pop %v931
    %v933 = vadd.f32 %v932, 1.0
    %v934 = vrcp.pop %v933
    %v935 = vmul.f32 1.0, %v934
    %v936 = vadd.f32 %v919, %v597
    %v937 = vmul.f32 %v928, %v936
    %v938 = vadd.f32 %v780, %v937
    %v939 = vtanh.pop %v938
    %v940 = vsub.f32 1.0, %v935
    %v941 = vmul.f32 %v940, %v939
    %v942 = vmul.f32 %v935, %v774
    %v943 = vadd.f32 %v941, %v942
    %s944 = scalar_lea.vmem [#allocation3], 16
    %945 = vst [vmem:[%s944] sm:$0xff] %v943
    %s946 = scalar_lea.vmem [#allocation2], 72
    %v947 = vld [vmem:[%s946] sm:$0xff]
    %v948 = vld [vmem:[%s946 + $0x8] sm:$0xff]
    %v949 = vld [vmem:[%s946 + $0x10] sm:$0xff]
    %950 = vmatprep.subr.mxu0 %v431
    %951 = vmatpush1.msra.mxu0 %v430
    %952 = vmatprep.subr.mxu0 %v428
    %953 = vmatpush1.msra.mxu0 %v427
    %954 = vmatprep.subr.mxu0 %v425
    %955 = vmatpush1.msra.mxu0 %v424
    %956 = vmatprep.subr.mxu0 %v422
    %957 = vmatpush1.msra.mxu0 %v421
    %958 = vmatprep.subr.mxu0 %v419
    %959 = vmatpush1.msra.mxu0 %v418
    %960 = vmatprep.subr.mxu0 %v416
    %961 = vmatpush1.msra.mxu0 %v415
    %962 = vmatprep.subr.mxu0 %v413
    %963 = vmatpush1.msra.mxu0 %v412
    %964 = vmatprep.subr.mxu0 %v410
    %965 = vmatpush1.msra.mxu0 %v409
    %966 = vmatprep.subr.mxu0 %v407
    %967 = vmatpush1.msra.mxu0 %v406
    %968 = vmatprep.subr.mxu0 %v404
    %969 = vmatpush1.msra.mxu0 %v403
    %970 = vmatprep.subr.mxu0 %v401
    %971 = vmatpush1.msra.mxu0 %v400
    %972 = vmatprep.subr.mxu0 %v398
    %973 = vmatpush1.msra.mxu0 %v397
    %974 = vmatprep.subr.mxu0 %v395
    %975 = vmatpush1.msra.mxu0 %v394
    %976 = vmatprep.subr.mxu0 %v392
    %977 = vmatpush1.msra.mxu0 %v391
    %978 = vmatprep.subr.mxu0 %v389
    %979 = vmatpush1.msra.mxu0 %v388
    %980 = vmatprep.subr.mxu0 %v386
    %981 = vmatpush1.msra.mxu0 %v385
    %982 = vmatprep.subr.mxu0 0.0
    %983 = vmatpush2.msra.mxu0 0.0
    %984 = vmatprep.subr.mxu0 0.0
    %985 = vmatpush2.msra.mxu0 0.0
    %986 = vmatprep.subr.mxu0 0.0
    %987 = vmatpush2.msra.mxu0 0.0
    %988 = vmatprep.subr.mxu0 0.0
    %989 = vmatpush2.msra.mxu0 0.0
    %990 = vmatprep.subr.mxu0 0.0
    %991 = vmatpush2.msra.mxu0 0.0
    %992 = vmatprep.subr.mxu0 0.0
    %993 = vmatpush2.msra.mxu0 0.0
    %994 = vmatprep.subr.mxu0 0.0
    %995 = vmatpush2.msra.mxu0 0.0
    %996 = vmatprep.subr.mxu0 0.0
    %997 = vmatpush2.msra.mxu0 0.0
    %998 = vmatprep.subr.mxu0 0.0
    %999 = vmatpush2.msra.mxu0 0.0
    %1000 = vmatprep.subr.mxu0 0.0
    %1001 = vmatpush2.msra.mxu0 0.0
    %1002 = vmatprep.subr.mxu0 0.0
    %1003 = vmatpush2.msra.mxu0 0.0
    %1004 = vmatprep.subr.mxu0 0.0
    %1005 = vmatpush2.msra.mxu0 0.0
    %1006 = vmatprep.subr.mxu0 0.0
    %1007 = vmatpush2.msra.mxu0 0.0
    %1008 = vmatprep.subr.mxu0 0.0
    %1009 = vmatpush2.msra.mxu0 0.0
    %1010 = vmatprep.subr.mxu0 0.0
    %1011 = vmatpush2.msra.mxu0 0.0
    %1012 = vmatprep.subr.mxu0 0.0
    %1013 = vmatpush2.msra.mxu0 0.0
    %1014 = vmatprep.mubr.f32.mxu0 0.0
    %1015 = vmatmul.mubr.f32.gmra.mxu0 %v943
    %v1016 = vpop.f32.mrf.mxu0
    %v1017 = vadd.f32 0.0, %v1016
    %v1018 = vpop.f32.mrf.mxu0
    %v1019 = vadd.f32 0.0, %v1018
    %1020 = vdwg.mxu0
    %1021 = vmatprep.subr.mxu0 0.0
    %1022 = vmatpush1.msra.mxu0 %v432
    %1023 = vmatprep.subr.mxu0 0.0
    %1024 = vmatpush1.msra.mxu0 %v429
    %1025 = vmatprep.subr.mxu0 0.0
    %1026 = vmatpush1.msra.mxu0 %v426
    %1027 = vmatprep.subr.mxu0 0.0
    %1028 = vmatpush1.msra.mxu0 %v423
    %1029 = vmatprep.subr.mxu0 0.0
    %1030 = vmatpush1.msra.mxu0 %v420
    %1031 = vmatprep.subr.mxu0 0.0
    %1032 = vmatpush1.msra.mxu0 %v417
    %1033 = vmatprep.subr.mxu0 0.0
    %1034 = vmatpush1.msra.mxu0 %v414
    %1035 = vmatprep.subr.mxu0 0.0
    %1036 = vmatpush1.msra.mxu0 %v411
    %1037 = vmatprep.subr.mxu0 0.0
    %1038 = vmatpush1.msra.mxu0 %v408
    %1039 = vmatprep.subr.mxu0 0.0
    %1040 = vmatpush1.msra.mxu0 %v405
    %1041 = vmatprep.subr.mxu0 0.0
    %1042 = vmatpush1.msra.mxu0 %v402
    %1043 = vmatprep.subr.mxu0 0.0
    %1044 = vmatpush1.msra.mxu0 %v399
    %1045 = vmatprep.subr.mxu0 0.0
    %1046 = vmatpush1.msra.mxu0 %v396
    %1047 = vmatprep.subr.mxu0 0.0
    %1048 = vmatpush1.msra.mxu0 %v393
    %1049 = vmatprep.subr.mxu0 0.0
    %1050 = vmatpush1.msra.mxu0 %v390
    %1051 = vmatprep.subr.mxu0 0.0
    %1052 = vmatpush1.msra.mxu0 %v387
    %1053 = vmatprep.subr.mxu0 0.0
    %1054 = vmatpush2.msra.mxu0 0.0
    %1055 = vmatprep.subr.mxu0 0.0
    %1056 = vmatpush2.msra.mxu0 0.0
    %1057 = vmatprep.subr.mxu0 0.0
    %1058 = vmatpush2.msra.mxu0 0.0
    %1059 = vmatprep.subr.mxu0 0.0
    %1060 = vmatpush2.msra.mxu0 0.0
    %1061 = vmatprep.subr.mxu0 0.0
    %1062 = vmatpush2.msra.mxu0 0.0
    %1063 = vmatprep.subr.mxu0 0.0
    %1064 = vmatpush2.msra.mxu0 0.0
    %1065 = vmatprep.subr.mxu0 0.0
    %1066 = vmatpush2.msra.mxu0 0.0
    %1067 = vmatprep.subr.mxu0 0.0
    %1068 = vmatpush2.msra.mxu0 0.0
    %1069 = vmatprep.subr.mxu0 0.0
    %1070 = vmatpush2.msra.mxu0 0.0
    %1071 = vmatprep.subr.mxu0 0.0
    %1072 = vmatpush2.msra.mxu0 0.0
    %1073 = vmatprep.subr.mxu0 0.0
    %1074 = vmatpush2.msra.mxu0 0.0
    %1075 = vmatprep.subr.mxu0 0.0
    %1076 = vmatpush2.msra.mxu0 0.0
    %1077 = vmatprep.subr.mxu0 0.0
    %1078 = vmatpush2.msra.mxu0 0.0
    %1079 = vmatprep.subr.mxu0 0.0
    %1080 = vmatpush2.msra.mxu0 0.0
    %1081 = vmatprep.subr.mxu0 0.0
    %1082 = vmatpush2.msra.mxu0 0.0
    %1083 = vmatprep.subr.mxu0 0.0
    %1084 = vmatpush2.msra.mxu0 0.0
    %1085 = vmatprep.mubr.f32.mxu0 0.0
    %1086 = vmatmul.mubr.f32.gmra.mxu0 %v943
    %v1087 = vpop.f32.mrf.mxu0
    %v1088 = vadd.f32 0.0, %v1087
    %v1089 = vpop.f32.mrf.mxu0
    %1090 = vdwg.mxu0
    %v1091 = vadd.f32 %v947, %v1017
    %v1092 = vxor.u32 %v1091, 2147483648
    %v1093 = vmul.f32 %v1092, 1.442695
    %v1094 = vpow.pop %v1093
    %v1095 = vadd.f32 %v1094, 1.0
    %v1096 = vrcp.pop %v1095
    %v1097 = vmul.f32 1.0, %v1096
    %v1098 = vadd.f32 %v948, %v1019
    %v1099 = vxor.u32 %v1098, 2147483648
    %v1100 = vmul.f32 %v1099, 1.442695
    %v1101 = vpow.pop %v1100
    %v1102 = vadd.f32 %v1101, 1.0
    %v1103 = vrcp.pop %v1102
    %v1104 = vmul.f32 1.0, %v1103
    %v1105 = vadd.f32 %v1088, %v597
    %v1106 = vmul.f32 %v1097, %v1105
    %v1107 = vadd.f32 %v949, %v1106
    %v1108 = vtanh.pop %v1107
    %v1109 = vsub.f32 1.0, %v1104
    %v1110 = vmul.f32 %v1109, %v1108
    %v1111 = vmul.f32 %v1104, %v943
    %v1112 = vadd.f32 %v1110, %v1111
    %s1113 = scalar_lea.vmem [#allocation3], 24
    %1114 = vst [vmem:[%s1113] sm:$0xff] %v1112
    %s1115 = scalar_lea.vmem [#allocation2], 96
    %v1116 = vld [vmem:[%s1115] sm:$0xff]
    %v1117 = vld [vmem:[%s1115 + $0x8] sm:$0xff]
    %v1118 = vld [vmem:[%s1115 + $0x10] sm:$0xff]
    %1119 = vmatprep.subr.mxu0 %v431
    %1120 = vmatpush1.msra.mxu0 %v430
    %1121 = vmatprep.subr.mxu0 %v428
    %1122 = vmatpush1.msra.mxu0 %v427
    %1123 = vmatprep.subr.mxu0 %v425
    %1124 = vmatpush1.msra.mxu0 %v424
    %1125 = vmatprep.subr.mxu0 %v422
    %1126 = vmatpush1.msra.mxu0 %v421
    %1127 = vmatprep.subr.mxu0 %v419
    %1128 = vmatpush1.msra.mxu0 %v418
    %1129 = vmatprep.subr.mxu0 %v416
    %1130 = vmatpush1.msra.mxu0 %v415
    %1131 = vmatprep.subr.mxu0 %v413
    %1132 = vmatpush1.msra.mxu0 %v412
    %1133 = vmatprep.subr.mxu0 %v410
    %1134 = vmatpush1.msra.mxu0 %v409
    %1135 = vmatprep.subr.mxu0 %v407
    %1136 = vmatpush1.msra.mxu0 %v406
    %1137 = vmatprep.subr.mxu0 %v404
    %1138 = vmatpush1.msra.mxu0 %v403
    %1139 = vmatprep.subr.mxu0 %v401
    %1140 = vmatpush1.msra.mxu0 %v400
    %1141 = vmatprep.subr.mxu0 %v398
    %1142 = vmatpush1.msra.mxu0 %v397
    %1143 = vmatprep.subr.mxu0 %v395
    %1144 = vmatpush1.msra.mxu0 %v394
    %1145 = vmatprep.subr.mxu0 %v392
    %1146 = vmatpush1.msra.mxu0 %v391
    %1147 = vmatprep.subr.mxu0 %v389
    %1148 = vmatpush1.msra.mxu0 %v388
    %1149 = vmatprep.subr.mxu0 %v386
    %1150 = vmatpush1.msra.mxu0 %v385
    %1151 = vmatprep.subr.mxu0 0.0
    %1152 = vmatpush2.msra.mxu0 0.0
    %1153 = vmatprep.subr.mxu0 0.0
    %1154 = vmatpush2.msra.mxu0 0.0
    %1155 = vmatprep.subr.mxu0 0.0
    %1156 = vmatpush2.msra.mxu0 0.0
    %1157 = vmatprep.subr.mxu0 0.0
    %1158 = vmatpush2.msra.mxu0 0.0
    %1159 = vmatprep.subr.mxu0 0.0
    %1160 = vmatpush2.msra.mxu0 0.0
    %1161 = vmatprep.subr.mxu0 0.0
    %1162 = vmatpush2.msra.mxu0 0.0
    %1163 = vmatprep.subr.mxu0 0.0
    %1164 = vmatpush2.msra.mxu0 0.0
    %1165 = vmatprep.subr.mxu0 0.0
    %1166 = vmatpush2.msra.mxu0 0.0
    %1167 = vmatprep.subr.mxu0 0.0
    %1168 = vmatpush2.msra.mxu0 0.0
    %1169 = vmatprep.subr.mxu0 0.0
    %1170 = vmatpush2.msra.mxu0 0.0
    %1171 = vmatprep.subr.mxu0 0.0
    %1172 = vmatpush2.msra.mxu0 0.0
    %1173 = vmatprep.subr.mxu0 0.0
    %1174 = vmatpush2.msra.mxu0 0.0
    %1175 = vmatprep.subr.mxu0 0.0
    %1176 = vmatpush2.msra.mxu0 0.0
    %1177 = vmatprep.subr.mxu0 0.0
    %1178 = vmatpush2.msra.mxu0 0.0
    %1179 = vmatprep.subr.mxu0 0.0
    %1180 = vmatpush2.msra.mxu0 0.0
    %1181 = vmatprep.subr.mxu0 0.0
    %1182 = vmatpush2.msra.mxu0 0.0
    %1183 = vmatprep.mubr.f32.mxu0 0.0
    %1184 = vmatmul.mubr.f32.gmra.mxu0 %v1112
    %v1185 = vpop.f32.mrf.mxu0
    %v1186 = vadd.f32 0.0, %v1185
    %v1187 = vpop.f32.mrf.mxu0
    %v1188 = vadd.f32 0.0, %v1187
    %1189 = vdwg.mxu0
    %1190 = vmatprep.subr.mxu0 0.0
    %1191 = vmatpush1.msra.mxu0 %v432
    %1192 = vmatprep.subr.mxu0 0.0
    %1193 = vmatpush1.msra.mxu0 %v429
    %1194 = vmatprep.subr.mxu0 0.0
    %1195 = vmatpush1.msra.mxu0 %v426
    %1196 = vmatprep.subr.mxu0 0.0
    %1197 = vmatpush1.msra.mxu0 %v423
    %1198 = vmatprep.subr.mxu0 0.0
    %1199 = vmatpush1.msra.mxu0 %v420
    %1200 = vmatprep.subr.mxu0 0.0
    %1201 = vmatpush1.msra.mxu0 %v417
    %1202 = vmatprep.subr.mxu0 0.0
    %1203 = vmatpush1.msra.mxu0 %v414
    %1204 = vmatprep.subr.mxu0 0.0
    %1205 = vmatpush1.msra.mxu0 %v411
    %1206 = vmatprep.subr.mxu0 0.0
    %1207 = vmatpush1.msra.mxu0 %v408
    %1208 = vmatprep.subr.mxu0 0.0
    %1209 = vmatpush1.msra.mxu0 %v405
    %1210 = vmatprep.subr.mxu0 0.0
    %1211 = vmatpush1.msra.mxu0 %v402
    %1212 = vmatprep.subr.mxu0 0.0
    %1213 = vmatpush1.msra.mxu0 %v399
    %1214 = vmatprep.subr.mxu0 0.0
    %1215 = vmatpush1.msra.mxu0 %v396
    %1216 = vmatprep.subr.mxu0 0.0
    %1217 = vmatpush1.msra.mxu0 %v393
    %1218 = vmatprep.subr.mxu0 0.0
    %1219 = vmatpush1.msra.mxu0 %v390
    %1220 = vmatprep.subr.mxu0 0.0
    %1221 = vmatpush1.msra.mxu0 %v387
    %1222 = vmatprep.subr.mxu0 0.0
    %1223 = vmatpush2.msra.mxu0 0.0
    %1224 = vmatprep.subr.mxu0 0.0
    %1225 = vmatpush2.msra.mxu0 0.0
    %1226 = vmatprep.subr.mxu0 0.0
    %1227 = vmatpush2.msra.mxu0 0.0
    %1228 = vmatprep.subr.mxu0 0.0
    %1229 = vmatpush2.msra.mxu0 0.0
    %1230 = vmatprep.subr.mxu0 0.0
    %1231 = vmatpush2.msra.mxu0 0.0
    %1232 = vmatprep.subr.mxu0 0.0
    %1233 = vmatpush2.msra.mxu0 0.0
    %1234 = vmatprep.subr.mxu0 0.0
    %1235 = vmatpush2.msra.mxu0 0.0
    %1236 = vmatprep.subr.mxu0 0.0
    %1237 = vmatpush2.msra.mxu0 0.0
    %1238 = vmatprep.subr.mxu0 0.0
    %1239 = vmatpush2.msra.mxu0 0.0
    %1240 = vmatprep.subr.mxu0 0.0
    %1241 = vmatpush2.msra.mxu0 0.0
    %1242 = vmatprep.subr.mxu0 0.0
    %1243 = vmatpush2.msra.mxu0 0.0
    %1244 = vmatprep.subr.mxu0 0.0
    %1245 = vmatpush2.msra.mxu0 0.0
    %1246 = vmatprep.subr.mxu0 0.0
    %1247 = vmatpush2.msra.mxu0 0.0
    %1248 = vmatprep.subr.mxu0 0.0
    %1249 = vmatpush2.msra.mxu0 0.0
    %1250 = vmatprep.subr.mxu0 0.0
    %1251 = vmatpush2.msra.mxu0 0.0
    %1252 = vmatprep.subr.mxu0 0.0
    %1253 = vmatpush2.msra.mxu0 0.0
    %1254 = vmatprep.mubr.f32.mxu0 0.0
    %1255 = vmatmul.mubr.f32.gmra.mxu0 %v1112
    %v1256 = vpop.f32.mrf.mxu0
    %v1257 = vadd.f32 0.0, %v1256
    %v1258 = vpop.f32.mrf.mxu0
    %1259 = vdwg.mxu0
    %v1260 = vadd.f32 %v1116, %v1186
    %v1261 = vxor.u32 %v1260, 2147483648
    %v1262 = vmul.f32 %v1261, 1.442695
    %v1263 = vpow.pop %v1262
    %v1264 = vadd.f32 %v1263, 1.0
    %v1265 = vrcp.pop %v1264
    %v1266 = vmul.f32 1.0, %v1265
    %v1267 = vadd.f32 %v1117, %v1188
    %v1268 = vxor.u32 %v1267, 2147483648
    %v1269 = vmul.f32 %v1268, 1.442695
    %v1270 = vpow.pop %v1269
    %v1271 = vadd.f32 %v1270, 1.0
    %v1272 = vrcp.pop %v1271
    %v1273 = vmul.f32 1.0, %v1272
    %v1274 = vadd.f32 %v1257, %v597
    %v1275 = vmul.f32 %v1266, %v1274
    %v1276 = vadd.f32 %v1118, %v1275
    %v1277 = vtanh.pop %v1276
    %v1278 = vsub.f32 1.0, %v1273
    %v1279 = vmul.f32 %v1278, %v1277
    %v1280 = vmul.f32 %v1273, %v1112
    %v1281 = vadd.f32 %v1279, %v1280
    %s1282 = scalar_lea.vmem [#allocation3], 32
    %1283 = vst [vmem:[%s1282] sm:$0xff] %v1281
    %s1284 = scalar_lea.vmem [#allocation2], 120
    %v1285 = vld [vmem:[%s1284] sm:$0xff]
    %v1286 = vld [vmem:[%s1284 + $0x8] sm:$0xff]
    %v1287 = vld [vmem:[%s1284 + $0x10] sm:$0xff]
    %1288 = vmatprep.subr.mxu0 %v431
    %1289 = vmatpush1.msra.mxu0 %v430
    %1290 = vmatprep.subr.mxu0 %v428
    %1291 = vmatpush1.msra.mxu0 %v427
    %1292 = vmatprep.subr.mxu0 %v425
    %1293 = vmatpush1.msra.mxu0 %v424
    %1294 = vmatprep.subr.mxu0 %v422
    %1295 = vmatpush1.msra.mxu0 %v421
    %1296 = vmatprep.subr.mxu0 %v419
    %1297 = vmatpush1.msra.mxu0 %v418
    %1298 = vmatprep.subr.mxu0 %v416
    %1299 = vmatpush1.msra.mxu0 %v415
    %1300 = vmatprep.subr.mxu0 %v413
    %1301 = vmatpush1.msra.mxu0 %v412
    %1302 = vmatprep.subr.mxu0 %v410
    %1303 = vmatpush1.msra.mxu0 %v409
    %1304 = vmatprep.subr.mxu0 %v407
    %1305 = vmatpush1.msra.mxu0 %v406
    %1306 = vmatprep.subr.mxu0 %v404
    %1307 = vmatpush1.msra.mxu0 %v403
    %1308 = vmatprep.subr.mxu0 %v401
    %1309 = vmatpush1.msra.mxu0 %v400
    %1310 = vmatprep.subr.mxu0 %v398
    %1311 = vmatpush1.msra.mxu0 %v397
    %1312 = vmatprep.subr.mxu0 %v395
    %1313 = vmatpush1.msra.mxu0 %v394
    %1314 = vmatprep.subr.mxu0 %v392
    %1315 = vmatpush1.msra.mxu0 %v391
    %1316 = vmatprep.subr.mxu0 %v389
    %1317 = vmatpush1.msra.mxu0 %v388
    %1318 = vmatprep.subr.mxu0 %v386
    %1319 = vmatpush1.msra.mxu0 %v385
    %1320 = vmatprep.subr.mxu0 0.0
    %1321 = vmatpush2.msra.mxu0 0.0
    %1322 = vmatprep.subr.mxu0 0.0
    %1323 = vmatpush2.msra.mxu0 0.0
    %1324 = vmatprep.subr.mxu0 0.0
    %1325 = vmatpush2.msra.mxu0 0.0
    %1326 = vmatprep.subr.mxu0 0.0
    %1327 = vmatpush2.msra.mxu0 0.0
    %1328 = vmatprep.subr.mxu0 0.0
    %1329 = vmatpush2.msra.mxu0 0.0
    %1330 = vmatprep.subr.mxu0 0.0
    %1331 = vmatpush2.msra.mxu0 0.0
    %1332 = vmatprep.subr.mxu0 0.0
    %1333 = vmatpush2.msra.mxu0 0.0
    %1334 = vmatprep.subr.mxu0 0.0
    %1335 = vmatpush2.msra.mxu0 0.0
    %1336 = vmatprep.subr.mxu0 0.0
    %1337 = vmatpush2.msra.mxu0 0.0
    %1338 = vmatprep.subr.mxu0 0.0
    %1339 = vmatpush2.msra.mxu0 0.0
    %1340 = vmatprep.subr.mxu0 0.0
    %1341 = vmatpush2.msra.mxu0 0.0
    %1342 = vmatprep.subr.mxu0 0.0
    %1343 = vmatpush2.msra.mxu0 0.0
    %1344 = vmatprep.subr.mxu0 0.0
    %1345 = vmatpush2.msra.mxu0 0.0
    %1346 = vmatprep.subr.mxu0 0.0
    %1347 = vmatpush2.msra.mxu0 0.0
    %1348 = vmatprep.subr.mxu0 0.0
    %1349 = vmatpush2.msra.mxu0 0.0
    %1350 = vmatprep.subr.mxu0 0.0
    %1351 = vmatpush2.msra.mxu0 0.0
    %1352 = vmatprep.mubr.f32.mxu0 0.0
    %1353 = vmatmul.mubr.f32.gmra.mxu0 %v1281
    %v1354 = vpop.f32.mrf.mxu0
    %v1355 = vadd.f32 0.0, %v1354
    %v1356 = vpop.f32.mrf.mxu0
    %v1357 = vadd.f32 0.0, %v1356
    %1358 = vdwg.mxu0
    %1359 = vmatprep.subr.mxu0 0.0
    %1360 = vmatpush1.msra.mxu0 %v432
    %1361 = vmatprep.subr.mxu0 0.0
    %1362 = vmatpush1.msra.mxu0 %v429
    %1363 = vmatprep.subr.mxu0 0.0
    %1364 = vmatpush1.msra.mxu0 %v426
    %1365 = vmatprep.subr.mxu0 0.0
    %1366 = vmatpush1.msra.mxu0 %v423
    %1367 = vmatprep.subr.mxu0 0.0
    %1368 = vmatpush1.msra.mxu0 %v420
    %1369 = vmatprep.subr.mxu0 0.0
    %1370 = vmatpush1.msra.mxu0 %v417
    %1371 = vmatprep.subr.mxu0 0.0
    %1372 = vmatpush1.msra.mxu0 %v414
    %1373 = vmatprep.subr.mxu0 0.0
    %1374 = vmatpush1.msra.mxu0 %v411
    %1375 = vmatprep.subr.mxu0 0.0
    %1376 = vmatpush1.msra.mxu0 %v408
    %1377 = vmatprep.subr.mxu0 0.0
    %1378 = vmatpush1.msra.mxu0 %v405
    %1379 = vmatprep.subr.mxu0 0.0
    %1380 = vmatpush1.msra.mxu0 %v402
    %1381 = vmatprep.subr.mxu0 0.0
    %1382 = vmatpush1.msra.mxu0 %v399
    %1383 = vmatprep.subr.mxu0 0.0
    %1384 = vmatpush1.msra.mxu0 %v396
    %1385 = vmatprep.subr.mxu0 0.0
    %1386 = vmatpush1.msra.mxu0 %v393
    %1387 = vmatprep.subr.mxu0 0.0
    %1388 = vmatpush1.msra.mxu0 %v390
    %1389 = vmatprep.subr.mxu0 0.0
    %1390 = vmatpush1.msra.mxu0 %v387
    %1391 = vmatprep.subr.mxu0 0.0
    %1392 = vmatpush2.msra.mxu0 0.0
    %1393 = vmatprep.subr.mxu0 0.0
    %1394 = vmatpush2.msra.mxu0 0.0
    %1395 = vmatprep.subr.mxu0 0.0
    %1396 = vmatpush2.msra.mxu0 0.0
    %1397 = vmatprep.subr.mxu0 0.0
    %1398 = vmatpush2.msra.mxu0 0.0
    %1399 = vmatprep.subr.mxu0 0.0
    %1400 = vmatpush2.msra.mxu0 0.0
    %1401 = vmatprep.subr.mxu0 0.0
    %1402 = vmatpush2.msra.mxu0 0.0
    %1403 = vmatprep.subr.mxu0 0.0
    %1404 = vmatpush2.msra.mxu0 0.0
    %1405 = vmatprep.subr.mxu0 0.0
    %1406 = vmatpush2.msra.mxu0 0.0
    %1407 = vmatprep.subr.mxu0 0.0
    %1408 = vmatpush2.msra.mxu0 0.0
    %1409 = vmatprep.subr.mxu0 0.0
    %1410 = vmatpush2.msra.mxu0 0.0
    %1411 = vmatprep.subr.mxu0 0.0
    %1412 = vmatpush2.msra.mxu0 0.0
    %1413 = vmatprep.subr.mxu0 0.0
    %1414 = vmatpush2.msra.mxu0 0.0
    %1415 = vmatprep.subr.mxu0 0.0
    %1416 = vmatpush2.msra.mxu0 0.0
    %1417 = vmatprep.subr.mxu0 0.0
    %1418 = vmatpush2.msra.mxu0 0.0
    %1419 = vmatprep.subr.mxu0 0.0
    %1420 = vmatpush2.msra.mxu0 0.0
    %1421 = vmatprep.subr.mxu0 0.0
    %1422 = vmatpush2.msra.mxu0 0.0
    %1423 = vmatprep.mubr.f32.mxu0 0.0
    %1424 = vmatmul.mubr.f32.gmra.mxu0 %v1281
    %v1425 = vpop.f32.mrf.mxu0
    %v1426 = vadd.f32 0.0, %v1425
    %v1427 = vpop.f32.mrf.mxu0
    %1428 = vdwg.mxu0
    %v1429 = vadd.f32 %v1285, %v1355
    %v1430 = vxor.u32 %v1429, 2147483648
    %v1431 = vmul.f32 %v1430, 1.442695
    %v1432 = vpow.pop %v1431
    %v1433 = vadd.f32 %v1432, 1.0
    %v1434 = vrcp.pop %v1433
    %v1435 = vmul.f32 1.0, %v1434
    %v1436 = vadd.f32 %v1286, %v1357
    %v1437 = vxor.u32 %v1436, 2147483648
    %v1438 = vmul.f32 %v1437, 1.442695
    %v1439 = vpow.pop %v1438
    %v1440 = vadd.f32 %v1439, 1.0
    %v1441 = vrcp.pop %v1440
    %v1442 = vmul.f32 1.0, %v1441
    %v1443 = vadd.f32 %v1426, %v597
    %v1444 = vmul.f32 %v1435, %v1443
    %v1445 = vadd.f32 %v1287, %v1444
    %v1446 = vtanh.pop %v1445
    %v1447 = vsub.f32 1.0, %v1442
    %v1448 = vmul.f32 %v1447, %v1446
    %v1449 = vmul.f32 %v1442, %v1281
    %v1450 = vadd.f32 %v1448, %v1449
    %s1451 = scalar_lea.vmem [#allocation3], 40
    %1452 = vst [vmem:[%s1451] sm:$0xff] %v1450
    %s1453 = scalar_lea.vmem [#allocation2], 144
    %v1454 = vld [vmem:[%s1453] sm:$0xff]
    %v1455 = vld [vmem:[%s1453 + $0x8] sm:$0xff]
    %v1456 = vld [vmem:[%s1453 + $0x10] sm:$0xff]
    %1457 = vmatprep.subr.mxu0 %v431
    %1458 = vmatpush1.msra.mxu0 %v430
    %1459 = vmatprep.subr.mxu0 %v428
    %1460 = vmatpush1.msra.mxu0 %v427
    %1461 = vmatprep.subr.mxu0 %v425
    %1462 = vmatpush1.msra.mxu0 %v424
    %1463 = vmatprep.subr.mxu0 %v422
    %1464 = vmatpush1.msra.mxu0 %v421
    %1465 = vmatprep.subr.mxu0 %v419
    %1466 = vmatpush1.msra.mxu0 %v418
    %1467 = vmatprep.subr.mxu0 %v416
    %1468 = vmatpush1.msra.mxu0 %v415
    %1469 = vmatprep.subr.mxu0 %v413
    %1470 = vmatpush1.msra.mxu0 %v412
    %1471 = vmatprep.subr.mxu0 %v410
    %1472 = vmatpush1.msra.mxu0 %v409
    %1473 = vmatprep.subr.mxu0 %v407
    %1474 = vmatpush1.msra.mxu0 %v406
    %1475 = vmatprep.subr.mxu0 %v404
    %1476 = vmatpush1.msra.mxu0 %v403
    %1477 = vmatprep.subr.mxu0 %v401
    %1478 = vmatpush1.msra.mxu0 %v400
    %1479 = vmatprep.subr.mxu0 %v398
    %1480 = vmatpush1.msra.mxu0 %v397
    %1481 = vmatprep.subr.mxu0 %v395
    %1482 = vmatpush1.msra.mxu0 %v394
    %1483 = vmatprep.subr.mxu0 %v392
    %1484 = vmatpush1.msra.mxu0 %v391
    %1485 = vmatprep.subr.mxu0 %v389
    %1486 = vmatpush1.msra.mxu0 %v388
    %1487 = vmatprep.subr.mxu0 %v386
    %1488 = vmatpush1.msra.mxu0 %v385
    %1489 = vmatprep.subr.mxu0 0.0
    %1490 = vmatpush2.msra.mxu0 0.0
    %1491 = vmatprep.subr.mxu0 0.0
    %1492 = vmatpush2.msra.mxu0 0.0
    %1493 = vmatprep.subr.mxu0 0.0
    %1494 = vmatpush2.msra.mxu0 0.0
    %1495 = vmatprep.subr.mxu0 0.0
    %1496 = vmatpush2.msra.mxu0 0.0
    %1497 = vmatprep.subr.mxu0 0.0
    %1498 = vmatpush2.msra.mxu0 0.0
    %1499 = vmatprep.subr.mxu0 0.0
    %1500 = vmatpush2.msra.mxu0 0.0
    %1501 = vmatprep.subr.mxu0 0.0
    %1502 = vmatpush2.msra.mxu0 0.0
    %1503 = vmatprep.subr.mxu0 0.0
    %1504 = vmatpush2.msra.mxu0 0.0
    %1505 = vmatprep.subr.mxu0 0.0
    %1506 = vmatpush2.msra.mxu0 0.0
    %1507 = vmatprep.subr.mxu0 0.0
    %1508 = vmatpush2.msra.mxu0 0.0
    %1509 = vmatprep.subr.mxu0 0.0
    %1510 = vmatpush2.msra.mxu0 0.0
    %1511 = vmatprep.subr.mxu0 0.0
    %1512 = vmatpush2.msra.mxu0 0.0
    %1513 = vmatprep.subr.mxu0 0.0
    %1514 = vmatpush2.msra.mxu0 0.0
    %1515 = vmatprep.subr.mxu0 0.0
    %1516 = vmatpush2.msra.mxu0 0.0
    %1517 = vmatprep.subr.mxu0 0.0
    %1518 = vmatpush2.msra.mxu0 0.0
    %1519 = vmatprep.subr.mxu0 0.0
    %1520 = vmatpush2.msra.mxu0 0.0
    %1521 = vmatprep.mubr.f32.mxu0 0.0
    %1522 = vmatmul.mubr.f32.gmra.mxu0 %v1450
    %v1523 = vpop.f32.mrf.mxu0
    %v1524 = vadd.f32 0.0, %v1523
    %v1525 = vpop.f32.mrf.mxu0
    %v1526 = vadd.f32 0.0, %v1525
    %1527 = vdwg.mxu0
    %1528 = vmatprep.subr.mxu0 0.0
    %1529 = vmatpush1.msra.mxu0 %v432
    %1530 = vmatprep.subr.mxu0 0.0
    %1531 = vmatpush1.msra.mxu0 %v429
    %1532 = vmatprep.subr.mxu0 0.0
    %1533 = vmatpush1.msra.mxu0 %v426
    %1534 = vmatprep.subr.mxu0 0.0
    %1535 = vmatpush1.msra.mxu0 %v423
    %1536 = vmatprep.subr.mxu0 0.0
    %1537 = vmatpush1.msra.mxu0 %v420
    %1538 = vmatprep.subr.mxu0 0.0
    %1539 = vmatpush1.msra.mxu0 %v417
    %1540 = vmatprep.subr.mxu0 0.0
    %1541 = vmatpush1.msra.mxu0 %v414
    %1542 = vmatprep.subr.mxu0 0.0
    %1543 = vmatpush1.msra.mxu0 %v411
    %1544 = vmatprep.subr.mxu0 0.0
    %1545 = vmatpush1.msra.mxu0 %v408
    %1546 = vmatprep.subr.mxu0 0.0
    %1547 = vmatpush1.msra.mxu0 %v405
    %1548 = vmatprep.subr.mxu0 0.0
    %1549 = vmatpush1.msra.mxu0 %v402
    %1550 = vmatprep.subr.mxu0 0.0
    %1551 = vmatpush1.msra.mxu0 %v399
    %1552 = vmatprep.subr.mxu0 0.0
    %1553 = vmatpush1.msra.mxu0 %v396
    %1554 = vmatprep.subr.mxu0 0.0
    %1555 = vmatpush1.msra.mxu0 %v393
    %1556 = vmatprep.subr.mxu0 0.0
    %1557 = vmatpush1.msra.mxu0 %v390
    %1558 = vmatprep.subr.mxu0 0.0
    %1559 = vmatpush1.msra.mxu0 %v387
    %1560 = vmatprep.subr.mxu0 0.0
    %1561 = vmatpush2.msra.mxu0 0.0
    %1562 = vmatprep.subr.mxu0 0.0
    %1563 = vmatpush2.msra.mxu0 0.0
    %1564 = vmatprep.subr.mxu0 0.0
    %1565 = vmatpush2.msra.mxu0 0.0
    %1566 = vmatprep.subr.mxu0 0.0
    %1567 = vmatpush2.msra.mxu0 0.0
    %1568 = vmatprep.subr.mxu0 0.0
    %1569 = vmatpush2.msra.mxu0 0.0
    %1570 = vmatprep.subr.mxu0 0.0
    %1571 = vmatpush2.msra.mxu0 0.0
    %1572 = vmatprep.subr.mxu0 0.0
    %1573 = vmatpush2.msra.mxu0 0.0
    %1574 = vmatprep.subr.mxu0 0.0
    %1575 = vmatpush2.msra.mxu0 0.0
    %1576 = vmatprep.subr.mxu0 0.0
    %1577 = vmatpush2.msra.mxu0 0.0
    %1578 = vmatprep.subr.mxu0 0.0
    %1579 = vmatpush2.msra.mxu0 0.0
    %1580 = vmatprep.subr.mxu0 0.0
    %1581 = vmatpush2.msra.mxu0 0.0
    %1582 = vmatprep.subr.mxu0 0.0
    %1583 = vmatpush2.msra.mxu0 0.0
    %1584 = vmatprep.subr.mxu0 0.0
    %1585 = vmatpush2.msra.mxu0 0.0
    %1586 = vmatprep.subr.mxu0 0.0
    %1587 = vmatpush2.msra.mxu0 0.0
    %1588 = vmatprep.subr.mxu0 0.0
    %1589 = vmatpush2.msra.mxu0 0.0
    %1590 = vmatprep.subr.mxu0 0.0
    %1591 = vmatpush2.msra.mxu0 0.0
    %1592 = vmatprep.mubr.f32.mxu0 0.0
    %1593 = vmatmul.mubr.f32.gmra.mxu0 %v1450
    %v1594 = vpop.f32.mrf.mxu0
    %v1595 = vadd.f32 0.0, %v1594
    %v1596 = vpop.f32.mrf.mxu0
    %1597 = vdwg.mxu0
    %v1598 = vadd.f32 %v1454, %v1524
    %v1599 = vxor.u32 %v1598, 2147483648
    %v1600 = vmul.f32 %v1599, 1.442695
    %v1601 = vpow.pop %v1600
    %v1602 = vadd.f32 %v1601, 1.0
    %v1603 = vrcp.pop %v1602
    %v1604 = vmul.f32 1.0, %v1603
    %v1605 = vadd.f32 %v1455, %v1526
    %v1606 = vxor.u32 %v1605, 2147483648
    %v1607 = vmul.f32 %v1606, 1.442695
    %v1608 = vpow.pop %v1607
    %v1609 = vadd.f32 %v1608, 1.0
    %v1610 = vrcp.pop %v1609
    %v1611 = vmul.f32 1.0, %v1610
    %v1612 = vadd.f32 %v1595, %v597
    %v1613 = vmul.f32 %v1604, %v1612
    %v1614 = vadd.f32 %v1456, %v1613
    %v1615 = vtanh.pop %v1614
    %v1616 = vsub.f32 1.0, %v1611
    %v1617 = vmul.f32 %v1616, %v1615
    %v1618 = vmul.f32 %v1611, %v1450
    %v1619 = vadd.f32 %v1617, %v1618
    %s1620 = scalar_lea.vmem [#allocation3], 48
    %1621 = vst [vmem:[%s1620] sm:$0xff] %v1619
    %s1622 = scalar_lea.vmem [#allocation2], 168
    %v1623 = vld [vmem:[%s1622] sm:$0xff]
    %v1624 = vld [vmem:[%s1622 + $0x8] sm:$0xff]
    %v1625 = vld [vmem:[%s1622 + $0x10] sm:$0xff]
    %1626 = vmatprep.subr.mxu0 %v431
    %1627 = vmatpush1.msra.mxu0 %v430
    %1628 = vmatprep.subr.mxu0 %v428
    %1629 = vmatpush1.msra.mxu0 %v427
    %1630 = vmatprep.subr.mxu0 %v425
    %1631 = vmatpush1.msra.mxu0 %v424
    %1632 = vmatprep.subr.mxu0 %v422
    %1633 = vmatpush1.msra.mxu0 %v421
    %1634 = vmatprep.subr.mxu0 %v419
    %1635 = vmatpush1.msra.mxu0 %v418
    %1636 = vmatprep.subr.mxu0 %v416
    %1637 = vmatpush1.msra.mxu0 %v415
    %1638 = vmatprep.subr.mxu0 %v413
    %1639 = vmatpush1.msra.mxu0 %v412
    %1640 = vmatprep.subr.mxu0 %v410
    %1641 = vmatpush1.msra.mxu0 %v409
    %1642 = vmatprep.subr.mxu0 %v407
    %1643 = vmatpush1.msra.mxu0 %v406
    %1644 = vmatprep.subr.mxu0 %v404
    %1645 = vmatpush1.msra.mxu0 %v403
    %1646 = vmatprep.subr.mxu0 %v401
    %1647 = vmatpush1.msra.mxu0 %v400
    %1648 = vmatprep.subr.mxu0 %v398
    %1649 = vmatpush1.msra.mxu0 %v397
    %1650 = vmatprep.subr.mxu0 %v395
    %1651 = vmatpush1.msra.mxu0 %v394
    %1652 = vmatprep.subr.mxu0 %v392
    %1653 = vmatpush1.msra.mxu0 %v391
    %1654 = vmatprep.subr.mxu0 %v389
    %1655 = vmatpush1.msra.mxu0 %v388
    %1656 = vmatprep.subr.mxu0 %v386
    %1657 = vmatpush1.msra.mxu0 %v385
    %1658 = vmatprep.subr.mxu0 0.0
    %1659 = vmatpush2.msra.mxu0 0.0
    %1660 = vmatprep.subr.mxu0 0.0
    %1661 = vmatpush2.msra.mxu0 0.0
    %1662 = vmatprep.subr.mxu0 0.0
    %1663 = vmatpush2.msra.mxu0 0.0
    %1664 = vmatprep.subr.mxu0 0.0
    %1665 = vmatpush2.msra.mxu0 0.0
    %1666 = vmatprep.subr.mxu0 0.0
    %1667 = vmatpush2.msra.mxu0 0.0
    %1668 = vmatprep.subr.mxu0 0.0
    %1669 = vmatpush2.msra.mxu0 0.0
    %1670 = vmatprep.subr.mxu0 0.0
    %1671 = vmatpush2.msra.mxu0 0.0
    %1672 = vmatprep.subr.mxu0 0.0
    %1673 = vmatpush2.msra.mxu0 0.0
    %1674 = vmatprep.subr.mxu0 0.0
    %1675 = vmatpush2.msra.mxu0 0.0
    %1676 = vmatprep.subr.mxu0 0.0
    %1677 = vmatpush2.msra.mxu0 0.0
    %1678 = vmatprep.subr.mxu0 0.0
    %1679 = vmatpush2.msra.mxu0 0.0
    %1680 = vmatprep.subr.mxu0 0.0
    %1681 = vmatpush2.msra.mxu0 0.0
    %1682 = vmatprep.subr.mxu0 0.0
    %1683 = vmatpush2.msra.mxu0 0.0
    %1684 = vmatprep.subr.mxu0 0.0
    %1685 = vmatpush2.msra.mxu0 0.0
    %1686 = vmatprep.subr.mxu0 0.0
    %1687 = vmatpush2.msra.mxu0 0.0
    %1688 = vmatprep.subr.mxu0 0.0
    %1689 = vmatpush2.msra.mxu0 0.0
    %1690 = vmatprep.mubr.f32.mxu0 0.0
    %1691 = vmatmul.mubr.f32.gmra.mxu0 %v1619
    %v1692 = vpop.f32.mrf.mxu0
    %v1693 = vadd.f32 0.0, %v1692
    %v1694 = vpop.f32.mrf.mxu0
    %v1695 = vadd.f32 0.0, %v1694
    %1696 = vdwg.mxu0
    %1697 = vmatprep.subr.mxu0 0.0
    %1698 = vmatpush1.msra.mxu0 %v432
    %1699 = vmatprep.subr.mxu0 0.0
    %1700 = vmatpush1.msra.mxu0 %v429
    %1701 = vmatprep.subr.mxu0 0.0
    %1702 = vmatpush1.msra.mxu0 %v426
    %1703 = vmatprep.subr.mxu0 0.0
    %1704 = vmatpush1.msra.mxu0 %v423
    %1705 = vmatprep.subr.mxu0 0.0
    %1706 = vmatpush1.msra.mxu0 %v420
    %1707 = vmatprep.subr.mxu0 0.0
    %1708 = vmatpush1.msra.mxu0 %v417
    %1709 = vmatprep.subr.mxu0 0.0
    %1710 = vmatpush1.msra.mxu0 %v414
    %1711 = vmatprep.subr.mxu0 0.0
    %1712 = vmatpush1.msra.mxu0 %v411
    %1713 = vmatprep.subr.mxu0 0.0
    %1714 = vmatpush1.msra.mxu0 %v408
    %1715 = vmatprep.subr.mxu0 0.0
    %1716 = vmatpush1.msra.mxu0 %v405
    %1717 = vmatprep.subr.mxu0 0.0
    %1718 = vmatpush1.msra.mxu0 %v402
    %1719 = vmatprep.subr.mxu0 0.0
    %1720 = vmatpush1.msra.mxu0 %v399
    %1721 = vmatprep.subr.mxu0 0.0
    %1722 = vmatpush1.msra.mxu0 %v396
    %1723 = vmatprep.subr.mxu0 0.0
    %1724 = vmatpush1.msra.mxu0 %v393
    %1725 = vmatprep.subr.mxu0 0.0
    %1726 = vmatpush1.msra.mxu0 %v390
    %1727 = vmatprep.subr.mxu0 0.0
    %1728 = vmatpush1.msra.mxu0 %v387
    %1729 = vmatprep.subr.mxu0 0.0
    %1730 = vmatpush2.msra.mxu0 0.0
    %1731 = vmatprep.subr.mxu0 0.0
    %1732 = vmatpush2.msra.mxu0 0.0
    %1733 = vmatprep.subr.mxu0 0.0
    %1734 = vmatpush2.msra.mxu0 0.0
    %1735 = vmatprep.subr.mxu0 0.0
    %1736 = vmatpush2.msra.mxu0 0.0
    %1737 = vmatprep.subr.mxu0 0.0
    %1738 = vmatpush2.msra.mxu0 0.0
    %1739 = vmatprep.subr.mxu0 0.0
    %1740 = vmatpush2.msra.mxu0 0.0
    %1741 = vmatprep.subr.mxu0 0.0
    %1742 = vmatpush2.msra.mxu0 0.0
    %1743 = vmatprep.subr.mxu0 0.0
    %1744 = vmatpush2.msra.mxu0 0.0
    %1745 = vmatprep.subr.mxu0 0.0
    %1746 = vmatpush2.msra.mxu0 0.0
    %1747 = vmatprep.subr.mxu0 0.0
    %1748 = vmatpush2.msra.mxu0 0.0
    %1749 = vmatprep.subr.mxu0 0.0
    %1750 = vmatpush2.msra.mxu0 0.0
    %1751 = vmatprep.subr.mxu0 0.0
    %1752 = vmatpush2.msra.mxu0 0.0
    %1753 = vmatprep.subr.mxu0 0.0
    %1754 = vmatpush2.msra.mxu0 0.0
    %1755 = vmatprep.subr.mxu0 0.0
    %1756 = vmatpush2.msra.mxu0 0.0
    %1757 = vmatprep.subr.mxu0 0.0
    %1758 = vmatpush2.msra.mxu0 0.0
    %1759 = vmatprep.subr.mxu0 0.0
    %1760 = vmatpush2.msra.mxu0 0.0
    %1761 = vmatprep.mubr.f32.mxu0 0.0
    %1762 = vmatmul.mubr.f32.gmra.mxu0 %v1619
    %v1763 = vpop.f32.mrf.mxu0
    %v1764 = vadd.f32 0.0, %v1763
    %v1765 = vpop.f32.mrf.mxu0
    %1766 = vdwg.mxu0
    %v1767 = vadd.f32 %v1623, %v1693
    %v1768 = vxor.u32 %v1767, 2147483648
    %v1769 = vmul.f32 %v1768, 1.442695
    %v1770 = vpow.pop %v1769
    %v1771 = vadd.f32 %v1770, 1.0
    %v1772 = vrcp.pop %v1771
    %v1773 = vmul.f32 1.0, %v1772
    %v1774 = vadd.f32 %v1624, %v1695
    %v1775 = vxor.u32 %v1774, 2147483648
    %v1776 = vmul.f32 %v1775, 1.442695
    %v1777 = vpow.pop %v1776
    %v1778 = vadd.f32 %v1777, 1.0
    %v1779 = vrcp.pop %v1778
    %v1780 = vmul.f32 1.0, %v1779
    %v1781 = vadd.f32 %v1764, %v597
    %v1782 = vmul.f32 %v1773, %v1781
    %v1783 = vadd.f32 %v1625, %v1782
    %v1784 = vtanh.pop %v1783
    %v1785 = vsub.f32 1.0, %v1780
    %v1786 = vmul.f32 %v1785, %v1784
    %v1787 = vmul.f32 %v1780, %v1619
    %v1788 = vadd.f32 %v1786, %v1787
    %s1789 = scalar_lea.vmem [#allocation3], 56
    %1790 = vst [vmem:[%s1789] sm:$0xff] %v1788
    %1791 = vst [vmem:[#allocation4] sm:$0xff] %v1788
    %v1792 = vld [vmem:[#allocation3] sm:$0xff]
    %v1793 = vld [vmem:[#allocation3 + $0x8] sm:$0xff]
    %v1794 = vld [vmem:[#allocation3 + $0x10] sm:$0xff]
    %v1795 = vld [vmem:[#allocation3 + $0x18] sm:$0xff]
    %v1796 = vld [vmem:[#allocation3 + $0x20] sm:$0xff]
    %v1797 = vld [vmem:[#allocation3 + $0x28] sm:$0xff]
    %v1798 = vld [vmem:[#allocation3 + $0x30] sm:$0xff]
    %v1799 = vld [vmem:[#allocation3 + $0x38] sm:$0xff]
    %v1800 = vld [vmem:[#allocation11] sm:$0xff]
    %v1801 = vld [vmem:[#allocation11 + $0x8] sm:$0xff]
    %v1802 = vld [vmem:[#allocation11 + $0x10] sm:$0xff]
    %v1803 = vld [vmem:[#allocation11 + $0x18] sm:$0xff]
    %v1804 = vld [vmem:[#allocation11 + $0x20] sm:$0xff]
    %v1805 = vld [vmem:[#allocation11 + $0x28] sm:$0xff]
    %v1806 = vld [vmem:[#allocation11 + $0x30] sm:$0xff]
    %v1807 = vld [vmem:[#allocation11 + $0x38] sm:$0xff]
    %v1808 = vld [vmem:[#allocation11 + $0x40] sm:$0xff]
    %v1809 = vld [vmem:[#allocation11 + $0x48] sm:$0xff]
    %v1810 = vld [vmem:[#allocation11 + $0x50] sm:$0xff]
    %v1811 = vld [vmem:[#allocation11 + $0x58] sm:$0xff]
    %v1812 = vld [vmem:[#allocation11 + $0x60] sm:$0xff]
    %v1813 = vld [vmem:[#allocation11 + $0x68] sm:$0xff]
    %v1814 = vld [vmem:[#allocation11 + $0x70] sm:$0xff]
    %v1815 = vld [vmem:[#allocation11 + $0x78] sm:$0xff]
    %v1816 = vld [vmem:[%s6] sm:$0x1]
    %v1818 = vlaneseq
    %v1819 = vshrl.u32 %v1818, 7
    %v1820 = vsub.s32 0, %v1819
    %v1821 = vrot.slane %v1816, %v1820
    %1823 = vmatprep.subr.mxu0 0.0
    %1824 = vmatpush1.msra.mxu0 %v1815
    %1825 = vmatprep.subr.mxu0 0.0
    %1826 = vmatpush1.msra.mxu0 %v1814
    %1827 = vmatprep.subr.mxu0 0.0
    %1828 = vmatpush1.msra.mxu0 %v1813
    %1829 = vmatprep.subr.mxu0 0.0
    %1830 = vmatpush1.msra.mxu0 %v1812
    %1831 = vmatprep.subr.mxu0 0.0
    %1832 = vmatpush1.msra.mxu0 %v1811
    %1833 = vmatprep.subr.mxu0 0.0
    %1834 = vmatpush1.msra.mxu0 %v1810
    %1835 = vmatprep.subr.mxu0 0.0
    %1836 = vmatpush1.msra.mxu0 %v1809
    %1837 = vmatprep.subr.mxu0 0.0
    %1838 = vmatpush1.msra.mxu0 %v1808
    %1839 = vmatprep.subr.mxu0 0.0
    %1840 = vmatpush1.msra.mxu0 %v1807
    %1841 = vmatprep.subr.mxu0 0.0
    %1842 = vmatpush1.msra.mxu0 %v1806
    %1843 = vmatprep.subr.mxu0 0.0
    %1844 = vmatpush1.msra.mxu0 %v1805
    %1845 = vmatprep.subr.mxu0 0.0
    %1846 = vmatpush1.msra.mxu0 %v1804
    %1847 = vmatprep.subr.mxu0 0.0
    %1848 = vmatpush1.msra.mxu0 %v1803
    %1849 = vmatprep.subr.mxu0 0.0
    %1850 = vmatpush1.msra.mxu0 %v1802
    %1851 = vmatprep.subr.mxu0 0.0
    %1852 = vmatpush1.msra.mxu0 %v1801
    %1853 = vmatprep.subr.mxu0 0.0
    %1854 = vmatpush1.msra.mxu0 %v1800
    %1855 = vmatprep.subr.mxu0 0.0
    %1856 = vmatpush2.msra.mxu0 0.0
    %1857 = vmatprep.subr.mxu0 0.0
    %1858 = vmatpush2.msra.mxu0 0.0
    %1859 = vmatprep.subr.mxu0 0.0
    %1860 = vmatpush2.msra.mxu0 0.0
    %1861 = vmatprep.subr.mxu0 0.0
    %1862 = vmatpush2.msra.mxu0 0.0
    %1863 = vmatprep.subr.mxu0 0.0
    %1864 = vmatpush2.msra.mxu0 0.0
    %1865 = vmatprep.subr.mxu0 0.0
    %1866 = vmatpush2.msra.mxu0 0.0
    %1867 = vmatprep.subr.mxu0 0.0
    %1868 = vmatpush2.msra.mxu0 0.0
    %1869 = vmatprep.subr.mxu0 0.0
    %1870 = vmatpush2.msra.mxu0 0.0
    %1871 = vmatprep.subr.mxu0 0.0
    %1872 = vmatpush2.msra.mxu0 0.0
    %1873 = vmatprep.subr.mxu0 0.0
    %1874 = vmatpush2.msra.mxu0 0.0
    %1875 = vmatprep.subr.mxu0 0.0
    %1876 = vmatpush2.msra.mxu0 0.0
    %1877 = vmatprep.subr.mxu0 0.0
    %1878 = vmatpush2.msra.mxu0 0.0
    %1879 = vmatprep.subr.mxu0 0.0
    %1880 = vmatpush2.msra.mxu0 0.0
    %1881 = vmatprep.subr.mxu0 0.0
    %1882 = vmatpush2.msra.mxu0 0.0
    %1883 = vmatprep.subr.mxu0 0.0
    %1884 = vmatpush2.msra.mxu0 0.0
    %1885 = vmatprep.subr.mxu0 0.0
    %1886 = vmatpush2.msra.mxu0 0.0
    %1887 = vmatprep.mubr.f32.mxu0 0.0
    %1888 = vmatmul.mubr.f32.gmra.mxu0 %v1792
    %v1889 = vpop.f32.mrf.mxu0
    %v1890 = vadd.f32 %v1821, %v1889
    %v1891 = vpop.f32.mrf.mxu0
    %1892 = vmatprep.mubr.f32.mxu0 0.0
    %1893 = vmatmul.mubr.f32.gmra.mxu0 %v1793
    %v1894 = vpop.f32.mrf.mxu0
    %v1895 = vadd.f32 %v1821, %v1894
    %v1896 = vpop.f32.mrf.mxu0
    %1897 = vmatprep.mubr.f32.mxu0 0.0
    %1898 = vmatmul.mubr.f32.gmra.mxu0 %v1794
    %v1899 = vpop.f32.mrf.mxu0
    %v1900 = vadd.f32 %v1821, %v1899
    %v1901 = vpop.f32.mrf.mxu0
    %1902 = vmatprep.mubr.f32.mxu0 0.0
    %1903 = vmatmul.mubr.f32.gmra.mxu0 %v1795
    %v1904 = vpop.f32.mrf.mxu0
    %v1905 = vadd.f32 %v1821, %v1904
    %v1906 = vpop.f32.mrf.mxu0
    %1907 = vmatprep.mubr.f32.mxu0 0.0
    %1908 = vmatmul.mubr.f32.gmra.mxu0 %v1796
    %v1909 = vpop.f32.mrf.mxu0
    %v1910 = vadd.f32 %v1821, %v1909
    %v1911 = vpop.f32.mrf.mxu0
    %1912 = vmatprep.mubr.f32.mxu0 0.0
    %1913 = vmatmul.mubr.f32.gmra.mxu0 %v1797
    %v1914 = vpop.f32.mrf.mxu0
    %v1915 = vadd.f32 %v1821, %v1914
    %v1916 = vpop.f32.mrf.mxu0
    %1917 = vmatprep.mubr.f32.mxu0 0.0
    %1918 = vmatmul.mubr.f32.gmra.mxu0 %v1798
    %v1919 = vpop.f32.mrf.mxu0
    %v1920 = vadd.f32 %v1821, %v1919
    %v1921 = vpop.f32.mrf.mxu0
    %1922 = vmatprep.mubr.f32.mxu0 0.0
    %1923 = vmatmul.mubr.f32.gmra.mxu0 %v1799
    %v1924 = vpop.f32.mrf.mxu0
    %v1925 = vadd.f32 %v1821, %v1924
    %v1926 = vpop.f32.mrf.mxu0
    %1927 = vdwg.mxu0
    %v1929 = vcombine.high %v1890, %v1890
    %v1931 = vunpack.c.l.s4 1966171168
    %v1932 = vunpack.c.0.s8 %v1931
    %v1933 = vlaneseq
    %v1934 = vshrl.u32 %v1933, 7
    %v1935 = vsub.s32 %v1932, %v1934
    %v1936 = vrot.slane %v1890, %v1935
    %v1938 = vunpack.c.l.s4 1966171168
    %v1939 = vunpack.c.0.s8 %v1938
    %v1940 = vlaneseq
    %v1941 = vshrl.u32 %v1940, 7
    %v1942 = vsub.s32 %v1939, %v1941
    %v1943 = vrot.slane %v1929, %v1942
    %v1944 = vcombine.high %v1936, %v1936
    %v1945 = vcombine.high %v1943, %v1943
    %v1947 = vunpack.c.l.s4 1966171168
    %v1948 = vunpack.c.0.s8 %v1947
    %v1949 = vlaneseq
    %v1950 = vshrl.u32 %v1949, 7
    %v1951 = vsub.s32 %v1948, %v1950
    %v1952 = vrot.slane %v1936, %v1951
    %v1954 = vunpack.c.l.s4 1966171168
    %v1955 = vunpack.c.0.s8 %v1954
    %v1956 = vlaneseq
    %v1957 = vshrl.u32 %v1956, 7
    %v1958 = vsub.s32 %v1955, %v1957
    %v1959 = vrot.slane %v1943, %v1958
    %v1961 = vunpack.c.l.s4 1966171168
    %v1962 = vunpack.c.0.s8 %v1961
    %v1963 = vlaneseq
    %v1964 = vshrl.u32 %v1963, 7
    %v1965 = vsub.s32 %v1962, %v1964
    %v1966 = vrot.slane %v1944, %v1965
    %v1968 = vunpack.c.l.s4 1966171168
    %v1969 = vunpack.c.0.s8 %v1968
    %v1970 = vlaneseq
    %v1971 = vshrl.u32 %v1970, 7
    %v1972 = vsub.s32 %v1969, %v1971
    %v1973 = vrot.slane %v1945, %v1972
    %v1974 = vcombine.high %v1952, %v1952
    %v1975 = vcombine.high %v1959, %v1959
    %v1976 = vcombine.high %v1966, %v1966
    %v1977 = vcombine.high %v1973, %v1973
    %1986 = vst [vmem:[#allocation13] sm:$0x1] %v1952
    %1987 = vst [vmem:[#allocation13 + $0x8] sm:$0x1] %v1966
    %1988 = vst [vmem:[#allocation13 + $0x10] sm:$0x1] %v1974
    %1989 = vst [vmem:[#allocation13 + $0x18] sm:$0x1] %v1976
    %1990 = vst [vmem:[#allocation13 + $0x20] sm:$0x1] %v1959
    %1991 = vst [vmem:[#allocation13 + $0x28] sm:$0x1] %v1973
    %1992 = vst [vmem:[#allocation13 + $0x30] sm:$0x1] %v1975
    %1993 = vst [vmem:[#allocation13 + $0x38] sm:$0x1] %v1977
    %v1995 = vcombine.high %v1895, %v1895
    %v1997 = vunpack.c.l.s4 1966171168
    %v1998 = vunpack.c.0.s8 %v1997
    %v1999 = vlaneseq
    %v2000 = vshrl.u32 %v1999, 7
    %v2001 = vsub.s32 %v1998, %v2000
    %v2002 = vrot.slane %v1895, %v2001
    %v2004 = vunpack.c.l.s4 1966171168
    %v2005 = vunpack.c.0.s8 %v2004
    %v2006 = vlaneseq
    %v2007 = vshrl.u32 %v2006, 7
    %v2008 = vsub.s32 %v2005, %v2007
    %v2009 = vrot.slane %v1995, %v2008
    %v2010 = vcombine.high %v2002, %v2002
    %v2011 = vcombine.high %v2009, %v2009
    %v2013 = vunpack.c.l.s4 1966171168
    %v2014 = vunpack.c.0.s8 %v2013
    %v2015 = vlaneseq
    %v2016 = vshrl.u32 %v2015, 7
    %v2017 = vsub.s32 %v2014, %v2016
    %v2018 = vrot.slane %v2002, %v2017
    %v2020 = vunpack.c.l.s4 1966171168
    %v2021 = vunpack.c.0.s8 %v2020
    %v2022 = vlaneseq
    %v2023 = vshrl.u32 %v2022, 7
    %v2024 = vsub.s32 %v2021, %v2023
    %v2025 = vrot.slane %v2009, %v2024
    %v2027 = vunpack.c.l.s4 1966171168
    %v2028 = vunpack.c.0.s8 %v2027
    %v2029 = vlaneseq
    %v2030 = vshrl.u32 %v2029, 7
    %v2031 = vsub.s32 %v2028, %v2030
    %v2032 = vrot.slane %v2010, %v2031
    %v2034 = vunpack.c.l.s4 1966171168
    %v2035 = vunpack.c.0.s8 %v2034
    %v2036 = vlaneseq
    %v2037 = vshrl.u32 %v2036, 7
    %v2038 = vsub.s32 %v2035, %v2037
    %v2039 = vrot.slane %v2011, %v2038
    %v2040 = vcombine.high %v2018, %v2018
    %v2041 = vcombine.high %v2025, %v2025
    %v2042 = vcombine.high %v2032, %v2032
    %v2043 = vcombine.high %v2039, %v2039
    %2052 = vst [vmem:[#allocation13 + $0x1] sm:$0x1] %v2018
    %2053 = vst [vmem:[#allocation13 + $0x9] sm:$0x1] %v2032
    %2054 = vst [vmem:[#allocation13 + $0x11] sm:$0x1] %v2040
    %2055 = vst [vmem:[#allocation13 + $0x19] sm:$0x1] %v2042
    %2056 = vst [vmem:[#allocation13 + $0x21] sm:$0x1] %v2025
    %2057 = vst [vmem:[#allocation13 + $0x29] sm:$0x1] %v2039
    %2058 = vst [vmem:[#allocation13 + $0x31] sm:$0x1] %v2041
    %2059 = vst [vmem:[#allocation13 + $0x39] sm:$0x1] %v2043
    %v2061 = vcombine.high %v1900, %v1900
    %v2063 = vunpack.c.l.s4 1966171168
    %v2064 = vunpack.c.0.s8 %v2063
    %v2065 = vlaneseq
    %v2066 = vshrl.u32 %v2065, 7
    %v2067 = vsub.s32 %v2064, %v2066
    %v2068 = vrot.slane %v1900, %v2067
    %v2070 = vunpack.c.l.s4 1966171168
    %v2071 = vunpack.c.0.s8 %v2070
    %v2072 = vlaneseq
    %v2073 = vshrl.u32 %v2072, 7
    %v2074 = vsub.s32 %v2071, %v2073
    %v2075 = vrot.slane %v2061, %v2074
    %v2076 = vcombine.high %v2068, %v2068
    %v2077 = vcombine.high %v2075, %v2075
    %v2079 = vunpack.c.l.s4 1966171168
    %v2080 = vunpack.c.0.s8 %v2079
    %v2081 = vlaneseq
    %v2082 = vshrl.u32 %v2081, 7
    %v2083 = vsub.s32 %v2080, %v2082
    %v2084 = vrot.slane %v2068, %v2083
    %v2086 = vunpack.c.l.s4 1966171168
    %v2087 = vunpack.c.0.s8 %v2086
    %v2088 = vlaneseq
    %v2089 = vshrl.u32 %v2088, 7
    %v2090 = vsub.s32 %v2087, %v2089
    %v2091 = vrot.slane %v2075, %v2090
    %v2093 = vunpack.c.l.s4 1966171168
    %v2094 = vunpack.c.0.s8 %v2093
    %v2095 = vlaneseq
    %v2096 = vshrl.u32 %v2095, 7
    %v2097 = vsub.s32 %v2094, %v2096
    %v2098 = vrot.slane %v2076, %v2097
    %v2100 = vunpack.c.l.s4 1966171168
    %v2101 = vunpack.c.0.s8 %v2100
    %v2102 = vlaneseq
    %v2103 = vshrl.u32 %v2102, 7
    %v2104 = vsub.s32 %v2101, %v2103
    %v2105 = vrot.slane %v2077, %v2104
    %v2106 = vcombine.high %v2084, %v2084
    %v2107 = vcombine.high %v2091, %v2091
    %v2108 = vcombine.high %v2098, %v2098
    %v2109 = vcombine.high %v2105, %v2105
    %2118 = vst [vmem:[#allocation13 + $0x2] sm:$0x1] %v2084
    %2119 = vst [vmem:[#allocation13 + $0xa] sm:$0x1] %v2098
    %2120 = vst [vmem:[#allocation13 + $0x12] sm:$0x1] %v2106
    %2121 = vst [vmem:[#allocation13 + $0x1a] sm:$0x1] %v2108
    %2122 = vst [vmem:[#allocation13 + $0x22] sm:$0x1] %v2091
    %2123 = vst [vmem:[#allocation13 + $0x2a] sm:$0x1] %v2105
    %2124 = vst [vmem:[#allocation13 + $0x32] sm:$0x1] %v2107
    %2125 = vst [vmem:[#allocation13 + $0x3a] sm:$0x1] %v2109
    %v2127 = vcombine.high %v1905, %v1905
    %v2129 = vunpack.c.l.s4 1966171168
    %v2130 = vunpack.c.0.s8 %v2129
    %v2131 = vlaneseq
    %v2132 = vshrl.u32 %v2131, 7
    %v2133 = vsub.s32 %v2130, %v2132
    %v2134 = vrot.slane %v1905, %v2133
    %v2136 = vunpack.c.l.s4 1966171168
    %v2137 = vunpack.c.0.s8 %v2136
    %v2138 = vlaneseq
    %v2139 = vshrl.u32 %v2138, 7
    %v2140 = vsub.s32 %v2137, %v2139
    %v2141 = vrot.slane %v2127, %v2140
    %v2142 = vcombine.high %v2134, %v2134
    %v2143 = vcombine.high %v2141, %v2141
    %v2145 = vunpack.c.l.s4 1966171168
    %v2146 = vunpack.c.0.s8 %v2145
    %v2147 = vlaneseq
    %v2148 = vshrl.u32 %v2147, 7
    %v2149 = vsub.s32 %v2146, %v2148
    %v2150 = vrot.slane %v2134, %v2149
    %v2152 = vunpack.c.l.s4 1966171168
    %v2153 = vunpack.c.0.s8 %v2152
    %v2154 = vlaneseq
    %v2155 = vshrl.u32 %v2154, 7
    %v2156 = vsub.s32 %v2153, %v2155
    %v2157 = vrot.slane %v2141, %v2156
    %v2159 = vunpack.c.l.s4 1966171168
    %v2160 = vunpack.c.0.s8 %v2159
    %v2161 = vlaneseq
    %v2162 = vshrl.u32 %v2161, 7
    %v2163 = vsub.s32 %v2160, %v2162
    %v2164 = vrot.slane %v2142, %v2163
    %v2166 = vunpack.c.l.s4 1966171168
    %v2167 = vunpack.c.0.s8 %v2166
    %v2168 = vlaneseq
    %v2169 = vshrl.u32 %v2168, 7
    %v2170 = vsub.s32 %v2167, %v2169
    %v2171 = vrot.slane %v2143, %v2170
    %v2172 = vcombine.high %v2150, %v2150
    %v2173 = vcombine.high %v2157, %v2157
    %v2174 = vcombine.high %v2164, %v2164
    %v2175 = vcombine.high %v2171, %v2171
    %2184 = vst [vmem:[#allocation13 + $0x3] sm:$0x1] %v2150
    %2185 = vst [vmem:[#allocation13 + $0xb] sm:$0x1] %v2164
    %2186 = vst [vmem:[#allocation13 + $0x13] sm:$0x1] %v2172
    %2187 = vst [vmem:[#allocation13 + $0x1b] sm:$0x1] %v2174
    %2188 = vst [vmem:[#allocation13 + $0x23] sm:$0x1] %v2157
    %2189 = vst [vmem:[#allocation13 + $0x2b] sm:$0x1] %v2171
    %2190 = vst [vmem:[#allocation13 + $0x33] sm:$0x1] %v2173
    %2191 = vst [vmem:[#allocation13 + $0x3b] sm:$0x1] %v2175
    %v2193 = vcombine.high %v1910, %v1910
    %v2195 = vunpack.c.l.s4 1966171168
    %v2196 = vunpack.c.0.s8 %v2195
    %v2197 = vlaneseq
    %v2198 = vshrl.u32 %v2197, 7
    %v2199 = vsub.s32 %v2196, %v2198
    %v2200 = vrot.slane %v1910, %v2199
    %v2202 = vunpack.c.l.s4 1966171168
    %v2203 = vunpack.c.0.s8 %v2202
    %v2204 = vlaneseq
    %v2205 = vshrl.u32 %v2204, 7
    %v2206 = vsub.s32 %v2203, %v2205
    %v2207 = vrot.slane %v2193, %v2206
    %v2208 = vcombine.high %v2200, %v2200
    %v2209 = vcombine.high %v2207, %v2207
    %v2211 = vunpack.c.l.s4 1966171168
    %v2212 = vunpack.c.0.s8 %v2211
    %v2213 = vlaneseq
    %v2214 = vshrl.u32 %v2213, 7
    %v2215 = vsub.s32 %v2212, %v2214
    %v2216 = vrot.slane %v2200, %v2215
    %v2218 = vunpack.c.l.s4 1966171168
    %v2219 = vunpack.c.0.s8 %v2218
    %v2220 = vlaneseq
    %v2221 = vshrl.u32 %v2220, 7
    %v2222 = vsub.s32 %v2219, %v2221
    %v2223 = vrot.slane %v2207, %v2222
    %v2225 = vunpack.c.l.s4 1966171168
    %v2226 = vunpack.c.0.s8 %v2225
    %v2227 = vlaneseq
    %v2228 = vshrl.u32 %v2227, 7
    %v2229 = vsub.s32 %v2226, %v2228
    %v2230 = vrot.slane %v2208, %v2229
    %v2232 = vunpack.c.l.s4 1966171168
    %v2233 = vunpack.c.0.s8 %v2232
    %v2234 = vlaneseq
    %v2235 = vshrl.u32 %v2234, 7
    %v2236 = vsub.s32 %v2233, %v2235
    %v2237 = vrot.slane %v2209, %v2236
    %v2238 = vcombine.high %v2216, %v2216
    %v2239 = vcombine.high %v2223, %v2223
    %v2240 = vcombine.high %v2230, %v2230
    %v2241 = vcombine.high %v2237, %v2237
    %2250 = vst [vmem:[#allocation13 + $0x4] sm:$0x1] %v2216
    %2251 = vst [vmem:[#allocation13 + $0xc] sm:$0x1] %v2230
    %2252 = vst [vmem:[#allocation13 + $0x14] sm:$0x1] %v2238
    %2253 = vst [vmem:[#allocation13 + $0x1c] sm:$0x1] %v2240
    %2254 = vst [vmem:[#allocation13 + $0x24] sm:$0x1] %v2223
    %2255 = vst [vmem:[#allocation13 + $0x2c] sm:$0x1] %v2237
    %2256 = vst [vmem:[#allocation13 + $0x34] sm:$0x1] %v2239
    %2257 = vst [vmem:[#allocation13 + $0x3c] sm:$0x1] %v2241
    %v2259 = vcombine.high %v1915, %v1915
    %v2261 = vunpack.c.l.s4 1966171168
    %v2262 = vunpack.c.0.s8 %v2261
    %v2263 = vlaneseq
    %v2264 = vshrl.u32 %v2263, 7
    %v2265 = vsub.s32 %v2262, %v2264
    %v2266 = vrot.slane %v1915, %v2265
    %v2268 = vunpack.c.l.s4 1966171168
    %v2269 = vunpack.c.0.s8 %v2268
    %v2270 = vlaneseq
    %v2271 = vshrl.u32 %v2270, 7
    %v2272 = vsub.s32 %v2269, %v2271
    %v2273 = vrot.slane %v2259, %v2272
    %v2274 = vcombine.high %v2266, %v2266
    %v2275 = vcombine.high %v2273, %v2273
    %v2277 = vunpack.c.l.s4 1966171168
    %v2278 = vunpack.c.0.s8 %v2277
    %v2279 = vlaneseq
    %v2280 = vshrl.u32 %v2279, 7
    %v2281 = vsub.s32 %v2278, %v2280
    %v2282 = vrot.slane %v2266, %v2281
    %v2284 = vunpack.c.l.s4 1966171168
    %v2285 = vunpack.c.0.s8 %v2284
    %v2286 = vlaneseq
    %v2287 = vshrl.u32 %v2286, 7
    %v2288 = vsub.s32 %v2285, %v2287
    %v2289 = vrot.slane %v2273, %v2288
    %v2291 = vunpack.c.l.s4 1966171168
    %v2292 = vunpack.c.0.s8 %v2291
    %v2293 = vlaneseq
    %v2294 = vshrl.u32 %v2293, 7
    %v2295 = vsub.s32 %v2292, %v2294
    %v2296 = vrot.slane %v2274, %v2295
    %v2298 = vunpack.c.l.s4 1966171168
    %v2299 = vunpack.c.0.s8 %v2298
    %v2300 = vlaneseq
    %v2301 = vshrl.u32 %v2300, 7
    %v2302 = vsub.s32 %v2299, %v2301
    %v2303 = vrot.slane %v2275, %v2302
    %v2304 = vcombine.high %v2282, %v2282
    %v2305 = vcombine.high %v2289, %v2289
    %v2306 = vcombine.high %v2296, %v2296
    %v2307 = vcombine.high %v2303, %v2303
    %2316 = vst [vmem:[#allocation13 + $0x5] sm:$0x1] %v2282
    %2317 = vst [vmem:[#allocation13 + $0xd] sm:$0x1] %v2296
    %2318 = vst [vmem:[#allocation13 + $0x15] sm:$0x1] %v2304
    %2319 = vst [vmem:[#allocation13 + $0x1d] sm:$0x1] %v2306
    %2320 = vst [vmem:[#allocation13 + $0x25] sm:$0x1] %v2289
    %2321 = vst [vmem:[#allocation13 + $0x2d] sm:$0x1] %v2303
    %2322 = vst [vmem:[#allocation13 + $0x35] sm:$0x1] %v2305
    %2323 = vst [vmem:[#allocation13 + $0x3d] sm:$0x1] %v2307
    %v2325 = vcombine.high %v1920, %v1920
    %v2327 = vunpack.c.l.s4 1966171168
    %v2328 = vunpack.c.0.s8 %v2327
    %v2329 = vlaneseq
    %v2330 = vshrl.u32 %v2329, 7
    %v2331 = vsub.s32 %v2328, %v2330
    %v2332 = vrot.slane %v1920, %v2331
    %v2334 = vunpack.c.l.s4 1966171168
    %v2335 = vunpack.c.0.s8 %v2334
    %v2336 = vlaneseq
    %v2337 = vshrl.u32 %v2336, 7
    %v2338 = vsub.s32 %v2335, %v2337
    %v2339 = vrot.slane %v2325, %v2338
    %v2340 = vcombine.high %v2332, %v2332
    %v2341 = vcombine.high %v2339, %v2339
    %v2343 = vunpack.c.l.s4 1966171168
    %v2344 = vunpack.c.0.s8 %v2343
    %v2345 = vlaneseq
    %v2346 = vshrl.u32 %v2345, 7
    %v2347 = vsub.s32 %v2344, %v2346
    %v2348 = vrot.slane %v2332, %v2347
    %v2350 = vunpack.c.l.s4 1966171168
    %v2351 = vunpack.c.0.s8 %v2350
    %v2352 = vlaneseq
    %v2353 = vshrl.u32 %v2352, 7
    %v2354 = vsub.s32 %v2351, %v2353
    %v2355 = vrot.slane %v2339, %v2354
    %v2357 = vunpack.c.l.s4 1966171168
    %v2358 = vunpack.c.0.s8 %v2357
    %v2359 = vlaneseq
    %v2360 = vshrl.u32 %v2359, 7
    %v2361 = vsub.s32 %v2358, %v2360
    %v2362 = vrot.slane %v2340, %v2361
    %v2364 = vunpack.c.l.s4 1966171168
    %v2365 = vunpack.c.0.s8 %v2364
    %v2366 = vlaneseq
    %v2367 = vshrl.u32 %v2366, 7
    %v2368 = vsub.s32 %v2365, %v2367
    %v2369 = vrot.slane %v2341, %v2368
    %v2370 = vcombine.high %v2348, %v2348
    %v2371 = vcombine.high %v2355, %v2355
    %v2372 = vcombine.high %v2362, %v2362
    %v2373 = vcombine.high %v2369, %v2369
    %2382 = vst [vmem:[#allocation13 + $0x6] sm:$0x1] %v2348
    %2383 = vst [vmem:[#allocation13 + $0xe] sm:$0x1] %v2362
    %2384 = vst [vmem:[#allocation13 + $0x16] sm:$0x1] %v2370
    %2385 = vst [vmem:[#allocation13 + $0x1e] sm:$0x1] %v2372
    %2386 = vst [vmem:[#allocation13 + $0x26] sm:$0x1] %v2355
    %2387 = vst [vmem:[#allocation13 + $0x2e] sm:$0x1] %v2369
    %2388 = vst [vmem:[#allocation13 + $0x36] sm:$0x1] %v2371
    %2389 = vst [vmem:[#allocation13 + $0x3e] sm:$0x1] %v2373
    %v2391 = vcombine.high %v1925, %v1925
    %v2393 = vunpack.c.l.s4 1966171168
    %v2394 = vunpack.c.0.s8 %v2393
    %v2395 = vlaneseq
    %v2396 = vshrl.u32 %v2395, 7
    %v2397 = vsub.s32 %v2394, %v2396
    %v2398 = vrot.slane %v1925, %v2397
    %v2400 = vunpack.c.l.s4 1966171168
    %v2401 = vunpack.c.0.s8 %v2400
    %v2402 = vlaneseq
    %v2403 = vshrl.u32 %v2402, 7
    %v2404 = vsub.s32 %v2401, %v2403
    %v2405 = vrot.slane %v2391, %v2404
    %v2406 = vcombine.high %v2398, %v2398
    %v2407 = vcombine.high %v2405, %v2405
    %v2409 = vunpack.c.l.s4 1966171168
    %v2410 = vunpack.c.0.s8 %v2409
    %v2411 = vlaneseq
    %v2412 = vshrl.u32 %v2411, 7
    %v2413 = vsub.s32 %v2410, %v2412
    %v2414 = vrot.slane %v2398, %v2413
    %v2416 = vunpack.c.l.s4 1966171168
    %v2417 = vunpack.c.0.s8 %v2416
    %v2418 = vlaneseq
    %v2419 = vshrl.u32 %v2418, 7
    %v2420 = vsub.s32 %v2417, %v2419
    %v2421 = vrot.slane %v2405, %v2420
    %v2423 = vunpack.c.l.s4 1966171168
    %v2424 = vunpack.c.0.s8 %v2423
    %v2425 = vlaneseq
    %v2426 = vshrl.u32 %v2425, 7
    %v2427 = vsub.s32 %v2424, %v2426
    %v2428 = vrot.slane %v2406, %v2427
    %v2430 = vunpack.c.l.s4 1966171168
    %v2431 = vunpack.c.0.s8 %v2430
    %v2432 = vlaneseq
    %v2433 = vshrl.u32 %v2432, 7
    %v2434 = vsub.s32 %v2431, %v2433
    %v2435 = vrot.slane %v2407, %v2434
    %v2436 = vcombine.high %v2414, %v2414
    %v2437 = vcombine.high %v2421, %v2421
    %v2438 = vcombine.high %v2428, %v2428
    %v2439 = vcombine.high %v2435, %v2435
    %2448 = vst [vmem:[#allocation13 + $0x7] sm:$0x1] %v2414
    %2449 = vst [vmem:[#allocation13 + $0xf] sm:$0x1] %v2428
    %2450 = vst [vmem:[#allocation13 + $0x17] sm:$0x1] %v2436
    %2451 = vst [vmem:[#allocation13 + $0x1f] sm:$0x1] %v2438
    %2452 = vst [vmem:[#allocation13 + $0x27] sm:$0x1] %v2421
    %2453 = vst [vmem:[#allocation13 + $0x2f] sm:$0x1] %v2435
    %2454 = vst [vmem:[#allocation13 + $0x37] sm:$0x1] %v2437
    %2455 = vst [vmem:[#allocation13 + $0x3f] sm:$0x1] %v2439
    // Predicated region
    $region50: #{tpu_custom_call.1} parent=1 // pred_check
      _
    $region51: #{tpu_custom_call.1} parent=1 // pred_check_branch
      %2457 = sbr.rel (0) target = $region53
    $region52: #{tpu_custom_call.1} parent=1 // pred_region
      %s2459 = ssub.s32 1024, 1024
      %2460 = vsyncadd [#allocation7], %s2459
      %s2461 = sshll.u32 [#allocation13], 4
      %s2462 = int_to_ptr.vmem [resolvable:$true] %s2461
      %2467 = dma.vmem_to_hbm [thread:$0]  %s2462, 1024, %s7, [#allocation7], 128, 128, 8
    $region53: #{tpu_custom_call.1} parent=1 // pred_fallthru
      _
    // Predicated region
    $region54: #{tpu_custom_call.1} parent=1 // pred_check
      _
    $region55: #{tpu_custom_call.1} parent=1 // pred_check_branch
      %2469 = sbr.rel (0) target = $region57
    $region56: #{tpu_custom_call.1} parent=1 // pred_region
      %2470 = dma.done [#allocation7], 1024
    $region57: #{tpu_custom_call.1} parent=1 // pred_fallthru
      _
    %2471 = vsyncpa [#allocation6], 1
    %2472 = vsyncpa [#allocation9], 1
    %2473 = vsyncpa [#allocation12], 1
    %2474 = vsyncpa [#allocation7], 1

</llo_original>
